<compile_context>
chip_gen: v7x
topology: tpu7x:2x2x1
jax: 0.10.0
libtpu: 0.0.40
codegen_flags: <defaults>
</compile_context>

<pallas_src>
import functools

import jax
import jax.numpy as jnp
import numpy as np
from jax.experimental import pallas as pl
from jax.experimental.pallas import tpu as pltpu

BN_EPS = 4e-5   # matches nn.BatchNorm2d(..., eps=4e-05)
LANE = 128


def _ceil_to(x, m):
    return (x + m - 1) // m * m


def _pad_last(x, target):
    c = x.shape[-1]
    if c == target:
        return x
    return jnp.pad(x, [(0, 0)] * (x.ndim - 1) + [(0, target - c)])


def _choose_row_tile(rows):
    # Largest power-of-two tile <= 512 that still leaves >= 2 grid steps, so the
    # row axis can be sharded across v7x's two TensorCores. 256-512 row tiles
    # sit near the measured HBM-roofline plateau and (with 128-wide cout tiles,
    # bf16) stay well inside v7x's 64 MiB VMEM even at real C2f sizes.
    for t in (512, 256, 128, 64, 32, 16, 8):
        if rows >= 2 * t:
            return t
    return 8


# ---------------------------------------------------------------------------
# Fused kernel: out = SiLU((sum_k x_k @ W_k) * scale + bias) [+ residual]
# ---------------------------------------------------------------------------
@functools.lru_cache(maxsize=None)
def _make_fused_kernel(n_in, has_residual):
    def kernel(*refs):
        xs = refs[:n_in]                       # each (row_tile, K) bf16
        w_ref = refs[n_in]                     # (n_in, K, cout_tile) bf16
        s_ref = refs[n_in + 1]                 # (1, cout_tile) f32
        b_ref = refs[n_in + 2]                 # (1, cout_tile) f32
        res_ref = refs[n_in + 3] if has_residual else None
        o_ref = refs[-1]                       # (row_tile, cout_tile)

        acc = jnp.dot(xs[0][...], w_ref[0], preferred_element_type=jnp.float32)
        for k in range(1, n_in):
            acc = acc + jnp.dot(xs[k][...], w_ref[k],
                                preferred_element_type=jnp.float32)
        y = acc * s_ref[...] + b_ref[...]
        # SiLU: y * sigmoid(y); exp + approximate reciprocal run on the EUP slot,
        # leaving the VALU slots for the scale/bias FMA.
        y = y * pl.reciprocal(1.0 + jnp.exp(-y), approx=True)
        if has_residual:
            y = y + res_ref[...].astype(jnp.float32)
        o_ref[...] = y.astype(o_ref.dtype)

    return kernel


def _fused_conv(xs, w_stack, scale, bias, residual=None, out_dtype=jnp.bfloat16):
    """xs: list of (R, K) lane-padded activation slabs (same R, same K).
    w_stack: (n_in, K, Cout_p); scale/bias: (1, Cout_p) f32;
    residual: optional (R, Cout_p). Returns (R, Cout_p) in out_dtype."""
    n_in = len(xs)
    R, K = xs[0].shape
    cout_p = w_stack.shape[-1]

    row_tile = _choose_row_tile(R)
    r_p = _ceil_to(R, row_tile)
    if r_p != R:
        xs = [jnp.pad(x, ((0, r_p - R), (0, 0))) for x in xs]
        if residual is not None:
            residual = jnp.pad(residual, ((0, r_p - R), (0, 0)))
    cout_tile = LANE
    grid = (r_p // row_tile, cout_p // cout_tile)

    in_specs = [pl.BlockSpec((row_tile, K), lambda i, j: (i, 0))
                for _ in range(n_in)]
    in_specs += [
        pl.BlockSpec((n_in, K, cout_tile), lambda i, j: (0, 0, j)),  # resident W
        pl.BlockSpec((1, cout_tile), lambda i, j: (0, j)),           # scale
        pl.BlockSpec((1, cout_tile), lambda i, j: (0, j)),           # bias
    ]
    args = list(xs) + [w_stack, scale, bias]
    if residual is not None:
        in_specs.append(pl.BlockSpec((row_tile, cout_tile), lambda i, j: (i, j)))
        args.append(residual)

    bpe = jnp.dtype(out_dtype).itemsize
    cost = pl.CostEstimate(
        flops=2 * r_p * K * cout_p * n_in,
        transcendentals=r_p * cout_p,
        bytes_accessed=(n_in * r_p * K + n_in * K * cout_p + r_p * cout_p) * bpe,
    )

    out = pl.pallas_call(
        _make_fused_kernel(n_in, residual is not None),
        grid=grid,
        in_specs=in_specs,
        out_specs=pl.BlockSpec((row_tile, cout_tile), lambda i, j: (i, j)),
        out_shape=jax.ShapeDtypeStruct((r_p, cout_p), out_dtype),
        compiler_params=pltpu.CompilerParams(
            dimension_semantics=("parallel", "parallel"),
            vmem_limit_bytes=48 * 1024 * 1024,   # safe on v5e/v6e/v7x
        ),
        cost_estimate=cost,
    )(*args)
    return out[:R] if r_p != R else out


# ---------------------------------------------------------------------------
# BN folding + weight layout prep (padded, lane-aligned kernel operands)
# ---------------------------------------------------------------------------
def _bn_fold(cb):
    scale = cb["gamma"] / jnp.sqrt(cb["var"] + BN_EPS)
    bias = (cb["b"] - cb["mean"]) * scale + cb["beta"]
    return scale, bias


def _prep_cv1(cb, dtype):
    # 1x1 conv cin -> 2c; the two chunk(2) halves are laid out as two separate
    # lane-aligned slabs of c_p channels each, so the split is free downstream.
    cin, two_c = cb["w"].shape[2], cb["w"].shape[3]
    c = two_c // 2
    cin_p, c_p = _ceil_to(cin, LANE), _ceil_to(c, LANE)
    scale, bias = _bn_fold(cb)
    wk = cb["w"][0, 0]                                     # (cin, 2c)
    w = jnp.zeros((1, cin_p, 2 * c_p), jnp.float32)
    w = w.at[0, :cin, :c].set(wk[:, :c])
    w = w.at[0, :cin, c_p:c_p + c].set(wk[:, c:])
    s = jnp.zeros((1, 2 * c_p), jnp.float32)
    s = s.at[0, :c].set(scale[:c]).at[0, c_p:c_p + c].set(scale[c:])
    b = jnp.zeros((1, 2 * c_p), jnp.float32)
    b = b.at[0, :c].set(bias[:c]).at[0, c_p:c_p + c].set(bias[c:])
    return w.astype(dtype), s, b, cin_p, c_p


def _prep_3x3(cb, dtype):
    # 3x3 conv cin -> cout consumed as one K = 9*cin matmul (im2col layout).
    cin, cout = cb["w"].shape[2], cb["w"].shape[3]
    k_p, cout_p = _ceil_to(9 * cin, LANE), _ceil_to(cout, LANE)
    scale, bias = _bn_fold(cb)
    wk = cb["w"].reshape(9 * cin, cout)                    # tap-major (HWIO)
    w = jnp.zeros((1, k_p, cout_p), jnp.float32).at[0, :9 * cin, :cout].set(wk)
    s = jnp.zeros((1, cout_p), jnp.float32).at[0, :cout].set(scale)
    b = jnp.zeros((1, cout_p), jnp.float32).at[0, :cout].set(bias)
    return w.astype(dtype), s, b


def _prep_cv2(cb, n_slabs, dtype):
    # Final 1x1 conv over the (2+n)*c concat. The concat is fused by handing
    # the kernel one (c_p, cout_p) weight slab per branch (partials summed).
    cin_tot, cout = cb["w"].shape[2], cb["w"].shape[3]
    c = cin_tot // n_slabs
    c_p, cout_p = _ceil_to(c, LANE), _ceil_to(cout, LANE)
    scale, bias = _bn_fold(cb)
    wk = cb["w"][0, 0]                                     # (n_slabs*c, cout)
    w = jnp.zeros((n_slabs, c_p, cout_p), jnp.float32)
    for k in range(n_slabs):
        w = w.at[k, :c, :cout].set(wk[k * c:(k + 1) * c, :])
    s = jnp.zeros((1, cout_p), jnp.float32).at[0, :cout].set(scale)
    b = jnp.zeros((1, cout_p), jnp.float32).at[0, :cout].set(bias)
    return w.astype(dtype), s, b


def _im2col3x3(h_flat, n, h, w, c_real, dtype):
    # Pre-shift the 9 taps once in XLA so the Pallas kernel does ONE big-K
    # matmul with no in-kernel slice/reshape relayouts (option sanctioned by
    # the perf review). At production feature-map sizes, prefer in-kernel halo
    # loads (spatial tiles + pltpu.roll) to avoid the 9x HBM materialisation.
    x = h_flat[:, :c_real].reshape(n, h, w, c_real)
    xp = jnp.pad(x, ((0, 0), (1, 1), (1, 1), (0, 0)))
    taps = [xp[:, dy:dy + h, dx:dx + w, :] for dy in range(3) for dx in range(3)]
    col = jnp.concatenate(taps, axis=-1).reshape(n * h * w, 9 * c_real)
    return _pad_last(col, _ceil_to(9 * c_real, LANE)).astype(dtype)


# ---------------------------------------------------------------------------
# C2f forward (Pallas kernel path). NCHW in / NCHW out, NHWC internally.
# ---------------------------------------------------------------------------
def _c2f_forward_impl(x_nchw, params, *, c, cout, shortcut=False,
                      compute_dtype=jnp.bfloat16):
    n, cin, h, w = x_nchw.shape
    rows = n * h * w
    c_p = _ceil_to(c, LANE)

    x = jnp.transpose(x_nchw, (0, 2, 3, 1)).astype(compute_dtype)     # NHWC
    w1, s1, b1, cin_p, _ = _prep_cv1(params["cv1"], compute_dtype)
    x2 = _pad_last(x.reshape(rows, cin), cin_p)

    y = _fused_conv([x2], w1, s1, b1, out_dtype=compute_dtype)        # (rows, 2*c_p)
    ys = [y[:, :c_p], y[:, c_p:]]                                     # chunk(2, C)

    for bp in params["m"]:                                            # Bottleneck(c, c)
        wa, sa, ba = _prep_3x3(bp["cv1"], compute_dtype)
        wb, sb, bb = _prep_3x3(bp["cv2"], compute_dtype)
        col = _im2col3x3(ys[-1], n, h, w, c, compute_dtype)
        h1 = _fused_conv([col], wa, sa, ba, out_dtype=compute_dtype)
        col = _im2col3x3(h1, n, h, w, c, compute_dtype)
        res = ys[-1] if shortcut else None                            # fused residual
        ys.append(_fused_conv([col], wb, sb, bb, residual=res,
                              out_dtype=compute_dtype))

    w2, s2, b2 = _prep_cv2(params["cv2"], len(ys), compute_dtype)
    out = _fused_conv(ys, w2, s2, b2, out_dtype=compute_dtype)        # concat fused
    out = out[:, :cout].astype(jnp.float32).reshape(n, h, w, cout)
    return jnp.transpose(out, (0, 3, 1, 2))                           # NHWC -> NCHW


c2f_forward = jax.jit(
    _c2f_forward_impl,
    static_argnames=("c", "cout", "shortcut", "compute_dtype"))


# ---------------------------------------------------------------------------
# Deterministic synthetic parameters + pure-JAX reference
# ---------------------------------------------------------------------------
def init_convblock(key, cin, cout, ksize):
    k1, k2, k3, k4, k5, k6 = jax.random.split(key, 6)
    w = jax.random.normal(k1, (ksize, ksize, cin, cout), jnp.float32) * 0.1  # HWIO
    b = jax.random.normal(k2, (cout,), jnp.float32) * 0.1
    gamma = 1.0 + 0.1 * jax.random.normal(k3, (cout,), jnp.float32)
    beta = 0.1 * jax.random.normal(k4, (cout,), jnp.float32)
    mean = 0.1 * jax.random.normal(k5, (cout,), jnp.float32)
    var = 1.0 + 0.1 * jnp.abs(jax.random.normal(k6, (cout,), jnp.float32))
    return dict(w=w, b=b, gamma=gamma, beta=beta, mean=mean, var=var)


def _silu(y):
    return y * jax.nn.sigmoid(y)


def _convblock_ref(x_nhwc, cb):
    y = jax.lax.conv_general_dilated(
        x_nhwc, cb["w"], window_strides=(1, 1), padding="SAME",
        dimension_numbers=("NHWC", "HWIO", "NHWC")) + cb["b"]
    y = (y - cb["mean"]) * cb["gamma"] / jnp.sqrt(cb["var"] + BN_EPS) + cb["beta"]
    return _silu(y)


def c2f_reference(x_nchw, params, c, shortcut=False):
    x = jnp.transpose(x_nchw, (0, 2, 3, 1))
    y = _convblock_ref(x, params["cv1"])
    ys = [y[..., :c], y[..., c:]]
    for bp in params["m"]:
        hh = _convblock_ref(_convblock_ref(ys[-1], bp["cv1"]), bp["cv2"])
        ys.append(ys[-1] + hh if shortcut else hh)
    out = _convblock_ref(jnp.concatenate(ys, -1), params["cv2"])
    return jnp.transpose(out, (0, 3, 1, 2))


if __name__ == "__main__":
    key = jax.random.PRNGKey(0)
    N, Cin, H, W = 2, 4, 16, 16
    Cout, n_blocks, e = 8, 2, 0.5
    c = int(Cout * e)

    keys = jax.random.split(key, 3 + 2 * n_blocks)
    kx, kcv1, kcv2 = keys[0], keys[1], keys[2]
    km = keys[3:]

    x = jax.random.normal(kx, (N, Cin, H, W), jnp.float32)   # NCHW, like PyTorch

    params = {
        "cv1": init_convblock(kcv1, Cin, 2 * c, 1),
        "cv2": init_convblock(kcv2, (2 + n_blocks) * c, Cout, 1),
        "m": [
            dict(cv1=init_convblock(km[2 * i], c, c, 3),
                 cv2=init_convblock(km[2 * i + 1], c, c, 3))
            for i in range(n_blocks)
        ],
    }

    # C2f default path (shortcut=False), as used by ConvNeXtTiny's heads.
    out = jax.block_until_ready(
        c2f_forward(x, params, c=c, cout=Cout, shortcut=False))
    ref = c2f_reference(x, params, c, shortcut=False)
    assert out.shape == (N, Cout, H, W)
    # bf16 operands/storage -> compare against the f32 reference with a
    # bf16-appropriate tolerance.
    assert np.allclose(np.asarray(out), np.asarray(ref), atol=2e-2, rtol=2e-2), \
        float(np.max(np.abs(np.asarray(out) - np.asarray(ref))))

    # Also exercise the fused-residual (Bottleneck shortcut=True) path.
    out_sc = jax.block_until_ready(
        c2f_forward(x, params, c=c, cout=Cout, shortcut=True))
    ref_sc = c2f_reference(x, params, c, shortcut=True)
    assert np.allclose(np.asarray(out_sc), np.asarray(ref_sc),
                       atol=2e-2, rtol=2e-2)

    print("KERNEL_OK")
</pallas_src>

<mosaic_0001>
module attributes {stable_mosaic.version = 11 : i64} {
  func.func @kernel(%arg0: i32, %arg1: i32, %arg2: memref<256x128xbf16, #tpu.memory_space<vmem>>, %arg3: memref<1x128x128xbf16, #tpu.memory_space<vmem>>, %arg4: memref<1x128xf32, #tpu.memory_space<vmem>>, %arg5: memref<1x128xf32, #tpu.memory_space<vmem>>, %arg6: memref<256x128xbf16, #tpu.memory_space<vmem>>) attributes {dimension_semantics = [#tpu.dimension_semantics<parallel>, #tpu.dimension_semantics<parallel>], iteration_bounds = array<i64: 2, 2>, scalar_prefetch = 0 : i64, scratch_operands = 0 : i64, tpu.core_type = #tpu.core_type<tc>, window_params = [{transform_indices = @transform_0, window_bounds = array<i64: 256, 128>}, {transform_indices = @transform_1, window_bounds = array<i64: 1, 128, 128>}, {transform_indices = @transform_2, window_bounds = array<i64: 1, 128>}, {transform_indices = @transform_3, window_bounds = array<i64: 1, 128>}, {transform_indices = @transform_4, window_bounds = array<i64: 256, 128>}]} {
    %c0 = arith.constant 0 : index
    %c0_0 = arith.constant 0 : index
    %0 = vector.load %arg2[%c0, %c0_0] : memref<256x128xbf16, #tpu.memory_space<vmem>>, vector<256x128xbf16>
    %c0_1 = arith.constant 0 : index
    %c0_2 = arith.constant 0 : index
    %c0_3 = arith.constant 0 : index
    %1 = vector.load %arg3[%c0_1, %c0_2, %c0_3] : memref<1x128x128xbf16, #tpu.memory_space<vmem>>, vector<1x128x128xbf16>
    %2 = vector.shape_cast %1 : vector<1x128x128xbf16> to vector<128x128xbf16>
    %cst = arith.constant dense<0.000000e+00> : vector<256x128xf32>
    %3 = tpu.matmul %0, %2, %cst {dimension_numbers = #tpu.dot_dimension_numbers<[1], [0], [0], [1], [0, 0, 1, 1], [], []>} : vector<256x128xbf16>, vector<128x128xbf16>, vector<256x128xf32> -> vector<256x128xf32>
    %c0_4 = arith.constant 0 : index
    %c0_5 = arith.constant 0 : index
    %4 = vector.load %arg4[%c0_4, %c0_5] : memref<1x128xf32, #tpu.memory_space<vmem>>, vector<1x128xf32>
    %5 = vector.broadcast %4 : vector<1x128xf32> to vector<256x128xf32>
    %6 = arith.mulf %3, %5 : vector<256x128xf32>
    %c0_6 = arith.constant 0 : index
    %c0_7 = arith.constant 0 : index
    %7 = vector.load %arg5[%c0_6, %c0_7] : memref<1x128xf32, #tpu.memory_space<vmem>>, vector<1x128xf32>
    %8 = vector.broadcast %7 : vector<1x128xf32> to vector<256x128xf32>
    %9 = arith.addf %6, %8 : vector<256x128xf32>
    %cst_8 = arith.constant 0.000000e+00 : f32
    %10 = vector.broadcast %cst_8 : f32 to vector<256x128xf32>
    %11 = arith.subf %10, %9 : vector<256x128xf32>
    %12 = math.exp %11 : vector<256x128xf32>
    %cst_9 = arith.constant 1.000000e+00 : f32
    %13 = vector.broadcast %cst_9 : f32 to vector<256x128xf32>
    %14 = arith.addf %13, %12 : vector<256x128xf32>
    %15 = tpu.reciprocal %14 {approx = true} : vector<256x128xf32> -> vector<256x128xf32>
    %16 = arith.mulf %9, %15 : vector<256x128xf32>
    %17 = arith.truncf %16 : vector<256x128xf32> to vector<256x128xbf16>
    %c0_10 = arith.constant 0 : index
    %c0_11 = arith.constant 0 : index
    %18 = vector.load %arg6[%c0_10, %c0_11] : memref<256x128xbf16, #tpu.memory_space<vmem>>, vector<256x128xbf16>
    tpu.vector_store %arg6[%c0_10, %c0_11], %17 {strides = array<i32>} : memref<256x128xbf16, #tpu.memory_space<vmem>>, vector<256x128xbf16>,
    return
  }
  func.func @transform_0(%arg0: i32, %arg1: i32) -> (i32, i32) {
    %c0_i32 = arith.constant 0 : i32
    %c0_i32_0 = arith.constant 0 : i32
    return %arg0, %c0_i32 : i32, i32
  }
  func.func @transform_1(%arg0: i32, %arg1: i32) -> (i32, i32, i32) {
    %c0_i32 = arith.constant 0 : i32
    %c0_i32_0 = arith.constant 0 : i32
    %c0_i32_1 = arith.constant 0 : i32
    return %c0_i32, %c0_i32_0, %arg1 : i32, i32, i32
  }
  func.func @transform_2(%arg0: i32, %arg1: i32) -> (i32, i32) {
    %c0_i32 = arith.constant 0 : i32
    %c0_i32_0 = arith.constant 0 : i32
    return %c0_i32, %arg1 : i32, i32
  }
  func.func @transform_3(%arg0: i32, %arg1: i32) -> (i32, i32) {
    %c0_i32 = arith.constant 0 : i32
    %c0_i32_0 = arith.constant 0 : i32
    return %c0_i32, %arg1 : i32, i32
  }
  func.func @transform_4(%arg0: i32, %arg1: i32) -> (i32, i32) {
    %c0_i32 = arith.constant 0 : i32
    return %arg0, %arg1 : i32, i32
  }
}

module attributes {stable_mosaic.version = 11 : i64} {
  func.func @kernel(%arg0: i32, %arg1: i32, %arg2: memref<256x128xbf16, #tpu.memory_space<vmem>>, %arg3: memref<1x128x128xbf16, #tpu.memory_space<vmem>>, %arg4: memref<1x128xf32, #tpu.memory_space<vmem>>, %arg5: memref<1x128xf32, #tpu.memory_space<vmem>>, %arg6: memref<256x128xbf16, #tpu.memory_space<vmem>>) attributes {dimension_semantics = [#tpu.dimension_semantics<parallel>, #tpu.dimension_semantics<parallel>], iteration_bounds = array<i64: 2, 1>, scalar_prefetch = 0 : i64, scratch_operands = 0 : i64, tpu.core_type = #tpu.core_type<tc>, window_params = [{transform_indices = @transform_0, window_bounds = array<i64: 256, 128>}, {transform_indices = @transform_1, window_bounds = array<i64: 1, 128, 128>}, {transform_indices = @transform_2, window_bounds = array<i64: 1, 128>}, {transform_indices = @transform_3, window_bounds = array<i64: 1, 128>}, {transform_indices = @transform_4, window_bounds = array<i64: 256, 128>}]} {
    %c0 = arith.constant 0 : index
    %c0_0 = arith.constant 0 : index
    %0 = vector.load %arg2[%c0, %c0_0] : memref<256x128xbf16, #tpu.memory_space<vmem>>, vector<256x128xbf16>
    %c0_1 = arith.constant 0 : index
    %c0_2 = arith.constant 0 : index
    %c0_3 = arith.constant 0 : index
    %1 = vector.load %arg3[%c0_1, %c0_2, %c0_3] : memref<1x128x128xbf16, #tpu.memory_space<vmem>>, vector<1x128x128xbf16>
    %2 = vector.shape_cast %1 : vector<1x128x128xbf16> to vector<128x128xbf16>
    %cst = arith.constant dense<0.000000e+00> : vector<256x128xf32>
    %3 = tpu.matmul %0, %2, %cst {dimension_numbers = #tpu.dot_dimension_numbers<[1], [0], [0], [1], [0, 0, 1, 1], [], []>} : vector<256x128xbf16>, vector<128x128xbf16>, vector<256x128xf32> -> vector<256x128xf32>
    %c0_4 = arith.constant 0 : index
    %c0_5 = arith.constant 0 : index
    %4 = vector.load %arg4[%c0_4, %c0_5] : memref<1x128xf32, #tpu.memory_space<vmem>>, vector<1x128xf32>
    %5 = vector.broadcast %4 : vector<1x128xf32> to vector<256x128xf32>
    %6 = arith.mulf %3, %5 : vector<256x128xf32>
    %c0_6 = arith.constant 0 : index
    %c0_7 = arith.constant 0 : index
    %7 = vector.load %arg5[%c0_6, %c0_7] : memref<1x128xf32, #tpu.memory_space<vmem>>, vector<1x128xf32>
    %8 = vector.broadcast %7 : vector<1x128xf32> to vector<256x128xf32>
    %9 = arith.addf %6, %8 : vector<256x128xf32>
    %cst_8 = arith.constant 0.000000e+00 : f32
    %10 = vector.broadcast %cst_8 : f32 to vector<256x128xf32>
    %11 = arith.subf %10, %9 : vector<256x128xf32>
    %12 = math.exp %11 : vector<256x128xf32>
    %cst_9 = arith.constant 1.000000e+00 : f32
    %13 = vector.broadcast %cst_9 : f32 to vector<256x128xf32>
    %14 = arith.addf %13, %12 : vector<256x128xf32>
    %15 = tpu.reciprocal %14 {approx = true} : vector<256x128xf32> -> vector<256x128xf32>
    %16 = arith.mulf %9, %15 : vector<256x128xf32>
    %17 = arith.truncf %16 : vector<256x128xf32> to vector<256x128xbf16>
    %c0_10 = arith.constant 0 : index
    %c0_11 = arith.constant 0 : index
    %18 = vector.load %arg6[%c0_10, %c0_11] : memref<256x128xbf16, #tpu.memory_space<vmem>>, vector<256x128xbf16>
    tpu.vector_store %arg6[%c0_10, %c0_11], %17 {strides = array<i32>} : memref<256x128xbf16, #tpu.memory_space<vmem>>, vector<256x128xbf16>,
    return
  }
  func.func @transform_0(%arg0: i32, %arg1: i32) -> (i32, i32) {
    %c0_i32 = arith.constant 0 : i32
    %c0_i32_0 = arith.constant 0 : i32
    return %arg0, %c0_i32 : i32, i32
  }
  func.func @transform_1(%arg0: i32, %arg1: i32) -> (i32, i32, i32) {
    %c0_i32 = arith.constant 0 : i32
    %c0_i32_0 = arith.constant 0 : i32
    %c0_i32_1 = arith.constant 0 : i32
    return %c0_i32, %c0_i32_0, %arg1 : i32, i32, i32
  }
  func.func @transform_2(%arg0: i32, %arg1: i32) -> (i32, i32) {
    %c0_i32 = arith.constant 0 : i32
    %c0_i32_0 = arith.constant 0 : i32
    return %c0_i32, %arg1 : i32, i32
  }
  func.func @transform_3(%arg0: i32, %arg1: i32) -> (i32, i32) {
    %c0_i32 = arith.constant 0 : i32
    %c0_i32_0 = arith.constant 0 : i32
    return %c0_i32, %arg1 : i32, i32
  }
  func.func @transform_4(%arg0: i32, %arg1: i32) -> (i32, i32) {
    %c0_i32 = arith.constant 0 : i32
    return %arg0, %arg1 : i32, i32
  }
}

module attributes {stable_mosaic.version = 11 : i64} {
  func.func @kernel(%arg0: i32, %arg1: i32, %arg2: memref<256x128xbf16, #tpu.memory_space<vmem>>, %arg3: memref<256x128xbf16, #tpu.memory_space<vmem>>, %arg4: memref<256x128xbf16, #tpu.memory_space<vmem>>, %arg5: memref<256x128xbf16, #tpu.memory_space<vmem>>, %arg6: memref<4x128x128xbf16, #tpu.memory_space<vmem>>, %arg7: memref<1x128xf32, #tpu.memory_space<vmem>>, %arg8: memref<1x128xf32, #tpu.memory_space<vmem>>, %arg9: memref<256x128xbf16, #tpu.memory_space<vmem>>) attributes {dimension_semantics = [#tpu.dimension_semantics<parallel>, #tpu.dimension_semantics<parallel>], iteration_bounds = array<i64: 2, 1>, scalar_prefetch = 0 : i64, scratch_operands = 0 : i64, tpu.core_type = #tpu.core_type<tc>, window_params = [{transform_indices = @transform_0, window_bounds = array<i64: 256, 128>}, {transform_indices = @transform_1, window_bounds = array<i64: 256, 128>}, {transform_indices = @transform_2, window_bounds = array<i64: 256, 128>}, {transform_indices = @transform_3, window_bounds = array<i64: 256, 128>}, {transform_indices = @transform_4, window_bounds = array<i64: 4, 128, 128>}, {transform_indices = @transform_5, window_bounds = array<i64: 1, 128>}, {transform_indices = @transform_6, window_bounds = array<i64: 1, 128>}, {transform_indices = @transform_7, window_bounds = array<i64: 256, 128>}]} {
    %c0 = arith.constant 0 : index
    %c0_0 = arith.constant 0 : index
    %0 = vector.load %arg2[%c0, %c0_0] : memref<256x128xbf16, #tpu.memory_space<vmem>>, vector<256x128xbf16>
    %c0_1 = arith.constant 0 : index
    %c0_2 = arith.constant 0 : index
    %c0_3 = arith.constant 0 : index
    %1 = vector.load %arg6[%c0_1, %c0_2, %c0_3] : memref<4x128x128xbf16, #tpu.memory_space<vmem>>, vector<1x128x128xbf16>
    %2 = vector.shape_cast %1 : vector<1x128x128xbf16> to vector<128x128xbf16>
    %cst = arith.constant dense<0.000000e+00> : vector<256x128xf32>
    %3 = tpu.matmul %0, %2, %cst {dimension_numbers = #tpu.dot_dimension_numbers<[1], [0], [0], [1], [0, 0, 1, 1], [], []>} : vector<256x128xbf16>, vector<128x128xbf16>, vector<256x128xf32> -> vector<256x128xf32>
    %c0_4 = arith.constant 0 : index
    %c0_5 = arith.constant 0 : index
    %4 = vector.load %arg3[%c0_4, %c0_5] : memref<256x128xbf16, #tpu.memory_space<vmem>>, vector<256x128xbf16>
    %c1 = arith.constant 1 : index
    %c0_6 = arith.constant 0 : index
    %c0_7 = arith.constant 0 : index
    %5 = vector.load %arg6[%c1, %c0_6, %c0_7] : memref<4x128x128xbf16, #tpu.memory_space<vmem>>, vector<1x128x128xbf16>
    %6 = vector.shape_cast %5 : vector<1x128x128xbf16> to vector<128x128xbf16>
    %cst_8 = arith.constant dense<0.000000e+00> : vector<256x128xf32>
    %7 = tpu.matmul %4, %6, %cst_8 {dimension_numbers = #tpu.dot_dimension_numbers<[1], [0], [0], [1], [0, 0, 1, 1], [], []>} : vector<256x128xbf16>, vector<128x128xbf16>, vector<256x128xf32> -> vector<256x128xf32>
    %8 = arith.addf %3, %7 : vector<256x128xf32>
    %c0_9 = arith.constant 0 : index
    %c0_10 = arith.constant 0 : index
    %9 = vector.load %arg4[%c0_9, %c0_10] : memref<256x128xbf16, #tpu.memory_space<vmem>>, vector<256x128xbf16>
    %c2 = arith.constant 2 : index
    %c0_11 = arith.constant 0 : index
    %c0_12 = arith.constant 0 : index
    %10 = vector.load %arg6[%c2, %c0_11, %c0_12] : memref<4x128x128xbf16, #tpu.memory_space<vmem>>, vector<1x128x128xbf16>
    %11 = vector.shape_cast %10 : vector<1x128x128xbf16> to vector<128x128xbf16>
    %cst_13 = arith.constant dense<0.000000e+00> : vector<256x128xf32>
    %12 = tpu.matmul %9, %11, %cst_13 {dimension_numbers = #tpu.dot_dimension_numbers<[1], [0], [0], [1], [0, 0, 1, 1], [], []>} : vector<256x128xbf16>, vector<128x128xbf16>, vector<256x128xf32> -> vector<256x128xf32>
    %13 = arith.addf %8, %12 : vector<256x128xf32>
    %c0_14 = arith.constant 0 : index
    %c0_15 = arith.constant 0 : index
    %14 = vector.load %arg5[%c0_14, %c0_15] : memref<256x128xbf16, #tpu.memory_space<vmem>>, vector<256x128xbf16>
    %c3 = arith.constant 3 : index
    %c0_16 = arith.constant 0 : index
    %c0_17 = arith.constant 0 : index
    %15 = vector.load %arg6[%c3, %c0_16, %c0_17] : memref<4x128x128xbf16, #tpu.memory_space<vmem>>, vector<1x128x128xbf16>
    %16 = vector.shape_cast %15 : vector<1x128x128xbf16> to vector<128x128xbf16>
    %cst_18 = arith.constant dense<0.000000e+00> : vector<256x128xf32>
    %17 = tpu.matmul %14, %16, %cst_18 {dimension_numbers = #tpu.dot_dimension_numbers<[1], [0], [0], [1], [0, 0, 1, 1], [], []>} : vector<256x128xbf16>, vector<128x128xbf16>, vector<256x128xf32> -> vector<256x128xf32>
    %18 = arith.addf %13, %17 : vector<256x128xf32>
    %c0_19 = arith.constant 0 : index
    %c0_20 = arith.constant 0 : index
    %19 = vector.load %arg7[%c0_19, %c0_20] : memref<1x128xf32, #tpu.memory_space<vmem>>, vector<1x128xf32>
    %20 = vector.broadcast %19 : vector<1x128xf32> to vector<256x128xf32>
    %21 = arith.mulf %18, %20 : vector<256x128xf32>
    %c0_21 = arith.constant 0 : index
    %c0_22 = arith.constant 0 : index
    %22 = vector.load %arg8[%c0_21, %c0_22] : memref<1x128xf32, #tpu.memory_space<vmem>>, vector<1x128xf32>
    %23 = vector.broadcast %22 : vector<1x128xf32> to vector<256x128xf32>
    %24 = arith.addf %21, %23 : vector<256x128xf32>
    %cst_23 = arith.constant 0.000000e+00 : f32
    %25 = vector.broadcast %cst_23 : f32 to vector<256x128xf32>
    %26 = arith.subf %25, %24 : vector<256x128xf32>
    %27 = math.exp %26 : vector<256x128xf32>
    %cst_24 = arith.constant 1.000000e+00 : f32
    %28 = vector.broadcast %cst_24 : f32 to vector<256x128xf32>
    %29 = arith.addf %28, %27 : vector<256x128xf32>
    %30 = tpu.reciprocal %29 {approx = true} : vector<256x128xf32> -> vector<256x128xf32>
    %31 = arith.mulf %24, %30 : vector<256x128xf32>
    %32 = arith.truncf %31 : vector<256x128xf32> to vector<256x128xbf16>
    %c0_25 = arith.constant 0 : index
    %c0_26 = arith.constant 0 : index
    %33 = vector.load %arg9[%c0_25, %c0_26] : memref<256x128xbf16, #tpu.memory_space<vmem>>, vector<256x128xbf16>
    tpu.vector_store %arg9[%c0_25, %c0_26], %32 {strides = array<i32>} : memref<256x128xbf16, #tpu.memory_space<vmem>>, vector<256x128xbf16>,
    return
  }
  func.func @transform_0(%arg0: i32, %arg1: i32) -> (i32, i32) {
    %c0_i32 = arith.constant 0 : i32
    %c0_i32_0 = arith.constant 0 : i32
    return %arg0, %c0_i32 : i32, i32
  }
  func.func @transform_1(%arg0: i32, %arg1: i32) -> (i32, i32) {
    %c0_i32 = arith.constant 0 : i32
    %c0_i32_0 = arith.constant 0 : i32
    return %arg0, %c0_i32 : i32, i32
  }
  func.func @transform_2(%arg0: i32, %arg1: i32) -> (i32, i32) {
    %c0_i32 = arith.constant 0 : i32
    %c0_i32_0 = arith.constant 0 : i32
    return %arg0, %c0_i32 : i32, i32
  }
  func.func @transform_3(%arg0: i32, %arg1: i32) -> (i32, i32) {
    %c0_i32 = arith.constant 0 : i32
    %c0_i32_0 = arith.constant 0 : i32
    return %arg0, %c0_i32 : i32, i32
  }
  func.func @transform_4(%arg0: i32, %arg1: i32) -> (i32, i32, i32) {
    %c0_i32 = arith.constant 0 : i32
    %c0_i32_0 = arith.constant 0 : i32
    %c0_i32_1 = arith.constant 0 : i32
    return %c0_i32, %c0_i32_0, %arg1 : i32, i32, i32
  }
  func.func @transform_5(%arg0: i32, %arg1: i32) -> (i32, i32) {
    %c0_i32 = arith.constant 0 : i32
    %c0_i32_0 = arith.constant 0 : i32
    return %c0_i32, %arg1 : i32, i32
  }
  func.func @transform_6(%arg0: i32, %arg1: i32) -> (i32, i32) {
    %c0_i32 = arith.constant 0 : i32
    %c0_i32_0 = arith.constant 0 : i32
    return %c0_i32, %arg1 : i32, i32
  }
  func.func @transform_7(%arg0: i32, %arg1: i32) -> (i32, i32) {
    %c0_i32 = arith.constant 0 : i32
    return %arg0, %arg1 : i32, i32
  }
}

</mosaic_0001>

<llo_original>
// kernel: _c2f_forward_impl.6
$region0: #{_c2f_forward_impl.6}
  #allocation0 [shape = 'u32[]', space=smem, size = 0x4, offset = 0x4, fixed_abs, tag = 'smem constant byte address 0x4 - core index']
  #allocation1 [shape = 'u32[144,128]{1,0:T(1,128)}', space=vmem, size = 0x12000, scoped, tag = 'internal scratch']
  %s0 = inlined_call_operand.vmem [shape: bf16[512,128], index: 0, kind: input, shape index: {}]
  %s1 = inlined_call_operand.vmem [shape: bf16[1,128,256], index: 1, kind: input, shape index: {}]
  %s2 = inlined_call_operand.vmem [shape: f32[1,256], index: 2, kind: input, shape index: {}]
  %s3 = inlined_call_operand.vmem [shape: f32[1,256], index: 3, kind: input, shape index: {}]
  %s4 = inlined_call_operand.vmem [shape: bf16[512,256], index: 4, kind: output, shape index: {}]
  %s5 = sld [smem:[#allocation0]]
  $region127: #{_c2f_forward_impl.6} parent=0
    _
  %s7 = ssub.s32 1, %s5
  %s8 = scalar_select 0, %s7, %s5
  $region1: #{_c2f_forward_impl.6} parent=0
    #allocation2 [shape = 'u8[65536]{0}', space=vmem, size = 0x10000, scoped, tag = 'input window, operand 1']
    #allocation3 [shape = 'u8[131072]{0}', space=vmem, size = 0x20000, scoped, tag = 'output window, operand 0']
    loop: start=0, step=1, limit=6
    $region2: #{_c2f_forward_impl.6} parent=1 // loop_pre_header
      _
    $region3: #{_c2f_forward_impl.6} parent=1 // loop_header
      %s10 = sphi 0, %s14
      %p11 = scmp.ge.s32.totalorder %s10, 6
      %s17 = sphi 0, %s29
      %s18 = sphi 0, %s25
      %s19 = sphi 0, %s17
      %s20 = sphi 0, %s18
      %s21 = sphi 0, %s19
      %s22 = sphi 0, %s20
      %s32 = sphi 0, %s34
      %s35 = sphi 0, %s32
      %s36 = sphi 0, %s35
      %s52 = sphi 0, %s36
      %s58 = sphi 0, %s60
      %s61 = sphi 0, %s58
      %s62 = sphi 0, %s61
      %s78 = sphi 0, %s62
      %s84 = sphi 0, %s86
      %s87 = sphi 0, %s84
      %s88 = sphi 0, %s87
      %s104 = sphi 0, %s88
      %s110 = sphi 0, %s112
      %s113 = sphi 0, %s110
      %s114 = sphi 0, %s113
      %s130 = sphi 0, %s114
      %s138 = sphi 0, %s140
      %s141 = sphi 0, %s138
      %s142 = sphi 0, %s141
      %s158 = sphi 0, %s142
    $region4: #{_c2f_forward_impl.6} parent=1 // loop_header_branch
      %13 = sbr.rel (%p11) target = $region8
    $region5: #{_c2f_forward_impl.6} parent=1 // loop_body
      %s15 = ssub.s32 %s10, 1
      %s16 = ssub.s32 %s10, 2
      %s23 = sadd.s32 1, %s18
      %p24 = scmp.ge.s32.totalorder %s23, 2
      %s25 = scalar_select %p24, 0, %s23
      %s26 = sadd.s32 1, %s17
      %s27 = scalar_select %p24, %s26, %s17
      %p28 = scmp.ge.s32.totalorder %s27, 2
      %s29 = scalar_select %p28, 0, %s27
      %s30 = ssub.s32 %s17, %s29
      %p31 = scmp.eq.s32.totalorder %s30, 0
      %s33 = sadd.s32 %s32, 1
      %s34 = scalar_select %p31, %s32, %s33
      %p37 = pneg %p31
      %p38 = scmp.eq.s32.totalorder %s10, 3
      %p39 = por %p37, %p38
      %p40 = scmp.ne.s32.totalorder %s32, %s35
      %p41 = scmp.eq.s32.totalorder %s10, 0
      %p42 = por %p40, %p41
      %p43 = scmp.ne.s32.totalorder %s32, %s35
      %p44 = scmp.eq.s32.totalorder %s15, 3
      %p45 = por %p43, %p44
      %p46 = scmp.ne.s32.totalorder %s35, %s36
      %p47 = scmp.eq.s32.totalorder %s15, 0
      %p48 = por %p46, %p47
      %p49 = scmp.ne.s32.totalorder %s35, %s36
      %p50 = scmp.eq.s32.totalorder %s16, 3
      %p51 = por %p49, %p50
      %p53 = scmp.ne.s32.totalorder %s36, %s52
      %p54 = scmp.eq.s32.totalorder %s16, 0
      %p55 = por %p53, %p54
      %s56 = ssub.s32 %s18, %s25
      %p57 = scmp.eq.s32.totalorder %s56, 0
      %s59 = sadd.s32 %s58, 1
      %s60 = scalar_select %p57, %s58, %s59
      %p63 = pneg %p57
      %p64 = scmp.eq.s32.totalorder %s10, 3
      %p65 = por %p63, %p64
      %p66 = scmp.ne.s32.totalorder %s58, %s61
      %p67 = scmp.eq.s32.totalorder %s10, 0
      %p68 = por %p66, %p67
      %p69 = scmp.ne.s32.totalorder %s58, %s61
      %p70 = scmp.eq.s32.totalorder %s15, 3
      %p71 = por %p69, %p70
      %p72 = scmp.ne.s32.totalorder %s61, %s62
      %p73 = scmp.eq.s32.totalorder %s15, 0
      %p74 = por %p72, %p73
      %p75 = scmp.ne.s32.totalorder %s61, %s62
      %p76 = scmp.eq.s32.totalorder %s16, 3
      %p77 = por %p75, %p76
      %p79 = scmp.ne.s32.totalorder %s62, %s78
      %p80 = scmp.eq.s32.totalorder %s16, 0
      %p81 = por %p79, %p80
      %s82 = ssub.s32 %s18, %s25
      %p83 = scmp.eq.s32.totalorder %s82, 0
      %s85 = sadd.s32 %s84, 1
      %s86 = scalar_select %p83, %s84, %s85
      %p89 = pneg %p83
      %p90 = scmp.eq.s32.totalorder %s10, 3
      %p91 = por %p89, %p90
      %p92 = scmp.ne.s32.totalorder %s84, %s87
      %p93 = scmp.eq.s32.totalorder %s10, 0
      %p94 = por %p92, %p93
      %p95 = scmp.ne.s32.totalorder %s84, %s87
      %p96 = scmp.eq.s32.totalorder %s15, 3
      %p97 = por %p95, %p96
      %p98 = scmp.ne.s32.totalorder %s87, %s88
      %p99 = scmp.eq.s32.totalorder %s15, 0
      %p100 = por %p98, %p99
      %p101 = scmp.ne.s32.totalorder %s87, %s88
      %p102 = scmp.eq.s32.totalorder %s16, 3
      %p103 = por %p101, %p102
      %p105 = scmp.ne.s32.totalorder %s88, %s104
      %p106 = scmp.eq.s32.totalorder %s16, 0
      %p107 = por %p105, %p106
      %s108 = ssub.s32 %s18, %s25
      %p109 = scmp.eq.s32.totalorder %s108, 0
      %s111 = sadd.s32 %s110, 1
      %s112 = scalar_select %p109, %s110, %s111
      %p115 = pneg %p109
      %p116 = scmp.eq.s32.totalorder %s10, 3
      %p117 = por %p115, %p116
      %p118 = scmp.ne.s32.totalorder %s110, %s113
      %p119 = scmp.eq.s32.totalorder %s10, 0
      %p120 = por %p118, %p119
      %p121 = scmp.ne.s32.totalorder %s110, %s113
      %p122 = scmp.eq.s32.totalorder %s15, 3
      %p123 = por %p121, %p122
      %p124 = scmp.ne.s32.totalorder %s113, %s114
      %p125 = scmp.eq.s32.totalorder %s15, 0
      %p126 = por %p124, %p125
      %p127 = scmp.ne.s32.totalorder %s113, %s114
      %p128 = scmp.eq.s32.totalorder %s16, 3
      %p129 = por %p127, %p128
      %p131 = scmp.ne.s32.totalorder %s114, %s130
      %p132 = scmp.eq.s32.totalorder %s16, 0
      %p133 = por %p131, %p132
      %s134 = ssub.s32 %s17, %s29
      %s135 = ssub.s32 %s18, %s25
      %s136 = sor.u32 %s134, %s135
      %p137 = scmp.eq.s32.totalorder %s136, 0
      %s139 = sadd.s32 %s138, 1
      %s140 = scalar_select %p137, %s138, %s139
      %p143 = pneg %p137
      %p144 = scmp.eq.s32.totalorder %s10, 3
      %p145 = por %p143, %p144
      %p146 = scmp.ne.s32.totalorder %s138, %s141
      %p147 = scmp.eq.s32.totalorder %s10, 0
      %p148 = por %p146, %p147
      %p149 = scmp.ne.s32.totalorder %s138, %s141
      %p150 = scmp.eq.s32.totalorder %s15, 3
      %p151 = por %p149, %p150
      %p152 = scmp.ne.s32.totalorder %s141, %s142
      %p153 = scmp.eq.s32.totalorder %s15, 0
      %p154 = por %p152, %p153
      %p155 = scmp.ne.s32.totalorder %s141, %s142
      %p156 = scmp.eq.s32.totalorder %s16, 3
      %p157 = por %p155, %p156
      %p159 = scmp.ne.s32.totalorder %s142, %s158
      %p160 = scmp.eq.s32.totalorder %s16, 0
      %p161 = por %p159, %p160
      %p162 = scmp.le.s32.totalorder 1, %s10
      %p163 = scmp.lt.s32.totalorder %s10, 5
      %p164 = pnand %p162, %p163
      %p165 = pneg %p164
      // Predicated region
      $region9: #{_c2f_forward_impl.6} parent=5 // pred_check
        _
      $region10: #{_c2f_forward_impl.6} parent=5 // pred_check_branch
        %167 = sbr.rel (%p164) target = $region12
      $region11: #{_c2f_forward_impl.6} parent=5 // pred_region
        %s168 = ssub.s32 %s10, 1
      $region12: #{_c2f_forward_impl.6} parent=5 // pred_fallthru
        _
      %p169 = scmp.lt.s32.totalorder %s10, 4
      // Predicated region
      $region13: #{_c2f_forward_impl.6} parent=5 // pred_check
        %p170 = pneg %p169
      $region14: #{_c2f_forward_impl.6} parent=5 // pred_check_branch
        %172 = sbr.rel (%p170) target = $region16
      $region15: #{_c2f_forward_impl.6} parent=5 // pred_region
        // Predicated region
        $region17: #{_c2f_forward_impl.6} parent=15 // pred_check
          %p173 = pneg %p42
        $region18: #{_c2f_forward_impl.6} parent=15 // pred_check_branch
          %175 = sbr.rel (%p173) target = $region20
        $region19: #{_c2f_forward_impl.6} parent=15 // pred_region
          %s176 = smul.u32 32, %s17
          %p177 = scmp.lt.s32.totalorder %s176, 63
          %s178 = scalar_select %p177, %s176, 63
          %s179 = smul.addr %s178, 4
          %s180 = scalar_lea.vmem %s0, %s179
          %s181 = smul.u32 32, %s17
        $region20: #{_c2f_forward_impl.6} parent=15 // pred_fallthru
          _
        // Predicated region
        $region21: #{_c2f_forward_impl.6} parent=15 // pred_check
          %p182 = pneg %p68
        $region22: #{_c2f_forward_impl.6} parent=15 // pred_check_branch
          %184 = sbr.rel (%p182) target = $region24
        $region23: #{_c2f_forward_impl.6} parent=15 // pred_region
          %s185 = sand.u32 %s58, 1
          %s186 = sand.u32 %s58, 1
          %s187 = smul.addr %s186, 64
          %s188 = scalar_lea.vmem [#allocation2], %s187
          %s189 = smul.addr %s18, 4
          %s190 = scalar_lea.vmem %s1, %s189
          // Predicated region
          $region25: #{_c2f_forward_impl.6} parent=23 // pred_check
            _
          $region26: #{_c2f_forward_impl.6} parent=23 // pred_check_branch
            %192 = sbr.rel (0) target = $region28
          $region27: #{_c2f_forward_impl.6} parent=23 // pred_region
            // Predicated region
            $region29: #{_c2f_forward_impl.6} parent=27 // pred_check
              _
            $region30: #{_c2f_forward_impl.6} parent=27 // pred_check_branch
              %194 = sbr.rel target = $region32
            $region31: #{_c2f_forward_impl.6} parent=27 // pred_region
              // Predicated region
              $region44: #{_c2f_forward_impl.6} parent=31 // pred_check
                _
              $region45: #{_c2f_forward_impl.6} parent=31 // pred_check_branch
                %239 = sbr.rel (0) target = $region47
              $region46: #{_c2f_forward_impl.6} parent=31 // pred_region
                loop: start=0, step=1, limit=1
                $region48: #{_c2f_forward_impl.6} parent=46 // loop_pre_header
                  _
                $region49: #{_c2f_forward_impl.6} parent=46 // loop_header
                  %s241 = sphi 0, %s245
                  %p242 = scmp.ge.s32.totalorder %s241, 1
                  %s246 = sphi %s190, %s190
                  %s247 = sphi %s188, %s188
                $region50: #{_c2f_forward_impl.6} parent=46 // loop_header_branch
                  %244 = sbr.rel (%p242) target = $region54
                $region51: #{_c2f_forward_impl.6} parent=46 // loop_body
                  _
                $region52: #{_c2f_forward_impl.6} parent=46 // loop_footer
                  %s245 = sadd.s32 1, %s241
                $region53: #{_c2f_forward_impl.6} parent=46 // loop_footer_branch
                  %240 = sbr.rel target = $region49
                $region54: #{_c2f_forward_impl.6} parent=46 // loop_exit
                  _
                loop: start=0, step=1, limit=1
                $region55: #{_c2f_forward_impl.6} parent=46 // loop_pre_header
                  _
                $region56: #{_c2f_forward_impl.6} parent=46 // loop_header
                  %s250 = sphi 0, %s254
                  %p251 = scmp.ge.s32.totalorder %s250, 1
                  %s255 = sphi %s190, %s190
                  %s256 = sphi %s188, %s188
                $region57: #{_c2f_forward_impl.6} parent=46 // loop_header_branch
                  %253 = sbr.rel (%p251) target = $region61
                $region58: #{_c2f_forward_impl.6} parent=46 // loop_body
                  %v257 = vld [vmem:[%s255] sm:$0xf]
                  %258 = vst [vmem:[%s256] sm:$0xf] %v257
                  %v259 = vld [vmem:[%s255 + $0x8] sm:$0xf]
                  %260 = vst [vmem:[%s256 + $0x4] sm:$0xf] %v259
                  %v261 = vld [vmem:[%s255 + $0x10] sm:$0xf]
                  %262 = vst [vmem:[%s256 + $0x8] sm:$0xf] %v261
                  %v263 = vld [vmem:[%s255 + $0x18] sm:$0xf]
                  %264 = vst [vmem:[%s256 + $0xc] sm:$0xf] %v263
                  %v265 = vld [vmem:[%s255 + $0x20] sm:$0xf]
                  %266 = vst [vmem:[%s256 + $0x10] sm:$0xf] %v265
                  %v267 = vld [vmem:[%s255 + $0x28] sm:$0xf]
                  %268 = vst [vmem:[%s256 + $0x14] sm:$0xf] %v267
                  %v269 = vld [vmem:[%s255 + $0x30] sm:$0xf]
                  %270 = vst [vmem:[%s256 + $0x18] sm:$0xf] %v269
                  %v271 = vld [vmem:[%s255 + $0x38] sm:$0xf]
                  %272 = vst [vmem:[%s256 + $0x1c] sm:$0xf] %v271
                  %v273 = vld [vmem:[%s255 + $0x40] sm:$0xf]
                  %274 = vst [vmem:[%s256 + $0x20] sm:$0xf] %v273
                  %v275 = vld [vmem:[%s255 + $0x48] sm:$0xf]
                  %276 = vst [vmem:[%s256 + $0x24] sm:$0xf] %v275
                  %v277 = vld [vmem:[%s255 + $0x50] sm:$0xf]
                  %278 = vst [vmem:[%s256 + $0x28] sm:$0xf] %v277
                  %v279 = vld [vmem:[%s255 + $0x58] sm:$0xf]
                  %280 = vst [vmem:[%s256 + $0x2c] sm:$0xf] %v279
                  %v281 = vld [vmem:[%s255 + $0x60] sm:$0xf]
                  %282 = vst [vmem:[%s256 + $0x30] sm:$0xf] %v281
                  %v283 = vld [vmem:[%s255 + $0x68] sm:$0xf]
                  %284 = vst [vmem:[%s256 + $0x34] sm:$0xf] %v283
                  %v285 = vld [vmem:[%s255 + $0x70] sm:$0xf]
                  %286 = vst [vmem:[%s256 + $0x38] sm:$0xf] %v285
                  %v287 = vld [vmem:[%s255 + $0x78] sm:$0xf]
                  %288 = vst [vmem:[%s256 + $0x3c] sm:$0xf] %v287
                $region59: #{_c2f_forward_impl.6} parent=46 // loop_footer
                  %s254 = sadd.s32 1, %s250
                $region60: #{_c2f_forward_impl.6} parent=46 // loop_footer_branch
                  %249 = sbr.rel target = $region56
                $region61: #{_c2f_forward_impl.6} parent=46 // loop_exit
                  _
              $region47: #{_c2f_forward_impl.6} parent=31 // pred_fallthru
                _
            $region32: #{_c2f_forward_impl.6} parent=27 // pred_fallthru
              _
            // Predicated region
            $region33: #{_c2f_forward_impl.6} parent=27 // pred_check
              _
            $region34: #{_c2f_forward_impl.6} parent=27 // pred_check_branch
              %196 = sbr.rel (0) target = $region36
            $region35: #{_c2f_forward_impl.6} parent=27 // pred_region
              loop: start=0, step=1, limit=1
              $region37: #{_c2f_forward_impl.6} parent=35 // loop_pre_header
                _
              $region38: #{_c2f_forward_impl.6} parent=35 // loop_header
                %s199 = sphi 0, %s203
                %p200 = scmp.ge.s32.totalorder %s199, 1
                %s204 = sphi %s190, %s190
                %s205 = sphi %s188, %s188
              $region39: #{_c2f_forward_impl.6} parent=35 // loop_header_branch
                %202 = sbr.rel (%p200) target = $region43
              $region40: #{_c2f_forward_impl.6} parent=35 // loop_body
                %v206 = vld [vmem:[%s204] sm:$0xf]
                %207 = vst [vmem:[%s205] sm:$0xf] %v206
                %v208 = vld [vmem:[%s204 + $0x8] sm:$0xf]
                %209 = vst [vmem:[%s205 + $0x4] sm:$0xf] %v208
                %v210 = vld [vmem:[%s204 + $0x10] sm:$0xf]
                %211 = vst [vmem:[%s205 + $0x8] sm:$0xf] %v210
                %v212 = vld [vmem:[%s204 + $0x18] sm:$0xf]
                %213 = vst [vmem:[%s205 + $0xc] sm:$0xf] %v212
                %v214 = vld [vmem:[%s204 + $0x20] sm:$0xf]
                %215 = vst [vmem:[%s205 + $0x10] sm:$0xf] %v214
                %v216 = vld [vmem:[%s204 + $0x28] sm:$0xf]
                %217 = vst [vmem:[%s205 + $0x14] sm:$0xf] %v216
                %v218 = vld [vmem:[%s204 + $0x30] sm:$0xf]
                %219 = vst [vmem:[%s205 + $0x18] sm:$0xf] %v218
                %v220 = vld [vmem:[%s204 + $0x38] sm:$0xf]
                %221 = vst [vmem:[%s205 + $0x1c] sm:$0xf] %v220
                %v222 = vld [vmem:[%s204 + $0x40] sm:$0xf]
                %223 = vst [vmem:[%s205 + $0x20] sm:$0xf] %v222
                %v224 = vld [vmem:[%s204 + $0x48] sm:$0xf]
                %225 = vst [vmem:[%s205 + $0x24] sm:$0xf] %v224
                %v226 = vld [vmem:[%s204 + $0x50] sm:$0xf]
                %227 = vst [vmem:[%s205 + $0x28] sm:$0xf] %v226
                %v228 = vld [vmem:[%s204 + $0x58] sm:$0xf]
                %229 = vst [vmem:[%s205 + $0x2c] sm:$0xf] %v228
                %v230 = vld [vmem:[%s204 + $0x60] sm:$0xf]
                %231 = vst [vmem:[%s205 + $0x30] sm:$0xf] %v230
                %v232 = vld [vmem:[%s204 + $0x68] sm:$0xf]
                %233 = vst [vmem:[%s205 + $0x34] sm:$0xf] %v232
                %v234 = vld [vmem:[%s204 + $0x70] sm:$0xf]
                %235 = vst [vmem:[%s205 + $0x38] sm:$0xf] %v234
                %v236 = vld [vmem:[%s204 + $0x78] sm:$0xf]
                %237 = vst [vmem:[%s205 + $0x3c] sm:$0xf] %v236
              $region41: #{_c2f_forward_impl.6} parent=35 // loop_footer
                %s203 = sadd.s32 1, %s199
              $region42: #{_c2f_forward_impl.6} parent=35 // loop_footer_branch
                %198 = sbr.rel target = $region38
              $region43: #{_c2f_forward_impl.6} parent=35 // loop_exit
                _
            $region36: #{_c2f_forward_impl.6} parent=27 // pred_fallthru
              _
          $region28: #{_c2f_forward_impl.6} parent=23 // pred_fallthru
            _
          %289 = vnop
        $region24: #{_c2f_forward_impl.6} parent=15 // pred_fallthru
          _
        // Predicated region
        $region62: #{_c2f_forward_impl.6} parent=15 // pred_check
          %p290 = pneg %p94
        $region63: #{_c2f_forward_impl.6} parent=15 // pred_check_branch
          %292 = sbr.rel (%p290) target = $region65
        $region64: #{_c2f_forward_impl.6} parent=15 // pred_region
          %p293 = scmp.lt.s32.totalorder %s18, 1
          %s294 = scalar_select %p293, %s18, 1
          %s295 = scalar_lea.vmem %s2, %s294
        $region65: #{_c2f_forward_impl.6} parent=15 // pred_fallthru
          _
        // Predicated region
        $region66: #{_c2f_forward_impl.6} parent=15 // pred_check
          %p296 = pneg %p120
        $region67: #{_c2f_forward_impl.6} parent=15 // pred_check_branch
          %298 = sbr.rel (%p296) target = $region69
        $region68: #{_c2f_forward_impl.6} parent=15 // pred_region
          %p299 = scmp.lt.s32.totalorder %s18, 1
          %s300 = scalar_select %p299, %s18, 1
          %s301 = scalar_lea.vmem %s3, %s300
        $region69: #{_c2f_forward_impl.6} parent=15 // pred_fallthru
          _
      $region16: #{_c2f_forward_impl.6} parent=5 // pred_fallthru
        _
      %p302 = scmp.le.s32.totalorder 1, %s10
      %p303 = scmp.lt.s32.totalorder %s10, 5
      %p304 = pnand %p302, %p303
      %p305 = pneg %p304
      // Predicated region
      $region70: #{_c2f_forward_impl.6} parent=5 // pred_check
        _
      $region71: #{_c2f_forward_impl.6} parent=5 // pred_check_branch
        %307 = sbr.rel (%p304) target = $region73
      $region72: #{_c2f_forward_impl.6} parent=5 // pred_region
        %s308 = ssub.s32 %s10, 1
        %s309 = sand.u32 %s61, 1
        %s310 = sand.u32 %s61, 1
        %s311 = smul.addr %s310, 64
        %s312 = scalar_lea.vmem [#allocation2], %s311
        // Predicated region
        $region74: #{_c2f_forward_impl.6} parent=72 // pred_check
          %p313 = pneg %p74
        $region75: #{_c2f_forward_impl.6} parent=72 // pred_check_branch
          %315 = sbr.rel (%p313) target = $region77
        $region76: #{_c2f_forward_impl.6} parent=72 // pred_region
          _
        $region77: #{_c2f_forward_impl.6} parent=72 // pred_fallthru
          _
        %s316 = smul.u32 32, %s19
        %p317 = scmp.lt.s32.totalorder %s316, 63
        %s318 = scalar_select %p317, %s316, 63
        %s319 = smul.addr %s318, 4
        %s320 = scalar_lea.vmem %s0, %s319
        %p321 = pneg %p48
        %p322 = pneg %p45
        %s323 = sand.u32 %s61, 1
        %s324 = sand.u32 %s61, 1
        %s325 = smul.addr %s324, 64
        %s326 = scalar_lea.vmem [#allocation2], %s325
        %p327 = pneg %p74
        %p328 = pneg %p71
        %p329 = scmp.lt.s32.totalorder %s20, 1
        %s330 = scalar_select %p329, %s20, 1
        %s331 = scalar_lea.vmem %s2, %s330
        %p332 = pneg %p100
        %p333 = pneg %p97
        %p334 = scmp.lt.s32.totalorder %s20, 1
        %s335 = scalar_select %p334, %s20, 1
        %s336 = scalar_lea.vmem %s3, %s335
        %p337 = pneg %p126
        %p338 = pneg %p123
        %p339 = pneg %p154
        %p340 = pneg %p151
        %s341 = sand.u32 %s141, 1
        %s342 = sand.u32 %s141, 1
        %s343 = smul.addr %s342, 128
        %s344 = scalar_lea.vmem [#allocation3], %s343
        %s345 = smul.u32 32, %s19
        %p346 = scmp.lt.s32.totalorder %s345, 63
        %s347 = scalar_select %p346, %s345, 63
        %s348 = smul.addr %s347, 4
        %s349 = scalar_lea.vmem %s0, %s348
        %s350 = smul.u32 32, %s19
        %p351 = scmp.lt.s32.totalorder %s20, 1
        %s352 = scalar_select %p351, %s20, 1
        %s353 = scalar_lea.vmem %s2, %s352
        %p354 = scmp.lt.s32.totalorder %s20, 1
        %s355 = scalar_select %p354, %s20, 1
        %s356 = scalar_lea.vmem %s3, %s355
        %s357 = smul.u32 32, %s19
        %v359 = vld [vmem:[%s349] sm:$0xf]
        %v360 = vld [vmem:[%s349 + $0x4] sm:$0xf]
        %v361 = vld [vmem:[%s349 + $0x8] sm:$0xf]
        %v362 = vld [vmem:[%s349 + $0xc] sm:$0xf]
        %v363 = vld [vmem:[%s349 + $0x10] sm:$0xf]
        %v364 = vld [vmem:[%s349 + $0x14] sm:$0xf]
        %v365 = vld [vmem:[%s349 + $0x18] sm:$0xf]
        %v366 = vld [vmem:[%s349 + $0x1c] sm:$0xf]
        %v367 = vld [vmem:[%s349 + $0x20] sm:$0xf]
        %v368 = vld [vmem:[%s349 + $0x24] sm:$0xf]
        %v369 = vld [vmem:[%s349 + $0x28] sm:$0xf]
        %v370 = vld [vmem:[%s349 + $0x2c] sm:$0xf]
        %v371 = vld [vmem:[%s349 + $0x30] sm:$0xf]
        %v372 = vld [vmem:[%s349 + $0x34] sm:$0xf]
        %v373 = vld [vmem:[%s349 + $0x38] sm:$0xf]
        %v374 = vld [vmem:[%s349 + $0x3c] sm:$0xf]
        %v375 = vld [vmem:[%s349 + $0x40] sm:$0xf]
        %v376 = vld [vmem:[%s349 + $0x44] sm:$0xf]
        %v377 = vld [vmem:[%s349 + $0x48] sm:$0xf]
        %v378 = vld [vmem:[%s349 + $0x4c] sm:$0xf]
        %v379 = vld [vmem:[%s349 + $0x50] sm:$0xf]
        %v380 = vld [vmem:[%s349 + $0x54] sm:$0xf]
        %v381 = vld [vmem:[%s349 + $0x58] sm:$0xf]
        %v382 = vld [vmem:[%s349 + $0x5c] sm:$0xf]
        %v383 = vld [vmem:[%s349 + $0x60] sm:$0xf]
        %v384 = vld [vmem:[%s349 + $0x64] sm:$0xf]
        %v385 = vld [vmem:[%s349 + $0x68] sm:$0xf]
        %v386 = vld [vmem:[%s349 + $0x6c] sm:$0xf]
        %v387 = vld [vmem:[%s349 + $0x70] sm:$0xf]
        %v388 = vld [vmem:[%s349 + $0x74] sm:$0xf]
        %v389 = vld [vmem:[%s349 + $0x78] sm:$0xf]
        %v390 = vld [vmem:[%s349 + $0x7c] sm:$0xf]
        %v391 = vld [vmem:[%s312] sm:$0xf]
        %v392 = vld [vmem:[%s312 + $0x4] sm:$0xf]
        %v393 = vld [vmem:[%s312 + $0x8] sm:$0xf]
        %v394 = vld [vmem:[%s312 + $0xc] sm:$0xf]
        %v395 = vld [vmem:[%s312 + $0x10] sm:$0xf]
        %v396 = vld [vmem:[%s312 + $0x14] sm:$0xf]
        %v397 = vld [vmem:[%s312 + $0x18] sm:$0xf]
        %v398 = vld [vmem:[%s312 + $0x1c] sm:$0xf]
        %v399 = vld [vmem:[%s312 + $0x20] sm:$0xf]
        %v400 = vld [vmem:[%s312 + $0x24] sm:$0xf]
        %v401 = vld [vmem:[%s312 + $0x28] sm:$0xf]
        %v402 = vld [vmem:[%s312 + $0x2c] sm:$0xf]
        %v403 = vld [vmem:[%s312 + $0x30] sm:$0xf]
        %v404 = vld [vmem:[%s312 + $0x34] sm:$0xf]
        %v405 = vld [vmem:[%s312 + $0x38] sm:$0xf]
        %v406 = vld [vmem:[%s312 + $0x3c] sm:$0xf]
        %v439 = vunpack.c.l.b16 %v359
        %v440 = vunpack.c.l.b16 %v360
        %v441 = vunpack.c.l.b16 %v361
        %v442 = vunpack.c.l.b16 %v362
        %v443 = vunpack.c.l.b16 %v363
        %v444 = vunpack.c.l.b16 %v364
        %v445 = vunpack.c.l.b16 %v365
        %v446 = vunpack.c.l.b16 %v366
        %v447 = vunpack.c.l.b16 %v367
        %v448 = vunpack.c.l.b16 %v368
        %v449 = vunpack.c.l.b16 %v369
        %v450 = vunpack.c.l.b16 %v370
        %v451 = vunpack.c.l.b16 %v371
        %v452 = vunpack.c.l.b16 %v372
        %v453 = vunpack.c.l.b16 %v373
        %v454 = vunpack.c.l.b16 %v374
        %v455 = vunpack.c.l.b16 %v375
        %v456 = vunpack.c.l.b16 %v376
        %v457 = vunpack.c.l.b16 %v377
        %v458 = vunpack.c.l.b16 %v378
        %v459 = vunpack.c.l.b16 %v379
        %v460 = vunpack.c.l.b16 %v380
        %v461 = vunpack.c.l.b16 %v381
        %v462 = vunpack.c.l.b16 %v382
        %v463 = vunpack.c.l.b16 %v383
        %v464 = vunpack.c.l.b16 %v384
        %v465 = vunpack.c.l.b16 %v385
        %v466 = vunpack.c.l.b16 %v386
        %v467 = vunpack.c.l.b16 %v387
        %v468 = vunpack.c.l.b16 %v388
        %v469 = vunpack.c.l.b16 %v389
        %v470 = vunpack.c.l.b16 %v390
        %v471 = vpack.c.b16 %v440, %v439
        %v472 = vpack.c.b16 %v442, %v441
        %v473 = vpack.c.b16 %v444, %v443
        %v474 = vpack.c.b16 %v446, %v445
        %v475 = vpack.c.b16 %v448, %v447
        %v476 = vpack.c.b16 %v450, %v449
        %v477 = vpack.c.b16 %v452, %v451
        %v478 = vpack.c.b16 %v454, %v453
        %v479 = vpack.c.b16 %v456, %v455
        %v480 = vpack.c.b16 %v458, %v457
        %v481 = vpack.c.b16 %v460, %v459
        %v482 = vpack.c.b16 %v462, %v461
        %v483 = vpack.c.b16 %v464, %v463
        %v484 = vpack.c.b16 %v466, %v465
        %v485 = vpack.c.b16 %v468, %v467
        %v486 = vpack.c.b16 %v470, %v469
        %v519 = vunpack.c.l.b16 %v391
        %v520 = vunpack.c.l.b16 %v392
        %v521 = vunpack.c.l.b16 %v393
        %v522 = vunpack.c.l.b16 %v394
        %v523 = vunpack.c.l.b16 %v395
        %v524 = vunpack.c.l.b16 %v396
        %v525 = vunpack.c.l.b16 %v397
        %v526 = vunpack.c.l.b16 %v398
        %v527 = vunpack.c.l.b16 %v399
        %v528 = vunpack.c.l.b16 %v400
        %v529 = vunpack.c.l.b16 %v401
        %v530 = vunpack.c.l.b16 %v402
        %v531 = vunpack.c.l.b16 %v403
        %v532 = vunpack.c.l.b16 %v404
        %v533 = vunpack.c.l.b16 %v405
        %v534 = vunpack.c.l.b16 %v406
        %v535 = vpack.c.b16 %v520, %v519
        %v536 = vpack.c.b16 %v522, %v521
        %v537 = vpack.c.b16 %v524, %v523
        %v538 = vpack.c.b16 %v526, %v525
        %v539 = vpack.c.b16 %v528, %v527
        %v540 = vpack.c.b16 %v530, %v529
        %v541 = vpack.c.b16 %v532, %v531
        %v542 = vpack.c.b16 %v534, %v533
        %551 = vmatprep.subr.bf16.mxu0 0
        %552 = vmatpush1.bf16.msra.mxu0 %v535
        %553 = vmatprep.subr.bf16.mxu0 0
        %554 = vmatpush1.bf16.msra.mxu0 %v536
        %555 = vmatprep.subr.bf16.mxu0 0
        %556 = vmatpush1.bf16.msra.mxu0 %v537
        %557 = vmatprep.subr.bf16.mxu0 0
        %558 = vmatpush1.bf16.msra.mxu0 %v538
        %559 = vmatprep.subr.bf16.mxu0 0
        %560 = vmatpush1.bf16.msra.mxu0 %v539
        %561 = vmatprep.subr.bf16.mxu0 0
        %562 = vmatpush1.bf16.msra.mxu0 %v540
        %563 = vmatprep.subr.bf16.mxu0 0
        %564 = vmatpush1.bf16.msra.mxu0 %v541
        %565 = vmatprep.subr.bf16.mxu0 0
        %566 = vmatpush1.bf16.msra.mxu0 %v542
        %567 = vmatprep.subr.bf16.mxu0 0
        %568 = vmatpush1.bf16.msra.mxu0 0
        %569 = vmatprep.subr.bf16.mxu0 0
        %570 = vmatpush1.bf16.msra.mxu0 0
        %571 = vmatprep.subr.bf16.mxu0 0
        %572 = vmatpush1.bf16.msra.mxu0 0
        %573 = vmatprep.subr.bf16.mxu0 0
        %574 = vmatpush1.bf16.msra.mxu0 0
        %575 = vmatprep.subr.bf16.mxu0 0
        %576 = vmatpush1.bf16.msra.mxu0 0
        %577 = vmatprep.subr.bf16.mxu0 0
        %578 = vmatpush1.bf16.msra.mxu0 0
        %579 = vmatprep.subr.bf16.mxu0 0
        %580 = vmatpush1.bf16.msra.mxu0 0
        %581 = vmatprep.subr.bf16.mxu0 0
        %582 = vmatpush1.bf16.msra.mxu0 0
        %583 = vmatprep.mubr.bf16.mxu0 0
        %584 = vmatmul.mubr.bf16.gmra.mrb[0].mxu0 %v471
        %v585 = vpop.f32.mrb[0].mxu0
        %v586 = vadd.f32 0.0, %v585
        %v587 = vpop.f32.mrb[0].mxu0
        %v588 = vpop.f32.mrb[0].mxu0
        %v589 = vadd.f32 0.0, %v588
        %v590 = vpop.f32.mrb[0].mxu0
        %591 = vmatprep.mubr.bf16.mxu0 0
        %592 = vmatmul.mubr.bf16.gmra.mrb[0].mxu0 %v472
        %v593 = vpop.f32.mrb[0].mxu0
        %v594 = vadd.f32 0.0, %v593
        %v595 = vpop.f32.mrb[0].mxu0
        %v596 = vpop.f32.mrb[0].mxu0
        %v597 = vadd.f32 0.0, %v596
        %v598 = vpop.f32.mrb[0].mxu0
        %599 = vmatprep.mubr.bf16.mxu0 0
        %600 = vmatmul.mubr.bf16.gmra.mrb[0].mxu0 %v473
        %v601 = vpop.f32.mrb[0].mxu0
        %v602 = vadd.f32 0.0, %v601
        %v603 = vpop.f32.mrb[0].mxu0
        %v604 = vpop.f32.mrb[0].mxu0
        %v605 = vadd.f32 0.0, %v604
        %v606 = vpop.f32.mrb[0].mxu0
        %607 = vmatprep.mubr.bf16.mxu0 0
        %608 = vmatmul.mubr.bf16.gmra.mrb[0].mxu0 %v474
        %v609 = vpop.f32.mrb[0].mxu0
        %v610 = vadd.f32 0.0, %v609
        %v611 = vpop.f32.mrb[0].mxu0
        %v612 = vpop.f32.mrb[0].mxu0
        %v613 = vadd.f32 0.0, %v612
        %v614 = vpop.f32.mrb[0].mxu0
        %615 = vmatprep.mubr.bf16.mxu0 0
        %616 = vmatmul.mubr.bf16.gmra.mrb[0].mxu0 %v475
        %v617 = vpop.f32.mrb[0].mxu0
        %v618 = vadd.f32 0.0, %v617
        %v619 = vpop.f32.mrb[0].mxu0
        %v620 = vpop.f32.mrb[0].mxu0
        %v621 = vadd.f32 0.0, %v620
        %v622 = vpop.f32.mrb[0].mxu0
        %623 = vmatprep.mubr.bf16.mxu0 0
        %624 = vmatmul.mubr.bf16.gmra.mrb[0].mxu0 %v476
        %v625 = vpop.f32.mrb[0].mxu0
        %v626 = vadd.f32 0.0, %v625
        %v627 = vpop.f32.mrb[0].mxu0
        %v628 = vpop.f32.mrb[0].mxu0
        %v629 = vadd.f32 0.0, %v628
        %v630 = vpop.f32.mrb[0].mxu0
        %631 = vmatprep.mubr.bf16.mxu0 0
        %632 = vmatmul.mubr.bf16.gmra.mrb[0].mxu0 %v477
        %v633 = vpop.f32.mrb[0].mxu0
        %v634 = vadd.f32 0.0, %v633
        %v635 = vpop.f32.mrb[0].mxu0
        %v636 = vpop.f32.mrb[0].mxu0
        %v637 = vadd.f32 0.0, %v636
        %v638 = vpop.f32.mrb[0].mxu0
        %639 = vmatprep.mubr.bf16.mxu0 0
        %640 = vmatmul.mubr.bf16.gmra.mrb[0].mxu0 %v478
        %v641 = vpop.f32.mrb[0].mxu0
        %v642 = vadd.f32 0.0, %v641
        %v643 = vpop.f32.mrb[0].mxu0
        %v644 = vpop.f32.mrb[0].mxu0
        %v645 = vadd.f32 0.0, %v644
        %v646 = vpop.f32.mrb[0].mxu0
        %647 = vmatprep.mubr.bf16.mxu0 0
        %648 = vmatmul.mubr.bf16.gmra.mrb[0].mxu0 %v479
        %v649 = vpop.f32.mrb[0].mxu0
        %v650 = vadd.f32 0.0, %v649
        %v651 = vpop.f32.mrb[0].mxu0
        %v652 = vpop.f32.mrb[0].mxu0
        %v653 = vadd.f32 0.0, %v652
        %v654 = vpop.f32.mrb[0].mxu0
        %655 = vmatprep.mubr.bf16.mxu0 0
        %656 = vmatmul.mubr.bf16.gmra.mrb[0].mxu0 %v480
        %v657 = vpop.f32.mrb[0].mxu0
        %v658 = vadd.f32 0.0, %v657
        %v659 = vpop.f32.mrb[0].mxu0
        %v660 = vpop.f32.mrb[0].mxu0
        %v661 = vadd.f32 0.0, %v660
        %v662 = vpop.f32.mrb[0].mxu0
        %663 = vmatprep.mubr.bf16.mxu0 0
        %664 = vmatmul.mubr.bf16.gmra.mrb[0].mxu0 %v481
        %v665 = vpop.f32.mrb[0].mxu0
        %v666 = vadd.f32 0.0, %v665
        %v667 = vpop.f32.mrb[0].mxu0
        %v668 = vpop.f32.mrb[0].mxu0
        %v669 = vadd.f32 0.0, %v668
        %v670 = vpop.f32.mrb[0].mxu0
        %671 = vmatprep.mubr.bf16.mxu0 0
        %672 = vmatmul.mubr.bf16.gmra.mrb[0].mxu0 %v482
        %v673 = vpop.f32.mrb[0].mxu0
        %v674 = vadd.f32 0.0, %v673
        %v675 = vpop.f32.mrb[0].mxu0
        %v676 = vpop.f32.mrb[0].mxu0
        %v677 = vadd.f32 0.0, %v676
        %v678 = vpop.f32.mrb[0].mxu0
        %679 = vmatprep.mubr.bf16.mxu0 0
        %680 = vmatmul.mubr.bf16.gmra.mrb[0].mxu0 %v483
        %v681 = vpop.f32.mrb[0].mxu0
        %v682 = vadd.f32 0.0, %v681
        %v683 = vpop.f32.mrb[0].mxu0
        %v684 = vpop.f32.mrb[0].mxu0
        %v685 = vadd.f32 0.0, %v684
        %v686 = vpop.f32.mrb[0].mxu0
        %687 = vmatprep.mubr.bf16.mxu0 0
        %688 = vmatmul.mubr.bf16.gmra.mrb[0].mxu0 %v484
        %v689 = vpop.f32.mrb[0].mxu0
        %v690 = vadd.f32 0.0, %v689
        %v691 = vpop.f32.mrb[0].mxu0
        %v692 = vpop.f32.mrb[0].mxu0
        %v693 = vadd.f32 0.0, %v692
        %v694 = vpop.f32.mrb[0].mxu0
        %695 = vmatprep.mubr.bf16.mxu0 0
        %696 = vmatmul.mubr.bf16.gmra.mrb[0].mxu0 %v485
        %v697 = vpop.f32.mrb[0].mxu0
        %v698 = vadd.f32 0.0, %v697
        %v699 = vpop.f32.mrb[0].mxu0
        %v700 = vpop.f32.mrb[0].mxu0
        %v701 = vadd.f32 0.0, %v700
        %v702 = vpop.f32.mrb[0].mxu0
        %703 = vmatprep.mubr.bf16.mxu0 0
        %704 = vmatmul.mubr.bf16.gmra.mrb[0].mxu0 %v486
        %v705 = vpop.f32.mrb[0].mxu0
        %v706 = vadd.f32 0.0, %v705
        %v707 = vpop.f32.mrb[0].mxu0
        %v708 = vpop.f32.mrb[0].mxu0
        %v709 = vadd.f32 0.0, %v708
        %v710 = vpop.f32.mrb[0].mxu0
        %711 = vdwg.mxu0
        %v712 = vld [vmem:[%s353] sm:$0x1]
        %v714 = vlaneseq
        %v715 = vshrl.u32 %v714, 7
        %v716 = vsub.s32 0, %v715
        %v717 = vrot.slane %v712, %v716
        %v719 = vmul.f32 %v586, %v717
        %v720 = vmul.f32 %v589, %v717
        %v721 = vmul.f32 %v594, %v717
        %v722 = vmul.f32 %v597, %v717
        %v723 = vmul.f32 %v602, %v717
        %v724 = vmul.f32 %v605, %v717
        %v725 = vmul.f32 %v610, %v717
        %v726 = vmul.f32 %v613, %v717
        %v727 = vmul.f32 %v618, %v717
        %v728 = vmul.f32 %v621, %v717
        %v729 = vmul.f32 %v626, %v717
        %v730 = vmul.f32 %v629, %v717
        %v731 = vmul.f32 %v634, %v717
        %v732 = vmul.f32 %v637, %v717
        %v733 = vmul.f32 %v642, %v717
        %v734 = vmul.f32 %v645, %v717
        %v735 = vmul.f32 %v650, %v717
        %v736 = vmul.f32 %v653, %v717
        %v737 = vmul.f32 %v658, %v717
        %v738 = vmul.f32 %v661, %v717
        %v739 = vmul.f32 %v666, %v717
        %v740 = vmul.f32 %v669, %v717
        %v741 = vmul.f32 %v674, %v717
        %v742 = vmul.f32 %v677, %v717
        %v743 = vmul.f32 %v682, %v717
        %v744 = vmul.f32 %v685, %v717
        %v745 = vmul.f32 %v690, %v717
        %v746 = vmul.f32 %v693, %v717
        %v747 = vmul.f32 %v698, %v717
        %v748 = vmul.f32 %v701, %v717
        %v749 = vmul.f32 %v706, %v717
        %v750 = vmul.f32 %v709, %v717
        %v751 = vld [vmem:[%s356] sm:$0x1]
        %v753 = vlaneseq
        %v754 = vshrl.u32 %v753, 7
        %v755 = vsub.s32 0, %v754
        %v756 = vrot.slane %v751, %v755
        %v758 = vadd.f32 %v719, %v756
        %v759 = vadd.f32 %v720, %v756
        %v760 = vadd.f32 %v721, %v756
        %v761 = vadd.f32 %v722, %v756
        %v762 = vadd.f32 %v723, %v756
        %v763 = vadd.f32 %v724, %v756
        %v764 = vadd.f32 %v725, %v756
        %v765 = vadd.f32 %v726, %v756
        %v766 = vadd.f32 %v727, %v756
        %v767 = vadd.f32 %v728, %v756
        %v768 = vadd.f32 %v729, %v756
        %v769 = vadd.f32 %v730, %v756
        %v770 = vadd.f32 %v731, %v756
        %v771 = vadd.f32 %v732, %v756
        %v772 = vadd.f32 %v733, %v756
        %v773 = vadd.f32 %v734, %v756
        %v774 = vadd.f32 %v735, %v756
        %v775 = vadd.f32 %v736, %v756
        %v776 = vadd.f32 %v737, %v756
        %v777 = vadd.f32 %v738, %v756
        %v778 = vadd.f32 %v739, %v756
        %v779 = vadd.f32 %v740, %v756
        %v780 = vadd.f32 %v741, %v756
        %v781 = vadd.f32 %v742, %v756
        %v782 = vadd.f32 %v743, %v756
        %v783 = vadd.f32 %v744, %v756
        %v784 = vadd.f32 %v745, %v756
        %v785 = vadd.f32 %v746, %v756
        %v786 = vadd.f32 %v747, %v756
        %v787 = vadd.f32 %v748, %v756
        %v788 = vadd.f32 %v749, %v756
        %v789 = vadd.f32 %v750, %v756
        %v790 = vsub.f32 0.0, %v758
        %v791 = vsub.f32 0.0, %v759
        %v792 = vsub.f32 0.0, %v760
        %v793 = vsub.f32 0.0, %v761
        %v794 = vsub.f32 0.0, %v762
        %v795 = vsub.f32 0.0, %v763
        %v796 = vsub.f32 0.0, %v764
        %v797 = vsub.f32 0.0, %v765
        %v798 = vsub.f32 0.0, %v766
        %v799 = vsub.f32 0.0, %v767
        %v800 = vsub.f32 0.0, %v768
        %v801 = vsub.f32 0.0, %v769
        %v802 = vsub.f32 0.0, %v770
        %v803 = vsub.f32 0.0, %v771
        %v804 = vsub.f32 0.0, %v772
        %v805 = vsub.f32 0.0, %v773
        %v806 = vsub.f32 0.0, %v774
        %v807 = vsub.f32 0.0, %v775
        %v808 = vsub.f32 0.0, %v776
        %v809 = vsub.f32 0.0, %v777
        %v810 = vsub.f32 0.0, %v778
        %v811 = vsub.f32 0.0, %v779
        %v812 = vsub.f32 0.0, %v780
        %v813 = vsub.f32 0.0, %v781
        %v814 = vsub.f32 0.0, %v782
        %v815 = vsub.f32 0.0, %v783
        %v816 = vsub.f32 0.0, %v784
        %v817 = vsub.f32 0.0, %v785
        %v818 = vsub.f32 0.0, %v786
        %v819 = vsub.f32 0.0, %v787
        %v820 = vsub.f32 0.0, %v788
        %v821 = vsub.f32 0.0, %v789
        %v822 = vmul.f32 %v790, 1.442695
        %v823 = vpow.pop %v822
        %v824 = vmul.f32 %v791, 1.442695
        %v825 = vpow.pop %v824
        %v826 = vmul.f32 %v792, 1.442695
        %v827 = vpow.pop %v826
        %v828 = vmul.f32 %v793, 1.442695
        %v829 = vpow.pop %v828
        %v830 = vmul.f32 %v794, 1.442695
        %v831 = vpow.pop %v830
        %v832 = vmul.f32 %v795, 1.442695
        %v833 = vpow.pop %v832
        %v834 = vmul.f32 %v796, 1.442695
        %v835 = vpow.pop %v834
        %v836 = vmul.f32 %v797, 1.442695
        %v837 = vpow.pop %v836
        %v838 = vmul.f32 %v798, 1.442695
        %v839 = vpow.pop %v838
        %v840 = vmul.f32 %v799, 1.442695
        %v841 = vpow.pop %v840
        %v842 = vmul.f32 %v800, 1.442695
        %v843 = vpow.pop %v842
        %v844 = vmul.f32 %v801, 1.442695
        %v845 = vpow.pop %v844
        %v846 = vmul.f32 %v802, 1.442695
        %v847 = vpow.pop %v846
        %v848 = vmul.f32 %v803, 1.442695
        %v849 = vpow.pop %v848
        %v850 = vmul.f32 %v804, 1.442695
        %v851 = vpow.pop %v850
        %v852 = vmul.f32 %v805, 1.442695
        %v853 = vpow.pop %v852
        %v854 = vmul.f32 %v806, 1.442695
        %v855 = vpow.pop %v854
        %v856 = vmul.f32 %v807, 1.442695
        %v857 = vpow.pop %v856
        %v858 = vmul.f32 %v808, 1.442695
        %v859 = vpow.pop %v858
        %v860 = vmul.f32 %v809, 1.442695
        %v861 = vpow.pop %v860
        %v862 = vmul.f32 %v810, 1.442695
        %v863 = vpow.pop %v862
        %v864 = vmul.f32 %v811, 1.442695
        %v865 = vpow.pop %v864
        %v866 = vmul.f32 %v812, 1.442695
        %v867 = vpow.pop %v866
        %v868 = vmul.f32 %v813, 1.442695
        %v869 = vpow.pop %v868
        %v870 = vmul.f32 %v814, 1.442695
        %v871 = vpow.pop %v870
        %v872 = vmul.f32 %v815, 1.442695
        %v873 = vpow.pop %v872
        %v874 = vmul.f32 %v816, 1.442695
        %v875 = vpow.pop %v874
        %v876 = vmul.f32 %v817, 1.442695
        %v877 = vpow.pop %v876
        %v878 = vmul.f32 %v818, 1.442695
        %v879 = vpow.pop %v878
        %v880 = vmul.f32 %v819, 1.442695
        %v881 = vpow.pop %v880
        %v882 = vmul.f32 %v820, 1.442695
        %v883 = vpow.pop %v882
        %v884 = vmul.f32 %v821, 1.442695
        %v885 = vpow.pop %v884
        %v886 = vadd.f32 %v823, 1.0
        %v887 = vadd.f32 %v825, 1.0
        %v888 = vadd.f32 %v827, 1.0
        %v889 = vadd.f32 %v829, 1.0
        %v890 = vadd.f32 %v831, 1.0
        %v891 = vadd.f32 %v833, 1.0
        %v892 = vadd.f32 %v835, 1.0
        %v893 = vadd.f32 %v837, 1.0
        %v894 = vadd.f32 %v839, 1.0
        %v895 = vadd.f32 %v841, 1.0
        %v896 = vadd.f32 %v843, 1.0
        %v897 = vadd.f32 %v845, 1.0
        %v898 = vadd.f32 %v847, 1.0
        %v899 = vadd.f32 %v849, 1.0
        %v900 = vadd.f32 %v851, 1.0
        %v901 = vadd.f32 %v853, 1.0
        %v902 = vadd.f32 %v855, 1.0
        %v903 = vadd.f32 %v857, 1.0
        %v904 = vadd.f32 %v859, 1.0
        %v905 = vadd.f32 %v861, 1.0
        %v906 = vadd.f32 %v863, 1.0
        %v907 = vadd.f32 %v865, 1.0
        %v908 = vadd.f32 %v867, 1.0
        %v909 = vadd.f32 %v869, 1.0
        %v910 = vadd.f32 %v871, 1.0
        %v911 = vadd.f32 %v873, 1.0
        %v912 = vadd.f32 %v875, 1.0
        %v913 = vadd.f32 %v877, 1.0
        %v914 = vadd.f32 %v879, 1.0
        %v915 = vadd.f32 %v881, 1.0
        %v916 = vadd.f32 %v883, 1.0
        %v917 = vadd.f32 %v885, 1.0
        %v918 = vrcp.pop %v886
        %v919 = vrcp.pop %v887
        %v920 = vrcp.pop %v888
        %v921 = vrcp.pop %v889
        %v922 = vrcp.pop %v890
        %v923 = vrcp.pop %v891
        %v924 = vrcp.pop %v892
        %v925 = vrcp.pop %v893
        %v926 = vrcp.pop %v894
        %v927 = vrcp.pop %v895
        %v928 = vrcp.pop %v896
        %v929 = vrcp.pop %v897
        %v930 = vrcp.pop %v898
        %v931 = vrcp.pop %v899
        %v932 = vrcp.pop %v900
        %v933 = vrcp.pop %v901
        %v934 = vrcp.pop %v902
        %v935 = vrcp.pop %v903
        %v936 = vrcp.pop %v904
        %v937 = vrcp.pop %v905
        %v938 = vrcp.pop %v906
        %v939 = vrcp.pop %v907
        %v940 = vrcp.pop %v908
        %v941 = vrcp.pop %v909
        %v942 = vrcp.pop %v910
        %v943 = vrcp.pop %v911
        %v944 = vrcp.pop %v912
        %v945 = vrcp.pop %v913
        %v946 = vrcp.pop %v914
        %v947 = vrcp.pop %v915
        %v948 = vrcp.pop %v916
        %v949 = vrcp.pop %v917
        %v950 = vmul.f32 %v758, %v918
        %v951 = vmul.f32 %v759, %v919
        %v952 = vmul.f32 %v760, %v920
        %v953 = vmul.f32 %v761, %v921
        %v954 = vmul.f32 %v762, %v922
        %v955 = vmul.f32 %v763, %v923
        %v956 = vmul.f32 %v764, %v924
        %v957 = vmul.f32 %v765, %v925
        %v958 = vmul.f32 %v766, %v926
        %v959 = vmul.f32 %v767, %v927
        %v960 = vmul.f32 %v768, %v928
        %v961 = vmul.f32 %v769, %v929
        %v962 = vmul.f32 %v770, %v930
        %v963 = vmul.f32 %v771, %v931
        %v964 = vmul.f32 %v772, %v932
        %v965 = vmul.f32 %v773, %v933
        %v966 = vmul.f32 %v774, %v934
        %v967 = vmul.f32 %v775, %v935
        %v968 = vmul.f32 %v776, %v936
        %v969 = vmul.f32 %v777, %v937
        %v970 = vmul.f32 %v778, %v938
        %v971 = vmul.f32 %v779, %v939
        %v972 = vmul.f32 %v780, %v940
        %v973 = vmul.f32 %v781, %v941
        %v974 = vmul.f32 %v782, %v942
        %v975 = vmul.f32 %v783, %v943
        %v976 = vmul.f32 %v784, %v944
        %v977 = vmul.f32 %v785, %v945
        %v978 = vmul.f32 %v786, %v946
        %v979 = vmul.f32 %v787, %v947
        %v980 = vmul.f32 %v788, %v948
        %v981 = vmul.f32 %v789, %v949
        %v982 = vpack.c.bf16 %v951, %v950
        %v983 = vpack.c.bf16 %v953, %v952
        %v984 = vpack.c.bf16 %v955, %v954
        %v985 = vpack.c.bf16 %v957, %v956
        %v986 = vpack.c.bf16 %v959, %v958
        %v987 = vpack.c.bf16 %v961, %v960
        %v988 = vpack.c.bf16 %v963, %v962
        %v989 = vpack.c.bf16 %v965, %v964
        %v990 = vpack.c.bf16 %v967, %v966
        %v991 = vpack.c.bf16 %v969, %v968
        %v992 = vpack.c.bf16 %v971, %v970
        %v993 = vpack.c.bf16 %v973, %v972
        %v994 = vpack.c.bf16 %v975, %v974
        %v995 = vpack.c.bf16 %v977, %v976
        %v996 = vpack.c.bf16 %v979, %v978
        %v997 = vpack.c.bf16 %v981, %v980
        %v1014 = vunpack.c.l.b16 %v982
        %v1015 = vunpack.c.h.b16 %v982
        %v1016 = vunpack.c.l.b16 %v983
        %v1017 = vunpack.c.h.b16 %v983
        %v1018 = vunpack.c.l.b16 %v984
        %v1019 = vunpack.c.h.b16 %v984
        %v1020 = vunpack.c.l.b16 %v985
        %v1021 = vunpack.c.h.b16 %v985
        %v1022 = vunpack.c.l.b16 %v986
        %v1023 = vunpack.c.h.b16 %v986
        %v1024 = vunpack.c.l.b16 %v987
        %v1025 = vunpack.c.h.b16 %v987
        %v1026 = vunpack.c.l.b16 %v988
        %v1027 = vunpack.c.h.b16 %v988
        %v1028 = vunpack.c.l.b16 %v989
        %v1029 = vunpack.c.h.b16 %v989
        %v1030 = vunpack.c.l.b16 %v990
        %v1031 = vunpack.c.h.b16 %v990
        %v1032 = vunpack.c.l.b16 %v991
        %v1033 = vunpack.c.h.b16 %v991
        %v1034 = vunpack.c.l.b16 %v992
        %v1035 = vunpack.c.h.b16 %v992
        %v1036 = vunpack.c.l.b16 %v993
        %v1037 = vunpack.c.h.b16 %v993
        %v1038 = vunpack.c.l.b16 %v994
        %v1039 = vunpack.c.h.b16 %v994
        %v1040 = vunpack.c.l.b16 %v995
        %v1041 = vunpack.c.h.b16 %v995
        %v1042 = vunpack.c.l.b16 %v996
        %v1043 = vunpack.c.h.b16 %v996
        %v1044 = vunpack.c.l.b16 %v997
        %v1045 = vunpack.c.h.b16 %v997
        %v1046 = vpack.c.b16 %v1014, %v1014
        %v1047 = vpack.c.b16 %v1015, %v1015
        %v1048 = vpack.c.b16 %v1016, %v1016
        %v1049 = vpack.c.b16 %v1017, %v1017
        %v1050 = vpack.c.b16 %v1018, %v1018
        %v1051 = vpack.c.b16 %v1019, %v1019
        %v1052 = vpack.c.b16 %v1020, %v1020
        %v1053 = vpack.c.b16 %v1021, %v1021
        %v1054 = vpack.c.b16 %v1022, %v1022
        %v1055 = vpack.c.b16 %v1023, %v1023
        %v1056 = vpack.c.b16 %v1024, %v1024
        %v1057 = vpack.c.b16 %v1025, %v1025
        %v1058 = vpack.c.b16 %v1026, %v1026
        %v1059 = vpack.c.b16 %v1027, %v1027
        %v1060 = vpack.c.b16 %v1028, %v1028
        %v1061 = vpack.c.b16 %v1029, %v1029
        %v1062 = vpack.c.b16 %v1030, %v1030
        %v1063 = vpack.c.b16 %v1031, %v1031
        %v1064 = vpack.c.b16 %v1032, %v1032
        %v1065 = vpack.c.b16 %v1033, %v1033
        %v1066 = vpack.c.b16 %v1034, %v1034
        %v1067 = vpack.c.b16 %v1035, %v1035
        %v1068 = vpack.c.b16 %v1036, %v1036
        %v1069 = vpack.c.b16 %v1037, %v1037
        %v1070 = vpack.c.b16 %v1038, %v1038
        %v1071 = vpack.c.b16 %v1039, %v1039
        %v1072 = vpack.c.b16 %v1040, %v1040
        %v1073 = vpack.c.b16 %v1041, %v1041
        %v1074 = vpack.c.b16 %v1042, %v1042
        %v1075 = vpack.c.b16 %v1043, %v1043
        %v1076 = vpack.c.b16 %v1044, %v1044
        %v1077 = vpack.c.b16 %v1045, %v1045
        %1110 = vst [vmem:[%s344] sm:$0xf] %v1046
        %1111 = vst [vmem:[%s344 + $0x4] sm:$0xf] %v1047
        %1112 = vst [vmem:[%s344 + $0x8] sm:$0xf] %v1048
        %1113 = vst [vmem:[%s344 + $0xc] sm:$0xf] %v1049
        %1114 = vst [vmem:[%s344 + $0x10] sm:$0xf] %v1050
        %1115 = vst [vmem:[%s344 + $0x14] sm:$0xf] %v1051
        %1116 = vst [vmem:[%s344 + $0x18] sm:$0xf] %v1052
        %1117 = vst [vmem:[%s344 + $0x1c] sm:$0xf] %v1053
        %1118 = vst [vmem:[%s344 + $0x20] sm:$0xf] %v1054
        %1119 = vst [vmem:[%s344 + $0x24] sm:$0xf] %v1055
        %1120 = vst [vmem:[%s344 + $0x28] sm:$0xf] %v1056
        %1121 = vst [vmem:[%s344 + $0x2c] sm:$0xf] %v1057
        %1122 = vst [vmem:[%s344 + $0x30] sm:$0xf] %v1058
        %1123 = vst [vmem:[%s344 + $0x34] sm:$0xf] %v1059
        %1124 = vst [vmem:[%s344 + $0x38] sm:$0xf] %v1060
        %1125 = vst [vmem:[%s344 + $0x3c] sm:$0xf] %v1061
        %1126 = vst [vmem:[%s344 + $0x40] sm:$0xf] %v1062
        %1127 = vst [vmem:[%s344 + $0x44] sm:$0xf] %v1063
        %1128 = vst [vmem:[%s344 + $0x48] sm:$0xf] %v1064
        %1129 = vst [vmem:[%s344 + $0x4c] sm:$0xf] %v1065
        %1130 = vst [vmem:[%s344 + $0x50] sm:$0xf] %v1066
        %1131 = vst [vmem:[%s344 + $0x54] sm:$0xf] %v1067
        %1132 = vst [vmem:[%s344 + $0x58] sm:$0xf] %v1068
        %1133 = vst [vmem:[%s344 + $0x5c] sm:$0xf] %v1069
        %1134 = vst [vmem:[%s344 + $0x60] sm:$0xf] %v1070
        %1135 = vst [vmem:[%s344 + $0x64] sm:$0xf] %v1071
        %1136 = vst [vmem:[%s344 + $0x68] sm:$0xf] %v1072
        %1137 = vst [vmem:[%s344 + $0x6c] sm:$0xf] %v1073
        %1138 = vst [vmem:[%s344 + $0x70] sm:$0xf] %v1074
        %1139 = vst [vmem:[%s344 + $0x74] sm:$0xf] %v1075
        %1140 = vst [vmem:[%s344 + $0x78] sm:$0xf] %v1076
        %1141 = vst [vmem:[%s344 + $0x7c] sm:$0xf] %v1077
        %s1142 = sand.u32 %s141, 1
        %s1143 = sand.u32 %s141, 1
        %s1144 = smul.addr %s1143, 128
        %s1145 = scalar_lea.vmem [#allocation3], %s1144
        // Predicated region
        $region78: #{_c2f_forward_impl.6} parent=72 // pred_check
          %p1146 = pneg %p151
        $region79: #{_c2f_forward_impl.6} parent=72 // pred_check_branch
          %1148 = sbr.rel (%p1146) target = $region81
        $region80: #{_c2f_forward_impl.6} parent=72 // pred_region
          %s1149 = smul.u32 32, %s19
          %s1150 = smul.addr %s1149, 2
          %s1151 = sadd.s32 %s20, %s1150
          %s1152 = smul.addr %s1151, 4
          %s1153 = scalar_lea.vmem %s4, %s1152
          // Predicated region
          $region82: #{_c2f_forward_impl.6} parent=80 // pred_check
            _
          $region83: #{_c2f_forward_impl.6} parent=80 // pred_check_branch
            %1155 = sbr.rel (0) target = $region85
          $region84: #{_c2f_forward_impl.6} parent=80 // pred_region
            // Predicated region
            $region86: #{_c2f_forward_impl.6} parent=84 // pred_check
              _
            $region87: #{_c2f_forward_impl.6} parent=84 // pred_check_branch
              %1157 = sbr.rel target = $region89
            $region88: #{_c2f_forward_impl.6} parent=84 // pred_region
              // Predicated region
              $region101: #{_c2f_forward_impl.6} parent=88 // pred_check
                _
              $region102: #{_c2f_forward_impl.6} parent=88 // pred_check_branch
                %1234 = sbr.rel (0) target = $region104
              $region103: #{_c2f_forward_impl.6} parent=88 // pred_region
                loop: start=0, step=1, limit=1
                $region105: #{_c2f_forward_impl.6} parent=103 // loop_pre_header
                  _
                $region106: #{_c2f_forward_impl.6} parent=103 // loop_header
                  %s1236 = sphi 0, %s1240
                  %p1237 = scmp.ge.s32.totalorder %s1236, 1
                  %s1241 = sphi %s1145, %s1145
                  %s1242 = sphi %s1153, %s1153
                $region107: #{_c2f_forward_impl.6} parent=103 // loop_header_branch
                  %1239 = sbr.rel (%p1237) target = $region111
                $region108: #{_c2f_forward_impl.6} parent=103 // loop_body
                  _
                $region109: #{_c2f_forward_impl.6} parent=103 // loop_footer
                  %s1240 = sadd.s32 1, %s1236
                $region110: #{_c2f_forward_impl.6} parent=103 // loop_footer_branch
                  %1235 = sbr.rel target = $region106
                $region111: #{_c2f_forward_impl.6} parent=103 // loop_exit
                  _
                loop: start=0, step=1, limit=1
                $region112: #{_c2f_forward_impl.6} parent=103 // loop_pre_header
                  _
                $region113: #{_c2f_forward_impl.6} parent=103 // loop_header
                  %s1245 = sphi 0, %s1249
                  %p1246 = scmp.ge.s32.totalorder %s1245, 1
                  %s1250 = sphi %s1145, %s1145
                  %s1251 = sphi %s1153, %s1153
                $region114: #{_c2f_forward_impl.6} parent=103 // loop_header_branch
                  %1248 = sbr.rel (%p1246) target = $region118
                $region115: #{_c2f_forward_impl.6} parent=103 // loop_body
                  %v1252 = vld [vmem:[%s1250] sm:$0xf]
                  %1253 = vst [vmem:[%s1251] sm:$0xf] %v1252
                  %v1254 = vld [vmem:[%s1250 + $0x4] sm:$0xf]
                  %1255 = vst [vmem:[%s1251 + $0x8] sm:$0xf] %v1254
                  %v1256 = vld [vmem:[%s1250 + $0x8] sm:$0xf]
                  %1257 = vst [vmem:[%s1251 + $0x10] sm:$0xf] %v1256
                  %v1258 = vld [vmem:[%s1250 + $0xc] sm:$0xf]
                  %1259 = vst [vmem:[%s1251 + $0x18] sm:$0xf] %v1258
                  %v1260 = vld [vmem:[%s1250 + $0x10] sm:$0xf]
                  %1261 = vst [vmem:[%s1251 + $0x20] sm:$0xf] %v1260
                  %v1262 = vld [vmem:[%s1250 + $0x14] sm:$0xf]
                  %1263 = vst [vmem:[%s1251 + $0x28] sm:$0xf] %v1262
                  %v1264 = vld [vmem:[%s1250 + $0x18] sm:$0xf]
                  %1265 = vst [vmem:[%s1251 + $0x30] sm:$0xf] %v1264
                  %v1266 = vld [vmem:[%s1250 + $0x1c] sm:$0xf]
                  %1267 = vst [vmem:[%s1251 + $0x38] sm:$0xf] %v1266
                  %v1268 = vld [vmem:[%s1250 + $0x20] sm:$0xf]
                  %1269 = vst [vmem:[%s1251 + $0x40] sm:$0xf] %v1268
                  %v1270 = vld [vmem:[%s1250 + $0x24] sm:$0xf]
                  %1271 = vst [vmem:[%s1251 + $0x48] sm:$0xf] %v1270
                  %v1272 = vld [vmem:[%s1250 + $0x28] sm:$0xf]
                  %1273 = vst [vmem:[%s1251 + $0x50] sm:$0xf] %v1272
                  %v1274 = vld [vmem:[%s1250 + $0x2c] sm:$0xf]
                  %1275 = vst [vmem:[%s1251 + $0x58] sm:$0xf] %v1274
                  %v1276 = vld [vmem:[%s1250 + $0x30] sm:$0xf]
                  %1277 = vst [vmem:[%s1251 + $0x60] sm:$0xf] %v1276
                  %v1278 = vld [vmem:[%s1250 + $0x34] sm:$0xf]
                  %1279 = vst [vmem:[%s1251 + $0x68] sm:$0xf] %v1278
                  %v1280 = vld [vmem:[%s1250 + $0x38] sm:$0xf]
                  %1281 = vst [vmem:[%s1251 + $0x70] sm:$0xf] %v1280
                  %v1282 = vld [vmem:[%s1250 + $0x3c] sm:$0xf]
                  %1283 = vst [vmem:[%s1251 + $0x78] sm:$0xf] %v1282
                  %v1284 = vld [vmem:[%s1250 + $0x40] sm:$0xf]
                  %1285 = vst [vmem:[%s1251 + $0x80] sm:$0xf] %v1284
                  %v1286 = vld [vmem:[%s1250 + $0x44] sm:$0xf]
                  %1287 = vst [vmem:[%s1251 + $0x88] sm:$0xf] %v1286
                  %v1288 = vld [vmem:[%s1250 + $0x48] sm:$0xf]
                  %1289 = vst [vmem:[%s1251 + $0x90] sm:$0xf] %v1288
                  %v1290 = vld [vmem:[%s1250 + $0x4c] sm:$0xf]
                  %1291 = vst [vmem:[%s1251 + $0x98] sm:$0xf] %v1290
                  %v1292 = vld [vmem:[%s1250 + $0x50] sm:$0xf]
                  %1293 = vst [vmem:[%s1251 + $0xa0] sm:$0xf] %v1292
                  %v1294 = vld [vmem:[%s1250 + $0x54] sm:$0xf]
                  %1295 = vst [vmem:[%s1251 + $0xa8] sm:$0xf] %v1294
                  %v1296 = vld [vmem:[%s1250 + $0x58] sm:$0xf]
                  %1297 = vst [vmem:[%s1251 + $0xb0] sm:$0xf] %v1296
                  %v1298 = vld [vmem:[%s1250 + $0x5c] sm:$0xf]
                  %1299 = vst [vmem:[%s1251 + $0xb8] sm:$0xf] %v1298
                  %v1300 = vld [vmem:[%s1250 + $0x60] sm:$0xf]
                  %1301 = vst [vmem:[%s1251 + $0xc0] sm:$0xf] %v1300
                  %v1302 = vld [vmem:[%s1250 + $0x64] sm:$0xf]
                  %1303 = vst [vmem:[%s1251 + $0xc8] sm:$0xf] %v1302
                  %v1304 = vld [vmem:[%s1250 + $0x68] sm:$0xf]
                  %1305 = vst [vmem:[%s1251 + $0xd0] sm:$0xf] %v1304
                  %v1306 = vld [vmem:[%s1250 + $0x6c] sm:$0xf]
                  %1307 = vst [vmem:[%s1251 + $0xd8] sm:$0xf] %v1306
                  %v1308 = vld [vmem:[%s1250 + $0x70] sm:$0xf]
                  %1309 = vst [vmem:[%s1251 + $0xe0] sm:$0xf] %v1308
                  %v1310 = vld [vmem:[%s1250 + $0x74] sm:$0xf]
                  %1311 = vst [vmem:[%s1251 + $0xe8] sm:$0xf] %v1310
                  %v1312 = vld [vmem:[%s1250 + $0x78] sm:$0xf]
                  %1313 = vst [vmem:[%s1251 + $0xf0] sm:$0xf] %v1312
                  %v1314 = vld [vmem:[%s1250 + $0x7c] sm:$0xf]
                  %1315 = vst [vmem:[%s1251 + $0xf8] sm:$0xf] %v1314
                $region116: #{_c2f_forward_impl.6} parent=103 // loop_footer
                  %s1249 = sadd.s32 1, %s1245
                $region117: #{_c2f_forward_impl.6} parent=103 // loop_footer_branch
                  %1244 = sbr.rel target = $region113
                $region118: #{_c2f_forward_impl.6} parent=103 // loop_exit
                  _
              $region104: #{_c2f_forward_impl.6} parent=88 // pred_fallthru
                _
            $region89: #{_c2f_forward_impl.6} parent=84 // pred_fallthru
              _
            // Predicated region
            $region90: #{_c2f_forward_impl.6} parent=84 // pred_check
              _
            $region91: #{_c2f_forward_impl.6} parent=84 // pred_check_branch
              %1159 = sbr.rel (0) target = $region93
            $region92: #{_c2f_forward_impl.6} parent=84 // pred_region
              loop: start=0, step=1, limit=1
              $region94: #{_c2f_forward_impl.6} parent=92 // loop_pre_header
                _
              $region95: #{_c2f_forward_impl.6} parent=92 // loop_header
                %s1162 = sphi 0, %s1166
                %p1163 = scmp.ge.s32.totalorder %s1162, 1
                %s1167 = sphi %s1145, %s1145
                %s1168 = sphi %s1153, %s1153
              $region96: #{_c2f_forward_impl.6} parent=92 // loop_header_branch
                %1165 = sbr.rel (%p1163) target = $region100
              $region97: #{_c2f_forward_impl.6} parent=92 // loop_body
                %v1169 = vld [vmem:[%s1167] sm:$0xf]
                %1170 = vst [vmem:[%s1168] sm:$0xf] %v1169
                %v1171 = vld [vmem:[%s1167 + $0x4] sm:$0xf]
                %1172 = vst [vmem:[%s1168 + $0x8] sm:$0xf] %v1171
                %v1173 = vld [vmem:[%s1167 + $0x8] sm:$0xf]
                %1174 = vst [vmem:[%s1168 + $0x10] sm:$0xf] %v1173
                %v1175 = vld [vmem:[%s1167 + $0xc] sm:$0xf]
                %1176 = vst [vmem:[%s1168 + $0x18] sm:$0xf] %v1175
                %v1177 = vld [vmem:[%s1167 + $0x10] sm:$0xf]
                %1178 = vst [vmem:[%s1168 + $0x20] sm:$0xf] %v1177
                %v1179 = vld [vmem:[%s1167 + $0x14] sm:$0xf]
                %1180 = vst [vmem:[%s1168 + $0x28] sm:$0xf] %v1179
                %v1181 = vld [vmem:[%s1167 + $0x18] sm:$0xf]
                %1182 = vst [vmem:[%s1168 + $0x30] sm:$0xf] %v1181
                %v1183 = vld [vmem:[%s1167 + $0x1c] sm:$0xf]
                %1184 = vst [vmem:[%s1168 + $0x38] sm:$0xf] %v1183
                %v1185 = vld [vmem:[%s1167 + $0x20] sm:$0xf]
                %1186 = vst [vmem:[%s1168 + $0x40] sm:$0xf] %v1185
                %v1187 = vld [vmem:[%s1167 + $0x24] sm:$0xf]
                %1188 = vst [vmem:[%s1168 + $0x48] sm:$0xf] %v1187
                %v1189 = vld [vmem:[%s1167 + $0x28] sm:$0xf]
                %1190 = vst [vmem:[%s1168 + $0x50] sm:$0xf] %v1189
                %v1191 = vld [vmem:[%s1167 + $0x2c] sm:$0xf]
                %1192 = vst [vmem:[%s1168 + $0x58] sm:$0xf] %v1191
                %v1193 = vld [vmem:[%s1167 + $0x30] sm:$0xf]
                %1194 = vst [vmem:[%s1168 + $0x60] sm:$0xf] %v1193
                %v1195 = vld [vmem:[%s1167 + $0x34] sm:$0xf]
                %1196 = vst [vmem:[%s1168 + $0x68] sm:$0xf] %v1195
                %v1197 = vld [vmem:[%s1167 + $0x38] sm:$0xf]
                %1198 = vst [vmem:[%s1168 + $0x70] sm:$0xf] %v1197
                %v1199 = vld [vmem:[%s1167 + $0x3c] sm:$0xf]
                %1200 = vst [vmem:[%s1168 + $0x78] sm:$0xf] %v1199
                %v1201 = vld [vmem:[%s1167 + $0x40] sm:$0xf]
                %1202 = vst [vmem:[%s1168 + $0x80] sm:$0xf] %v1201
                %v1203 = vld [vmem:[%s1167 + $0x44] sm:$0xf]
                %1204 = vst [vmem:[%s1168 + $0x88] sm:$0xf] %v1203
                %v1205 = vld [vmem:[%s1167 + $0x48] sm:$0xf]
                %1206 = vst [vmem:[%s1168 + $0x90] sm:$0xf] %v1205
                %v1207 = vld [vmem:[%s1167 + $0x4c] sm:$0xf]
                %1208 = vst [vmem:[%s1168 + $0x98] sm:$0xf] %v1207
                %v1209 = vld [vmem:[%s1167 + $0x50] sm:$0xf]
                %1210 = vst [vmem:[%s1168 + $0xa0] sm:$0xf] %v1209
                %v1211 = vld [vmem:[%s1167 + $0x54] sm:$0xf]
                %1212 = vst [vmem:[%s1168 + $0xa8] sm:$0xf] %v1211
                %v1213 = vld [vmem:[%s1167 + $0x58] sm:$0xf]
                %1214 = vst [vmem:[%s1168 + $0xb0] sm:$0xf] %v1213
                %v1215 = vld [vmem:[%s1167 + $0x5c] sm:$0xf]
                %1216 = vst [vmem:[%s1168 + $0xb8] sm:$0xf] %v1215
                %v1217 = vld [vmem:[%s1167 + $0x60] sm:$0xf]
                %1218 = vst [vmem:[%s1168 + $0xc0] sm:$0xf] %v1217
                %v1219 = vld [vmem:[%s1167 + $0x64] sm:$0xf]
                %1220 = vst [vmem:[%s1168 + $0xc8] sm:$0xf] %v1219
                %v1221 = vld [vmem:[%s1167 + $0x68] sm:$0xf]
                %1222 = vst [vmem:[%s1168 + $0xd0] sm:$0xf] %v1221
                %v1223 = vld [vmem:[%s1167 + $0x6c] sm:$0xf]
                %1224 = vst [vmem:[%s1168 + $0xd8] sm:$0xf] %v1223
                %v1225 = vld [vmem:[%s1167 + $0x70] sm:$0xf]
                %1226 = vst [vmem:[%s1168 + $0xe0] sm:$0xf] %v1225
                %v1227 = vld [vmem:[%s1167 + $0x74] sm:$0xf]
                %1228 = vst [vmem:[%s1168 + $0xe8] sm:$0xf] %v1227
                %v1229 = vld [vmem:[%s1167 + $0x78] sm:$0xf]
                %1230 = vst [vmem:[%s1168 + $0xf0] sm:$0xf] %v1229
                %v1231 = vld [vmem:[%s1167 + $0x7c] sm:$0xf]
                %1232 = vst [vmem:[%s1168 + $0xf8] sm:$0xf] %v1231
              $region98: #{_c2f_forward_impl.6} parent=92 // loop_footer
                %s1166 = sadd.s32 1, %s1162
              $region99: #{_c2f_forward_impl.6} parent=92 // loop_footer_branch
                %1161 = sbr.rel target = $region95
              $region100: #{_c2f_forward_impl.6} parent=92 // loop_exit
                _
            $region93: #{_c2f_forward_impl.6} parent=84 // pred_fallthru
              _
          $region85: #{_c2f_forward_impl.6} parent=80 // pred_fallthru
            _
          %1316 = vnop
        $region81: #{_c2f_forward_impl.6} parent=72 // pred_fallthru
          _
      $region73: #{_c2f_forward_impl.6} parent=5 // pred_fallthru
        _
      %p1317 = scmp.le.s32.totalorder 2, %s10
      // Predicated region
      $region119: #{_c2f_forward_impl.6} parent=5 // pred_check
        %p1318 = pneg %p1317
      $region120: #{_c2f_forward_impl.6} parent=5 // pred_check_branch
        %1320 = sbr.rel (%p1318) target = $region122
      $region121: #{_c2f_forward_impl.6} parent=5 // pred_region
        %s1321 = ssub.s32 %s10, 2
        // Predicated region
        $region123: #{_c2f_forward_impl.6} parent=121 // pred_check
          %p1322 = pneg %p157
        $region124: #{_c2f_forward_impl.6} parent=121 // pred_check_branch
          %1324 = sbr.rel (%p1322) target = $region126
        $region125: #{_c2f_forward_impl.6} parent=121 // pred_region
          %s1325 = sand.u32 %s142, 1
          %s1326 = sand.u32 %s142, 1
          %s1327 = smul.addr %s1326, 128
          %s1328 = scalar_lea.vmem [#allocation3], %s1327
        $region126: #{_c2f_forward_impl.6} parent=121 // pred_fallthru
          _
      $region122: #{_c2f_forward_impl.6} parent=5 // pred_fallthru
        _
    $region6: #{_c2f_forward_impl.6} parent=1 // loop_footer
      %s14 = sadd.s32 1, %s10
    $region7: #{_c2f_forward_impl.6} parent=1 // loop_footer_branch
      %9 = sbr.rel target = $region3
    $region8: #{_c2f_forward_impl.6} parent=1 // loop_exit
      _

// kernel: _c2f_forward_impl.7
$region0: #{_c2f_forward_impl.7}
  #allocation0 [shape = 'u32[]', space=smem, size = 0x4, offset = 0x4, fixed_abs, tag = 'smem constant byte address 0x4 - core index']
  #allocation1 [shape = 'u32[144,128]{1,0:T(1,128)}', space=vmem, size = 0x12000, scoped, tag = 'internal scratch']
  %s0 = inlined_call_operand.vmem [shape: bf16[512,128], index: 0, kind: input, shape index: {}]
  %s1 = inlined_call_operand.vmem [shape: bf16[1,128,128], index: 1, kind: input, shape index: {}]
  %s2 = inlined_call_operand.vmem [shape: f32[1,128], index: 2, kind: input, shape index: {}]
  %s3 = inlined_call_operand.vmem [shape: f32[1,128], index: 3, kind: input, shape index: {}]
  %s4 = inlined_call_operand.vmem [shape: bf16[512,128], index: 4, kind: output, shape index: {}]
  %s5 = sld [smem:[#allocation0]]
  $region49: #{_c2f_forward_impl.7} parent=0
    _
  %s7 = ssub.s32 1, %s5
  %s8 = scalar_select 0, %s7, %s5
  loop: start=0, step=1, limit=4
  $region2: #{_c2f_forward_impl.7} parent=0 // loop_pre_header
    _
  $region3: #{_c2f_forward_impl.7} parent=0 // loop_header
    %s10 = sphi 0, %s14
    %p11 = scmp.ge.s32.totalorder %s10, 4
    %s17 = sphi 0, %s29
    %s18 = sphi 0, %s25
    %s19 = sphi 0, %s17
    %s20 = sphi 0, %s18
    %s21 = sphi 0, %s19
    %s22 = sphi 0, %s20
    %s32 = sphi 0, %s34
    %s35 = sphi 0, %s32
    %s36 = sphi 0, %s35
    %s52 = sphi 0, %s36
    %s58 = sphi 0, %s60
    %s61 = sphi 0, %s58
    %s62 = sphi 0, %s61
    %s78 = sphi 0, %s62
    %s84 = sphi 0, %s86
    %s87 = sphi 0, %s84
    %s88 = sphi 0, %s87
    %s104 = sphi 0, %s88
    %s110 = sphi 0, %s112
    %s113 = sphi 0, %s110
    %s114 = sphi 0, %s113
    %s130 = sphi 0, %s114
    %s138 = sphi 0, %s140
    %s141 = sphi 0, %s138
    %s142 = sphi 0, %s141
    %s158 = sphi 0, %s142
  $region4: #{_c2f_forward_impl.7} parent=0 // loop_header_branch
    %13 = sbr.rel (%p11) target = $region8
  $region5: #{_c2f_forward_impl.7} parent=0 // loop_body
    %s15 = ssub.s32 %s10, 1
    %s16 = ssub.s32 %s10, 2
    %s23 = sadd.s32 1, %s18
    %p24 = scmp.ge.s32.totalorder %s23, 1
    %s25 = scalar_select %p24, 0, %s23
    %s26 = sadd.s32 1, %s17
    %s27 = scalar_select %p24, %s26, %s17
    %p28 = scmp.ge.s32.totalorder %s27, 2
    %s29 = scalar_select %p28, 0, %s27
    %s30 = ssub.s32 %s17, %s29
    %p31 = scmp.eq.s32.totalorder %s30, 0
    %s33 = sadd.s32 %s32, 1
    %s34 = scalar_select %p31, %s32, %s33
    %p37 = pneg %p31
    %p38 = scmp.eq.s32.totalorder %s10, 1
    %p39 = por %p37, %p38
    %p40 = scmp.ne.s32.totalorder %s32, %s35
    %p41 = scmp.eq.s32.totalorder %s10, 0
    %p42 = por %p40, %p41
    %p43 = scmp.ne.s32.totalorder %s32, %s35
    %p44 = scmp.eq.s32.totalorder %s15, 1
    %p45 = por %p43, %p44
    %p46 = scmp.ne.s32.totalorder %s35, %s36
    %p47 = scmp.eq.s32.totalorder %s15, 0
    %p48 = por %p46, %p47
    %p49 = scmp.ne.s32.totalorder %s35, %s36
    %p50 = scmp.eq.s32.totalorder %s16, 1
    %p51 = por %p49, %p50
    %p53 = scmp.ne.s32.totalorder %s36, %s52
    %p54 = scmp.eq.s32.totalorder %s16, 0
    %p55 = por %p53, %p54
    %s56 = ssub.s32 %s18, %s25
    %p57 = scmp.eq.s32.totalorder %s56, 0
    %s59 = sadd.s32 %s58, 1
    %s60 = scalar_select %p57, %s58, %s59
    %p63 = pneg %p57
    %p64 = scmp.eq.s32.totalorder %s10, 1
    %p65 = por %p63, %p64
    %p66 = scmp.ne.s32.totalorder %s58, %s61
    %p67 = scmp.eq.s32.totalorder %s10, 0
    %p68 = por %p66, %p67
    %p69 = scmp.ne.s32.totalorder %s58, %s61
    %p70 = scmp.eq.s32.totalorder %s15, 1
    %p71 = por %p69, %p70
    %p72 = scmp.ne.s32.totalorder %s61, %s62
    %p73 = scmp.eq.s32.totalorder %s15, 0
    %p74 = por %p72, %p73
    %p75 = scmp.ne.s32.totalorder %s61, %s62
    %p76 = scmp.eq.s32.totalorder %s16, 1
    %p77 = por %p75, %p76
    %p79 = scmp.ne.s32.totalorder %s62, %s78
    %p80 = scmp.eq.s32.totalorder %s16, 0
    %p81 = por %p79, %p80
    %s82 = ssub.s32 %s18, %s25
    %p83 = scmp.eq.s32.totalorder %s82, 0
    %s85 = sadd.s32 %s84, 1
    %s86 = scalar_select %p83, %s84, %s85
    %p89 = pneg %p83
    %p90 = scmp.eq.s32.totalorder %s10, 1
    %p91 = por %p89, %p90
    %p92 = scmp.ne.s32.totalorder %s84, %s87
    %p93 = scmp.eq.s32.totalorder %s10, 0
    %p94 = por %p92, %p93
    %p95 = scmp.ne.s32.totalorder %s84, %s87
    %p96 = scmp.eq.s32.totalorder %s15, 1
    %p97 = por %p95, %p96
    %p98 = scmp.ne.s32.totalorder %s87, %s88
    %p99 = scmp.eq.s32.totalorder %s15, 0
    %p100 = por %p98, %p99
    %p101 = scmp.ne.s32.totalorder %s87, %s88
    %p102 = scmp.eq.s32.totalorder %s16, 1
    %p103 = por %p101, %p102
    %p105 = scmp.ne.s32.totalorder %s88, %s104
    %p106 = scmp.eq.s32.totalorder %s16, 0
    %p107 = por %p105, %p106
    %s108 = ssub.s32 %s18, %s25
    %p109 = scmp.eq.s32.totalorder %s108, 0
    %s111 = sadd.s32 %s110, 1
    %s112 = scalar_select %p109, %s110, %s111
    %p115 = pneg %p109
    %p116 = scmp.eq.s32.totalorder %s10, 1
    %p117 = por %p115, %p116
    %p118 = scmp.ne.s32.totalorder %s110, %s113
    %p119 = scmp.eq.s32.totalorder %s10, 0
    %p120 = por %p118, %p119
    %p121 = scmp.ne.s32.totalorder %s110, %s113
    %p122 = scmp.eq.s32.totalorder %s15, 1
    %p123 = por %p121, %p122
    %p124 = scmp.ne.s32.totalorder %s113, %s114
    %p125 = scmp.eq.s32.totalorder %s15, 0
    %p126 = por %p124, %p125
    %p127 = scmp.ne.s32.totalorder %s113, %s114
    %p128 = scmp.eq.s32.totalorder %s16, 1
    %p129 = por %p127, %p128
    %p131 = scmp.ne.s32.totalorder %s114, %s130
    %p132 = scmp.eq.s32.totalorder %s16, 0
    %p133 = por %p131, %p132
    %s134 = ssub.s32 %s17, %s29
    %s135 = ssub.s32 %s18, %s25
    %s136 = sor.u32 %s134, %s135
    %p137 = scmp.eq.s32.totalorder %s136, 0
    %s139 = sadd.s32 %s138, 1
    %s140 = scalar_select %p137, %s138, %s139
    %p143 = pneg %p137
    %p144 = scmp.eq.s32.totalorder %s10, 1
    %p145 = por %p143, %p144
    %p146 = scmp.ne.s32.totalorder %s138, %s141
    %p147 = scmp.eq.s32.totalorder %s10, 0
    %p148 = por %p146, %p147
    %p149 = scmp.ne.s32.totalorder %s138, %s141
    %p150 = scmp.eq.s32.totalorder %s15, 1
    %p151 = por %p149, %p150
    %p152 = scmp.ne.s32.totalorder %s141, %s142
    %p153 = scmp.eq.s32.totalorder %s15, 0
    %p154 = por %p152, %p153
    %p155 = scmp.ne.s32.totalorder %s141, %s142
    %p156 = scmp.eq.s32.totalorder %s16, 1
    %p157 = por %p155, %p156
    %p159 = scmp.ne.s32.totalorder %s142, %s158
    %p160 = scmp.eq.s32.totalorder %s16, 0
    %p161 = por %p159, %p160
    %p162 = scmp.le.s32.totalorder 1, %s10
    %p163 = scmp.lt.s32.totalorder %s10, 3
    %p164 = pnand %p162, %p163
    %p165 = pneg %p164
    // Predicated region
    $region9: #{_c2f_forward_impl.7} parent=5 // pred_check
      _
    $region10: #{_c2f_forward_impl.7} parent=5 // pred_check_branch
      %167 = sbr.rel (%p164) target = $region12
    $region11: #{_c2f_forward_impl.7} parent=5 // pred_region
      %s168 = ssub.s32 %s10, 1
      // Predicated region
      $region13: #{_c2f_forward_impl.7} parent=11 // pred_check
        %p169 = pneg %p74
      $region14: #{_c2f_forward_impl.7} parent=11 // pred_check_branch
        %171 = sbr.rel (%p169) target = $region16
      $region15: #{_c2f_forward_impl.7} parent=11 // pred_region
        %p172 = scmp.lt.s32.totalorder %s20, 0
        %s173 = scalar_select %p172, %s20, 0
        %s174 = smul.addr %s173, 4
        %s175 = scalar_lea.vmem %s1, %s174
      $region16: #{_c2f_forward_impl.7} parent=11 // pred_fallthru
        _
      // Predicated region
      $region17: #{_c2f_forward_impl.7} parent=11 // pred_check
        %p176 = pneg %p100
      $region18: #{_c2f_forward_impl.7} parent=11 // pred_check_branch
        %178 = sbr.rel (%p176) target = $region20
      $region19: #{_c2f_forward_impl.7} parent=11 // pred_region
        %p179 = scmp.lt.s32.totalorder %s20, 0
        %s180 = scalar_select %p179, %s20, 0
        %s181 = scalar_lea.vmem %s2, %s180
      $region20: #{_c2f_forward_impl.7} parent=11 // pred_fallthru
        _
      // Predicated region
      $region21: #{_c2f_forward_impl.7} parent=11 // pred_check
        %p182 = pneg %p126
      $region22: #{_c2f_forward_impl.7} parent=11 // pred_check_branch
        %184 = sbr.rel (%p182) target = $region24
      $region23: #{_c2f_forward_impl.7} parent=11 // pred_region
        %p185 = scmp.lt.s32.totalorder %s20, 0
        %s186 = scalar_select %p185, %s20, 0
        %s187 = scalar_lea.vmem %s3, %s186
      $region24: #{_c2f_forward_impl.7} parent=11 // pred_fallthru
        _
    $region12: #{_c2f_forward_impl.7} parent=5 // pred_fallthru
      _
    %p188 = scmp.lt.s32.totalorder %s10, 2
    // Predicated region
    $region25: #{_c2f_forward_impl.7} parent=5 // pred_check
      %p189 = pneg %p188
    $region26: #{_c2f_forward_impl.7} parent=5 // pred_check_branch
      %191 = sbr.rel (%p189) target = $region28
    $region27: #{_c2f_forward_impl.7} parent=5 // pred_region
      // Predicated region
      $region29: #{_c2f_forward_impl.7} parent=27 // pred_check
        %p192 = pneg %p42
      $region30: #{_c2f_forward_impl.7} parent=27 // pred_check_branch
        %194 = sbr.rel (%p192) target = $region32
      $region31: #{_c2f_forward_impl.7} parent=27 // pred_region
        %s195 = smul.u32 32, %s17
        %p196 = scmp.lt.s32.totalorder %s195, 63
        %s197 = scalar_select %p196, %s195, 63
        %s198 = smul.addr %s197, 4
        %s199 = scalar_lea.vmem %s0, %s198
        %s200 = smul.u32 32, %s17
      $region32: #{_c2f_forward_impl.7} parent=27 // pred_fallthru
        _
    $region28: #{_c2f_forward_impl.7} parent=5 // pred_fallthru
      _
    %p201 = scmp.le.s32.totalorder 1, %s10
    %p202 = scmp.lt.s32.totalorder %s10, 3
    %p203 = pnand %p201, %p202
    %p204 = pneg %p203
    // Predicated region
    $region33: #{_c2f_forward_impl.7} parent=5 // pred_check
      _
    $region34: #{_c2f_forward_impl.7} parent=5 // pred_check_branch
      %206 = sbr.rel (%p203) target = $region36
    $region35: #{_c2f_forward_impl.7} parent=5 // pred_region
      %s207 = ssub.s32 %s10, 1
      %s208 = smul.u32 32, %s19
      %p209 = scmp.lt.s32.totalorder %s208, 63
      %s210 = scalar_select %p209, %s208, 63
      %s211 = smul.addr %s210, 4
      %s212 = scalar_lea.vmem %s0, %s211
      %p213 = pneg %p48
      %p214 = pneg %p45
      %p215 = scmp.lt.s32.totalorder %s20, 0
      %s216 = scalar_select %p215, %s20, 0
      %s217 = smul.addr %s216, 4
      %s218 = scalar_lea.vmem %s1, %s217
      %p219 = pneg %p74
      %p220 = pneg %p71
      %p221 = scmp.lt.s32.totalorder %s20, 0
      %s222 = scalar_select %p221, %s20, 0
      %s223 = scalar_lea.vmem %s2, %s222
      %p224 = pneg %p100
      %p225 = pneg %p97
      %p226 = scmp.lt.s32.totalorder %s20, 0
      %s227 = scalar_select %p226, %s20, 0
      %s228 = scalar_lea.vmem %s3, %s227
      %p229 = pneg %p126
      %p230 = pneg %p123
      %p231 = pneg %p154
      %p232 = pneg %p151
      %s233 = smul.u32 32, %s19
      %p234 = scmp.lt.s32.totalorder %s233, 63
      %s235 = scalar_select %p234, %s233, 63
      %p236 = scmp.lt.s32.totalorder %s20, 0
      %s237 = scalar_select %p236, %s20, 0
      %s238 = sadd.s32 %s237, %s235
      %s239 = smul.addr %s238, 4
      %s240 = scalar_lea.vmem %s4, %s239
      %s241 = smul.u32 32, %s19
      %p242 = scmp.lt.s32.totalorder %s241, 63
      %s243 = scalar_select %p242, %s241, 63
      %s244 = smul.addr %s243, 4
      %s245 = scalar_lea.vmem %s0, %s244
      %s246 = smul.u32 32, %s19
      %p247 = scmp.lt.s32.totalorder %s20, 0
      %s248 = scalar_select %p247, %s20, 0
      %s249 = smul.addr %s248, 4
      %s250 = scalar_lea.vmem %s1, %s249
      %p251 = scmp.lt.s32.totalorder %s20, 0
      %s252 = scalar_select %p251, %s20, 0
      %s253 = scalar_lea.vmem %s2, %s252
      %p254 = scmp.lt.s32.totalorder %s20, 0
      %s255 = scalar_select %p254, %s20, 0
      %s256 = scalar_lea.vmem %s3, %s255
      %s257 = smul.u32 32, %s19
      %p258 = scmp.lt.s32.totalorder %s257, 63
      %s259 = scalar_select %p258, %s257, 63
      %p260 = scmp.lt.s32.totalorder %s20, 0
      %s261 = scalar_select %p260, %s20, 0
      %s262 = sadd.s32 %s261, %s259
      %s263 = smul.addr %s262, 4
      %s264 = scalar_lea.vmem %s4, %s263
      %s265 = smul.u32 32, %s19
      %v267 = vld [vmem:[%s245] sm:$0xf]
      %v268 = vld [vmem:[%s245 + $0x4] sm:$0xf]
      %v269 = vld [vmem:[%s245 + $0x8] sm:$0xf]
      %v270 = vld [vmem:[%s245 + $0xc] sm:$0xf]
      %v271 = vld [vmem:[%s245 + $0x10] sm:$0xf]
      %v272 = vld [vmem:[%s245 + $0x14] sm:$0xf]
      %v273 = vld [vmem:[%s245 + $0x18] sm:$0xf]
      %v274 = vld [vmem:[%s245 + $0x1c] sm:$0xf]
      %v275 = vld [vmem:[%s245 + $0x20] sm:$0xf]
      %v276 = vld [vmem:[%s245 + $0x24] sm:$0xf]
      %v277 = vld [vmem:[%s245 + $0x28] sm:$0xf]
      %v278 = vld [vmem:[%s245 + $0x2c] sm:$0xf]
      %v279 = vld [vmem:[%s245 + $0x30] sm:$0xf]
      %v280 = vld [vmem:[%s245 + $0x34] sm:$0xf]
      %v281 = vld [vmem:[%s245 + $0x38] sm:$0xf]
      %v282 = vld [vmem:[%s245 + $0x3c] sm:$0xf]
      %v283 = vld [vmem:[%s245 + $0x40] sm:$0xf]
      %v284 = vld [vmem:[%s245 + $0x44] sm:$0xf]
      %v285 = vld [vmem:[%s245 + $0x48] sm:$0xf]
      %v286 = vld [vmem:[%s245 + $0x4c] sm:$0xf]
      %v287 = vld [vmem:[%s245 + $0x50] sm:$0xf]
      %v288 = vld [vmem:[%s245 + $0x54] sm:$0xf]
      %v289 = vld [vmem:[%s245 + $0x58] sm:$0xf]
      %v290 = vld [vmem:[%s245 + $0x5c] sm:$0xf]
      %v291 = vld [vmem:[%s245 + $0x60] sm:$0xf]
      %v292 = vld [vmem:[%s245 + $0x64] sm:$0xf]
      %v293 = vld [vmem:[%s245 + $0x68] sm:$0xf]
      %v294 = vld [vmem:[%s245 + $0x6c] sm:$0xf]
      %v295 = vld [vmem:[%s245 + $0x70] sm:$0xf]
      %v296 = vld [vmem:[%s245 + $0x74] sm:$0xf]
      %v297 = vld [vmem:[%s245 + $0x78] sm:$0xf]
      %v298 = vld [vmem:[%s245 + $0x7c] sm:$0xf]
      %v299 = vld [vmem:[%s250] sm:$0xf]
      %v300 = vld [vmem:[%s250 + $0x4] sm:$0xf]
      %v301 = vld [vmem:[%s250 + $0x8] sm:$0xf]
      %v302 = vld [vmem:[%s250 + $0xc] sm:$0xf]
      %v303 = vld [vmem:[%s250 + $0x10] sm:$0xf]
      %v304 = vld [vmem:[%s250 + $0x14] sm:$0xf]
      %v305 = vld [vmem:[%s250 + $0x18] sm:$0xf]
      %v306 = vld [vmem:[%s250 + $0x1c] sm:$0xf]
      %v307 = vld [vmem:[%s250 + $0x20] sm:$0xf]
      %v308 = vld [vmem:[%s250 + $0x24] sm:$0xf]
      %v309 = vld [vmem:[%s250 + $0x28] sm:$0xf]
      %v310 = vld [vmem:[%s250 + $0x2c] sm:$0xf]
      %v311 = vld [vmem:[%s250 + $0x30] sm:$0xf]
      %v312 = vld [vmem:[%s250 + $0x34] sm:$0xf]
      %v313 = vld [vmem:[%s250 + $0x38] sm:$0xf]
      %v314 = vld [vmem:[%s250 + $0x3c] sm:$0xf]
      %v347 = vunpack.c.l.b16 %v267
      %v348 = vunpack.c.l.b16 %v268
      %v349 = vunpack.c.l.b16 %v269
      %v350 = vunpack.c.l.b16 %v270
      %v351 = vunpack.c.l.b16 %v271
      %v352 = vunpack.c.l.b16 %v272
      %v353 = vunpack.c.l.b16 %v273
      %v354 = vunpack.c.l.b16 %v274
      %v355 = vunpack.c.l.b16 %v275
      %v356 = vunpack.c.l.b16 %v276
      %v357 = vunpack.c.l.b16 %v277
      %v358 = vunpack.c.l.b16 %v278
      %v359 = vunpack.c.l.b16 %v279
      %v360 = vunpack.c.l.b16 %v280
      %v361 = vunpack.c.l.b16 %v281
      %v362 = vunpack.c.l.b16 %v282
      %v363 = vunpack.c.l.b16 %v283
      %v364 = vunpack.c.l.b16 %v284
      %v365 = vunpack.c.l.b16 %v285
      %v366 = vunpack.c.l.b16 %v286
      %v367 = vunpack.c.l.b16 %v287
      %v368 = vunpack.c.l.b16 %v288
      %v369 = vunpack.c.l.b16 %v289
      %v370 = vunpack.c.l.b16 %v290
      %v371 = vunpack.c.l.b16 %v291
      %v372 = vunpack.c.l.b16 %v292
      %v373 = vunpack.c.l.b16 %v293
      %v374 = vunpack.c.l.b16 %v294
      %v375 = vunpack.c.l.b16 %v295
      %v376 = vunpack.c.l.b16 %v296
      %v377 = vunpack.c.l.b16 %v297
      %v378 = vunpack.c.l.b16 %v298
      %v379 = vpack.c.b16 %v348, %v347
      %v380 = vpack.c.b16 %v350, %v349
      %v381 = vpack.c.b16 %v352, %v351
      %v382 = vpack.c.b16 %v354, %v353
      %v383 = vpack.c.b16 %v356, %v355
      %v384 = vpack.c.b16 %v358, %v357
      %v385 = vpack.c.b16 %v360, %v359
      %v386 = vpack.c.b16 %v362, %v361
      %v387 = vpack.c.b16 %v364, %v363
      %v388 = vpack.c.b16 %v366, %v365
      %v389 = vpack.c.b16 %v368, %v367
      %v390 = vpack.c.b16 %v370, %v369
      %v391 = vpack.c.b16 %v372, %v371
      %v392 = vpack.c.b16 %v374, %v373
      %v393 = vpack.c.b16 %v376, %v375
      %v394 = vpack.c.b16 %v378, %v377
      %v427 = vunpack.c.l.b16 %v299
      %v428 = vunpack.c.l.b16 %v300
      %v429 = vunpack.c.l.b16 %v301
      %v430 = vunpack.c.l.b16 %v302
      %v431 = vunpack.c.l.b16 %v303
      %v432 = vunpack.c.l.b16 %v304
      %v433 = vunpack.c.l.b16 %v305
      %v434 = vunpack.c.l.b16 %v306
      %v435 = vunpack.c.l.b16 %v307
      %v436 = vunpack.c.l.b16 %v308
      %v437 = vunpack.c.l.b16 %v309
      %v438 = vunpack.c.l.b16 %v310
      %v439 = vunpack.c.l.b16 %v311
      %v440 = vunpack.c.l.b16 %v312
      %v441 = vunpack.c.l.b16 %v313
      %v442 = vunpack.c.l.b16 %v314
      %v443 = vpack.c.b16 %v428, %v427
      %v444 = vpack.c.b16 %v430, %v429
      %v445 = vpack.c.b16 %v432, %v431
      %v446 = vpack.c.b16 %v434, %v433
      %v447 = vpack.c.b16 %v436, %v435
      %v448 = vpack.c.b16 %v438, %v437
      %v449 = vpack.c.b16 %v440, %v439
      %v450 = vpack.c.b16 %v442, %v441
      %459 = vmatprep.subr.bf16.mxu0 0
      %460 = vmatpush1.bf16.msra.mxu0 %v443
      %461 = vmatprep.subr.bf16.mxu0 0
      %462 = vmatpush1.bf16.msra.mxu0 %v444
      %463 = vmatprep.subr.bf16.mxu0 0
      %464 = vmatpush1.bf16.msra.mxu0 %v445
      %465 = vmatprep.subr.bf16.mxu0 0
      %466 = vmatpush1.bf16.msra.mxu0 %v446
      %467 = vmatprep.subr.bf16.mxu0 0
      %468 = vmatpush1.bf16.msra.mxu0 %v447
      %469 = vmatprep.subr.bf16.mxu0 0
      %470 = vmatpush1.bf16.msra.mxu0 %v448
      %471 = vmatprep.subr.bf16.mxu0 0
      %472 = vmatpush1.bf16.msra.mxu0 %v449
      %473 = vmatprep.subr.bf16.mxu0 0
      %474 = vmatpush1.bf16.msra.mxu0 %v450
      %475 = vmatprep.subr.bf16.mxu0 0
      %476 = vmatpush1.bf16.msra.mxu0 0
      %477 = vmatprep.subr.bf16.mxu0 0
      %478 = vmatpush1.bf16.msra.mxu0 0
      %479 = vmatprep.subr.bf16.mxu0 0
      %480 = vmatpush1.bf16.msra.mxu0 0
      %481 = vmatprep.subr.bf16.mxu0 0
      %482 = vmatpush1.bf16.msra.mxu0 0
      %483 = vmatprep.subr.bf16.mxu0 0
      %484 = vmatpush1.bf16.msra.mxu0 0
      %485 = vmatprep.subr.bf16.mxu0 0
      %486 = vmatpush1.bf16.msra.mxu0 0
      %487 = vmatprep.subr.bf16.mxu0 0
      %488 = vmatpush1.bf16.msra.mxu0 0
      %489 = vmatprep.subr.bf16.mxu0 0
      %490 = vmatpush1.bf16.msra.mxu0 0
      %491 = vmatprep.mubr.bf16.mxu0 0
      %492 = vmatmul.mubr.bf16.gmra.mrb[0].mxu0 %v379
      %v493 = vpop.f32.mrb[0].mxu0
      %v494 = vadd.f32 0.0, %v493
      %v495 = vpop.f32.mrb[0].mxu0
      %v496 = vpop.f32.mrb[0].mxu0
      %v497 = vadd.f32 0.0, %v496
      %v498 = vpop.f32.mrb[0].mxu0
      %499 = vmatprep.mubr.bf16.mxu0 0
      %500 = vmatmul.mubr.bf16.gmra.mrb[0].mxu0 %v380
      %v501 = vpop.f32.mrb[0].mxu0
      %v502 = vadd.f32 0.0, %v501
      %v503 = vpop.f32.mrb[0].mxu0
      %v504 = vpop.f32.mrb[0].mxu0
      %v505 = vadd.f32 0.0, %v504
      %v506 = vpop.f32.mrb[0].mxu0
      %507 = vmatprep.mubr.bf16.mxu0 0
      %508 = vmatmul.mubr.bf16.gmra.mrb[0].mxu0 %v381
      %v509 = vpop.f32.mrb[0].mxu0
      %v510 = vadd.f32 0.0, %v509
      %v511 = vpop.f32.mrb[0].mxu0
      %v512 = vpop.f32.mrb[0].mxu0
      %v513 = vadd.f32 0.0, %v512
      %v514 = vpop.f32.mrb[0].mxu0
      %515 = vmatprep.mubr.bf16.mxu0 0
      %516 = vmatmul.mubr.bf16.gmra.mrb[0].mxu0 %v382
      %v517 = vpop.f32.mrb[0].mxu0
      %v518 = vadd.f32 0.0, %v517
      %v519 = vpop.f32.mrb[0].mxu0
      %v520 = vpop.f32.mrb[0].mxu0
      %v521 = vadd.f32 0.0, %v520
      %v522 = vpop.f32.mrb[0].mxu0
      %523 = vmatprep.mubr.bf16.mxu0 0
      %524 = vmatmul.mubr.bf16.gmra.mrb[0].mxu0 %v383
      %v525 = vpop.f32.mrb[0].mxu0
      %v526 = vadd.f32 0.0, %v525
      %v527 = vpop.f32.mrb[0].mxu0
      %v528 = vpop.f32.mrb[0].mxu0
      %v529 = vadd.f32 0.0, %v528
      %v530 = vpop.f32.mrb[0].mxu0
      %531 = vmatprep.mubr.bf16.mxu0 0
      %532 = vmatmul.mubr.bf16.gmra.mrb[0].mxu0 %v384
      %v533 = vpop.f32.mrb[0].mxu0
      %v534 = vadd.f32 0.0, %v533
      %v535 = vpop.f32.mrb[0].mxu0
      %v536 = vpop.f32.mrb[0].mxu0
      %v537 = vadd.f32 0.0, %v536
      %v538 = vpop.f32.mrb[0].mxu0
      %539 = vmatprep.mubr.bf16.mxu0 0
      %540 = vmatmul.mubr.bf16.gmra.mrb[0].mxu0 %v385
      %v541 = vpop.f32.mrb[0].mxu0
      %v542 = vadd.f32 0.0, %v541
      %v543 = vpop.f32.mrb[0].mxu0
      %v544 = vpop.f32.mrb[0].mxu0
      %v545 = vadd.f32 0.0, %v544
      %v546 = vpop.f32.mrb[0].mxu0
      %547 = vmatprep.mubr.bf16.mxu0 0
      %548 = vmatmul.mubr.bf16.gmra.mrb[0].mxu0 %v386
      %v549 = vpop.f32.mrb[0].mxu0
      %v550 = vadd.f32 0.0, %v549
      %v551 = vpop.f32.mrb[0].mxu0
      %v552 = vpop.f32.mrb[0].mxu0
      %v553 = vadd.f32 0.0, %v552
      %v554 = vpop.f32.mrb[0].mxu0
      %555 = vmatprep.mubr.bf16.mxu0 0
      %556 = vmatmul.mubr.bf16.gmra.mrb[0].mxu0 %v387
      %v557 = vpop.f32.mrb[0].mxu0
      %v558 = vadd.f32 0.0, %v557
      %v559 = vpop.f32.mrb[0].mxu0
      %v560 = vpop.f32.mrb[0].mxu0
      %v561 = vadd.f32 0.0, %v560
      %v562 = vpop.f32.mrb[0].mxu0
      %563 = vmatprep.mubr.bf16.mxu0 0
      %564 = vmatmul.mubr.bf16.gmra.mrb[0].mxu0 %v388
      %v565 = vpop.f32.mrb[0].mxu0
      %v566 = vadd.f32 0.0, %v565
      %v567 = vpop.f32.mrb[0].mxu0
      %v568 = vpop.f32.mrb[0].mxu0
      %v569 = vadd.f32 0.0, %v568
      %v570 = vpop.f32.mrb[0].mxu0
      %571 = vmatprep.mubr.bf16.mxu0 0
      %572 = vmatmul.mubr.bf16.gmra.mrb[0].mxu0 %v389
      %v573 = vpop.f32.mrb[0].mxu0
      %v574 = vadd.f32 0.0, %v573
      %v575 = vpop.f32.mrb[0].mxu0
      %v576 = vpop.f32.mrb[0].mxu0
      %v577 = vadd.f32 0.0, %v576
      %v578 = vpop.f32.mrb[0].mxu0
      %579 = vmatprep.mubr.bf16.mxu0 0
      %580 = vmatmul.mubr.bf16.gmra.mrb[0].mxu0 %v390
      %v581 = vpop.f32.mrb[0].mxu0
      %v582 = vadd.f32 0.0, %v581
      %v583 = vpop.f32.mrb[0].mxu0
      %v584 = vpop.f32.mrb[0].mxu0
      %v585 = vadd.f32 0.0, %v584
      %v586 = vpop.f32.mrb[0].mxu0
      %587 = vmatprep.mubr.bf16.mxu0 0
      %588 = vmatmul.mubr.bf16.gmra.mrb[0].mxu0 %v391
      %v589 = vpop.f32.mrb[0].mxu0
      %v590 = vadd.f32 0.0, %v589
      %v591 = vpop.f32.mrb[0].mxu0
      %v592 = vpop.f32.mrb[0].mxu0
      %v593 = vadd.f32 0.0, %v592
      %v594 = vpop.f32.mrb[0].mxu0
      %595 = vmatprep.mubr.bf16.mxu0 0
      %596 = vmatmul.mubr.bf16.gmra.mrb[0].mxu0 %v392
      %v597 = vpop.f32.mrb[0].mxu0
      %v598 = vadd.f32 0.0, %v597
      %v599 = vpop.f32.mrb[0].mxu0
      %v600 = vpop.f32.mrb[0].mxu0
      %v601 = vadd.f32 0.0, %v600
      %v602 = vpop.f32.mrb[0].mxu0
      %603 = vmatprep.mubr.bf16.mxu0 0
      %604 = vmatmul.mubr.bf16.gmra.mrb[0].mxu0 %v393
      %v605 = vpop.f32.mrb[0].mxu0
      %v606 = vadd.f32 0.0, %v605
      %v607 = vpop.f32.mrb[0].mxu0
      %v608 = vpop.f32.mrb[0].mxu0
      %v609 = vadd.f32 0.0, %v608
      %v610 = vpop.f32.mrb[0].mxu0
      %611 = vmatprep.mubr.bf16.mxu0 0
      %612 = vmatmul.mubr.bf16.gmra.mrb[0].mxu0 %v394
      %v613 = vpop.f32.mrb[0].mxu0
      %v614 = vadd.f32 0.0, %v613
      %v615 = vpop.f32.mrb[0].mxu0
      %v616 = vpop.f32.mrb[0].mxu0
      %v617 = vadd.f32 0.0, %v616
      %v618 = vpop.f32.mrb[0].mxu0
      %619 = vdwg.mxu0
      %v620 = vld [vmem:[%s253] sm:$0x1]
      %v622 = vlaneseq
      %v623 = vshrl.u32 %v622, 7
      %v624 = vsub.s32 0, %v623
      %v625 = vrot.slane %v620, %v624
      %v627 = vmul.f32 %v494, %v625
      %v628 = vmul.f32 %v497, %v625
      %v629 = vmul.f32 %v502, %v625
      %v630 = vmul.f32 %v505, %v625
      %v631 = vmul.f32 %v510, %v625
      %v632 = vmul.f32 %v513, %v625
      %v633 = vmul.f32 %v518, %v625
      %v634 = vmul.f32 %v521, %v625
      %v635 = vmul.f32 %v526, %v625
      %v636 = vmul.f32 %v529, %v625
      %v637 = vmul.f32 %v534, %v625
      %v638 = vmul.f32 %v537, %v625
      %v639 = vmul.f32 %v542, %v625
      %v640 = vmul.f32 %v545, %v625
      %v641 = vmul.f32 %v550, %v625
      %v642 = vmul.f32 %v553, %v625
      %v643 = vmul.f32 %v558, %v625
      %v644 = vmul.f32 %v561, %v625
      %v645 = vmul.f32 %v566, %v625
      %v646 = vmul.f32 %v569, %v625
      %v647 = vmul.f32 %v574, %v625
      %v648 = vmul.f32 %v577, %v625
      %v649 = vmul.f32 %v582, %v625
      %v650 = vmul.f32 %v585, %v625
      %v651 = vmul.f32 %v590, %v625
      %v652 = vmul.f32 %v593, %v625
      %v653 = vmul.f32 %v598, %v625
      %v654 = vmul.f32 %v601, %v625
      %v655 = vmul.f32 %v606, %v625
      %v656 = vmul.f32 %v609, %v625
      %v657 = vmul.f32 %v614, %v625
      %v658 = vmul.f32 %v617, %v625
      %v659 = vld [vmem:[%s256] sm:$0x1]
      %v661 = vlaneseq
      %v662 = vshrl.u32 %v661, 7
      %v663 = vsub.s32 0, %v662
      %v664 = vrot.slane %v659, %v663
      %v666 = vadd.f32 %v627, %v664
      %v667 = vadd.f32 %v628, %v664
      %v668 = vadd.f32 %v629, %v664
      %v669 = vadd.f32 %v630, %v664
      %v670 = vadd.f32 %v631, %v664
      %v671 = vadd.f32 %v632, %v664
      %v672 = vadd.f32 %v633, %v664
      %v673 = vadd.f32 %v634, %v664
      %v674 = vadd.f32 %v635, %v664
      %v675 = vadd.f32 %v636, %v664
      %v676 = vadd.f32 %v637, %v664
      %v677 = vadd.f32 %v638, %v664
      %v678 = vadd.f32 %v639, %v664
      %v679 = vadd.f32 %v640, %v664
      %v680 = vadd.f32 %v641, %v664
      %v681 = vadd.f32 %v642, %v664
      %v682 = vadd.f32 %v643, %v664
      %v683 = vadd.f32 %v644, %v664
      %v684 = vadd.f32 %v645, %v664
      %v685 = vadd.f32 %v646, %v664
      %v686 = vadd.f32 %v647, %v664
      %v687 = vadd.f32 %v648, %v664
      %v688 = vadd.f32 %v649, %v664
      %v689 = vadd.f32 %v650, %v664
      %v690 = vadd.f32 %v651, %v664
      %v691 = vadd.f32 %v652, %v664
      %v692 = vadd.f32 %v653, %v664
      %v693 = vadd.f32 %v654, %v664
      %v694 = vadd.f32 %v655, %v664
      %v695 = vadd.f32 %v656, %v664
      %v696 = vadd.f32 %v657, %v664
      %v697 = vadd.f32 %v658, %v664
      %v698 = vsub.f32 0.0, %v666
      %v699 = vsub.f32 0.0, %v667
      %v700 = vsub.f32 0.0, %v668
      %v701 = vsub.f32 0.0, %v669
      %v702 = vsub.f32 0.0, %v670
      %v703 = vsub.f32 0.0, %v671
      %v704 = vsub.f32 0.0, %v672
      %v705 = vsub.f32 0.0, %v673
      %v706 = vsub.f32 0.0, %v674
      %v707 = vsub.f32 0.0, %v675
      %v708 = vsub.f32 0.0, %v676
      %v709 = vsub.f32 0.0, %v677
      %v710 = vsub.f32 0.0, %v678
      %v711 = vsub.f32 0.0, %v679
      %v712 = vsub.f32 0.0, %v680
      %v713 = vsub.f32 0.0, %v681
      %v714 = vsub.f32 0.0, %v682
      %v715 = vsub.f32 0.0, %v683
      %v716 = vsub.f32 0.0, %v684
      %v717 = vsub.f32 0.0, %v685
      %v718 = vsub.f32 0.0, %v686
      %v719 = vsub.f32 0.0, %v687
      %v720 = vsub.f32 0.0, %v688
      %v721 = vsub.f32 0.0, %v689
      %v722 = vsub.f32 0.0, %v690
      %v723 = vsub.f32 0.0, %v691
      %v724 = vsub.f32 0.0, %v692
      %v725 = vsub.f32 0.0, %v693
      %v726 = vsub.f32 0.0, %v694
      %v727 = vsub.f32 0.0, %v695
      %v728 = vsub.f32 0.0, %v696
      %v729 = vsub.f32 0.0, %v697
      %v730 = vmul.f32 %v698, 1.442695
      %v731 = vpow.pop %v730
      %v732 = vmul.f32 %v699, 1.442695
      %v733 = vpow.pop %v732
      %v734 = vmul.f32 %v700, 1.442695
      %v735 = vpow.pop %v734
      %v736 = vmul.f32 %v701, 1.442695
      %v737 = vpow.pop %v736
      %v738 = vmul.f32 %v702, 1.442695
      %v739 = vpow.pop %v738
      %v740 = vmul.f32 %v703, 1.442695
      %v741 = vpow.pop %v740
      %v742 = vmul.f32 %v704, 1.442695
      %v743 = vpow.pop %v742
      %v744 = vmul.f32 %v705, 1.442695
      %v745 = vpow.pop %v744
      %v746 = vmul.f32 %v706, 1.442695
      %v747 = vpow.pop %v746
      %v748 = vmul.f32 %v707, 1.442695
      %v749 = vpow.pop %v748
      %v750 = vmul.f32 %v708, 1.442695
      %v751 = vpow.pop %v750
      %v752 = vmul.f32 %v709, 1.442695
      %v753 = vpow.pop %v752
      %v754 = vmul.f32 %v710, 1.442695
      %v755 = vpow.pop %v754
      %v756 = vmul.f32 %v711, 1.442695
      %v757 = vpow.pop %v756
      %v758 = vmul.f32 %v712, 1.442695
      %v759 = vpow.pop %v758
      %v760 = vmul.f32 %v713, 1.442695
      %v761 = vpow.pop %v760
      %v762 = vmul.f32 %v714, 1.442695
      %v763 = vpow.pop %v762
      %v764 = vmul.f32 %v715, 1.442695
      %v765 = vpow.pop %v764
      %v766 = vmul.f32 %v716, 1.442695
      %v767 = vpow.pop %v766
      %v768 = vmul.f32 %v717, 1.442695
      %v769 = vpow.pop %v768
      %v770 = vmul.f32 %v718, 1.442695
      %v771 = vpow.pop %v770
      %v772 = vmul.f32 %v719, 1.442695
      %v773 = vpow.pop %v772
      %v774 = vmul.f32 %v720, 1.442695
      %v775 = vpow.pop %v774
      %v776 = vmul.f32 %v721, 1.442695
      %v777 = vpow.pop %v776
      %v778 = vmul.f32 %v722, 1.442695
      %v779 = vpow.pop %v778
      %v780 = vmul.f32 %v723, 1.442695
      %v781 = vpow.pop %v780
      %v782 = vmul.f32 %v724, 1.442695
      %v783 = vpow.pop %v782
      %v784 = vmul.f32 %v725, 1.442695
      %v785 = vpow.pop %v784
      %v786 = vmul.f32 %v726, 1.442695
      %v787 = vpow.pop %v786
      %v788 = vmul.f32 %v727, 1.442695
      %v789 = vpow.pop %v788
      %v790 = vmul.f32 %v728, 1.442695
      %v791 = vpow.pop %v790
      %v792 = vmul.f32 %v729, 1.442695
      %v793 = vpow.pop %v792
      %v794 = vadd.f32 %v731, 1.0
      %v795 = vadd.f32 %v733, 1.0
      %v796 = vadd.f32 %v735, 1.0
      %v797 = vadd.f32 %v737, 1.0
      %v798 = vadd.f32 %v739, 1.0
      %v799 = vadd.f32 %v741, 1.0
      %v800 = vadd.f32 %v743, 1.0
      %v801 = vadd.f32 %v745, 1.0
      %v802 = vadd.f32 %v747, 1.0
      %v803 = vadd.f32 %v749, 1.0
      %v804 = vadd.f32 %v751, 1.0
      %v805 = vadd.f32 %v753, 1.0
      %v806 = vadd.f32 %v755, 1.0
      %v807 = vadd.f32 %v757, 1.0
      %v808 = vadd.f32 %v759, 1.0
      %v809 = vadd.f32 %v761, 1.0
      %v810 = vadd.f32 %v763, 1.0
      %v811 = vadd.f32 %v765, 1.0
      %v812 = vadd.f32 %v767, 1.0
      %v813 = vadd.f32 %v769, 1.0
      %v814 = vadd.f32 %v771, 1.0
      %v815 = vadd.f32 %v773, 1.0
      %v816 = vadd.f32 %v775, 1.0
      %v817 = vadd.f32 %v777, 1.0
      %v818 = vadd.f32 %v779, 1.0
      %v819 = vadd.f32 %v781, 1.0
      %v820 = vadd.f32 %v783, 1.0
      %v821 = vadd.f32 %v785, 1.0
      %v822 = vadd.f32 %v787, 1.0
      %v823 = vadd.f32 %v789, 1.0
      %v824 = vadd.f32 %v791, 1.0
      %v825 = vadd.f32 %v793, 1.0
      %v826 = vrcp.pop %v794
      %v827 = vrcp.pop %v795
      %v828 = vrcp.pop %v796
      %v829 = vrcp.pop %v797
      %v830 = vrcp.pop %v798
      %v831 = vrcp.pop %v799
      %v832 = vrcp.pop %v800
      %v833 = vrcp.pop %v801
      %v834 = vrcp.pop %v802
      %v835 = vrcp.pop %v803
      %v836 = vrcp.pop %v804
      %v837 = vrcp.pop %v805
      %v838 = vrcp.pop %v806
      %v839 = vrcp.pop %v807
      %v840 = vrcp.pop %v808
      %v841 = vrcp.pop %v809
      %v842 = vrcp.pop %v810
      %v843 = vrcp.pop %v811
      %v844 = vrcp.pop %v812
      %v845 = vrcp.pop %v813
      %v846 = vrcp.pop %v814
      %v847 = vrcp.pop %v815
      %v848 = vrcp.pop %v816
      %v849 = vrcp.pop %v817
      %v850 = vrcp.pop %v818
      %v851 = vrcp.pop %v819
      %v852 = vrcp.pop %v820
      %v853 = vrcp.pop %v821
      %v854 = vrcp.pop %v822
      %v855 = vrcp.pop %v823
      %v856 = vrcp.pop %v824
      %v857 = vrcp.pop %v825
      %v858 = vmul.f32 %v666, %v826
      %v859 = vmul.f32 %v667, %v827
      %v860 = vmul.f32 %v668, %v828
      %v861 = vmul.f32 %v669, %v829
      %v862 = vmul.f32 %v670, %v830
      %v863 = vmul.f32 %v671, %v831
      %v864 = vmul.f32 %v672, %v832
      %v865 = vmul.f32 %v673, %v833
      %v866 = vmul.f32 %v674, %v834
      %v867 = vmul.f32 %v675, %v835
      %v868 = vmul.f32 %v676, %v836
      %v869 = vmul.f32 %v677, %v837
      %v870 = vmul.f32 %v678, %v838
      %v871 = vmul.f32 %v679, %v839
      %v872 = vmul.f32 %v680, %v840
      %v873 = vmul.f32 %v681, %v841
      %v874 = vmul.f32 %v682, %v842
      %v875 = vmul.f32 %v683, %v843
      %v876 = vmul.f32 %v684, %v844
      %v877 = vmul.f32 %v685, %v845
      %v878 = vmul.f32 %v686, %v846
      %v879 = vmul.f32 %v687, %v847
      %v880 = vmul.f32 %v688, %v848
      %v881 = vmul.f32 %v689, %v849
      %v882 = vmul.f32 %v690, %v850
      %v883 = vmul.f32 %v691, %v851
      %v884 = vmul.f32 %v692, %v852
      %v885 = vmul.f32 %v693, %v853
      %v886 = vmul.f32 %v694, %v854
      %v887 = vmul.f32 %v695, %v855
      %v888 = vmul.f32 %v696, %v856
      %v889 = vmul.f32 %v697, %v857
      %v890 = vpack.c.bf16 %v859, %v858
      %v891 = vpack.c.bf16 %v861, %v860
      %v892 = vpack.c.bf16 %v863, %v862
      %v893 = vpack.c.bf16 %v865, %v864
      %v894 = vpack.c.bf16 %v867, %v866
      %v895 = vpack.c.bf16 %v869, %v868
      %v896 = vpack.c.bf16 %v871, %v870
      %v897 = vpack.c.bf16 %v873, %v872
      %v898 = vpack.c.bf16 %v875, %v874
      %v899 = vpack.c.bf16 %v877, %v876
      %v900 = vpack.c.bf16 %v879, %v878
      %v901 = vpack.c.bf16 %v881, %v880
      %v902 = vpack.c.bf16 %v883, %v882
      %v903 = vpack.c.bf16 %v885, %v884
      %v904 = vpack.c.bf16 %v887, %v886
      %v905 = vpack.c.bf16 %v889, %v888
      %v922 = vunpack.c.l.b16 %v890
      %v923 = vunpack.c.h.b16 %v890
      %v924 = vunpack.c.l.b16 %v891
      %v925 = vunpack.c.h.b16 %v891
      %v926 = vunpack.c.l.b16 %v892
      %v927 = vunpack.c.h.b16 %v892
      %v928 = vunpack.c.l.b16 %v893
      %v929 = vunpack.c.h.b16 %v893
      %v930 = vunpack.c.l.b16 %v894
      %v931 = vunpack.c.h.b16 %v894
      %v932 = vunpack.c.l.b16 %v895
      %v933 = vunpack.c.h.b16 %v895
      %v934 = vunpack.c.l.b16 %v896
      %v935 = vunpack.c.h.b16 %v896
      %v936 = vunpack.c.l.b16 %v897
      %v937 = vunpack.c.h.b16 %v897
      %v938 = vunpack.c.l.b16 %v898
      %v939 = vunpack.c.h.b16 %v898
      %v940 = vunpack.c.l.b16 %v899
      %v941 = vunpack.c.h.b16 %v899
      %v942 = vunpack.c.l.b16 %v900
      %v943 = vunpack.c.h.b16 %v900
      %v944 = vunpack.c.l.b16 %v901
      %v945 = vunpack.c.h.b16 %v901
      %v946 = vunpack.c.l.b16 %v902
      %v947 = vunpack.c.h.b16 %v902
      %v948 = vunpack.c.l.b16 %v903
      %v949 = vunpack.c.h.b16 %v903
      %v950 = vunpack.c.l.b16 %v904
      %v951 = vunpack.c.h.b16 %v904
      %v952 = vunpack.c.l.b16 %v905
      %v953 = vunpack.c.h.b16 %v905
      %v954 = vpack.c.b16 %v922, %v922
      %v955 = vpack.c.b16 %v923, %v923
      %v956 = vpack.c.b16 %v924, %v924
      %v957 = vpack.c.b16 %v925, %v925
      %v958 = vpack.c.b16 %v926, %v926
      %v959 = vpack.c.b16 %v927, %v927
      %v960 = vpack.c.b16 %v928, %v928
      %v961 = vpack.c.b16 %v929, %v929
      %v962 = vpack.c.b16 %v930, %v930
      %v963 = vpack.c.b16 %v931, %v931
      %v964 = vpack.c.b16 %v932, %v932
      %v965 = vpack.c.b16 %v933, %v933
      %v966 = vpack.c.b16 %v934, %v934
      %v967 = vpack.c.b16 %v935, %v935
      %v968 = vpack.c.b16 %v936, %v936
      %v969 = vpack.c.b16 %v937, %v937
      %v970 = vpack.c.b16 %v938, %v938
      %v971 = vpack.c.b16 %v939, %v939
      %v972 = vpack.c.b16 %v940, %v940
      %v973 = vpack.c.b16 %v941, %v941
      %v974 = vpack.c.b16 %v942, %v942
      %v975 = vpack.c.b16 %v943, %v943
      %v976 = vpack.c.b16 %v944, %v944
      %v977 = vpack.c.b16 %v945, %v945
      %v978 = vpack.c.b16 %v946, %v946
      %v979 = vpack.c.b16 %v947, %v947
      %v980 = vpack.c.b16 %v948, %v948
      %v981 = vpack.c.b16 %v949, %v949
      %v982 = vpack.c.b16 %v950, %v950
      %v983 = vpack.c.b16 %v951, %v951
      %v984 = vpack.c.b16 %v952, %v952
      %v985 = vpack.c.b16 %v953, %v953
      %1018 = vst [vmem:[%s264] sm:$0xf] %v954
      %1019 = vst [vmem:[%s264 + $0x4] sm:$0xf] %v955
      %1020 = vst [vmem:[%s264 + $0x8] sm:$0xf] %v956
      %1021 = vst [vmem:[%s264 + $0xc] sm:$0xf] %v957
      %1022 = vst [vmem:[%s264 + $0x10] sm:$0xf] %v958
      %1023 = vst [vmem:[%s264 + $0x14] sm:$0xf] %v959
      %1024 = vst [vmem:[%s264 + $0x18] sm:$0xf] %v960
      %1025 = vst [vmem:[%s264 + $0x1c] sm:$0xf] %v961
      %1026 = vst [vmem:[%s264 + $0x20] sm:$0xf] %v962
      %1027 = vst [vmem:[%s264 + $0x24] sm:$0xf] %v963
      %1028 = vst [vmem:[%s264 + $0x28] sm:$0xf] %v964
      %1029 = vst [vmem:[%s264 + $0x2c] sm:$0xf] %v965
      %1030 = vst [vmem:[%s264 + $0x30] sm:$0xf] %v966
      %1031 = vst [vmem:[%s264 + $0x34] sm:$0xf] %v967
      %1032 = vst [vmem:[%s264 + $0x38] sm:$0xf] %v968
      %1033 = vst [vmem:[%s264 + $0x3c] sm:$0xf] %v969
      %1034 = vst [vmem:[%s264 + $0x40] sm:$0xf] %v970
      %1035 = vst [vmem:[%s264 + $0x44] sm:$0xf] %v971
      %1036 = vst [vmem:[%s264 + $0x48] sm:$0xf] %v972
      %1037 = vst [vmem:[%s264 + $0x4c] sm:$0xf] %v973
      %1038 = vst [vmem:[%s264 + $0x50] sm:$0xf] %v974
      %1039 = vst [vmem:[%s264 + $0x54] sm:$0xf] %v975
      %1040 = vst [vmem:[%s264 + $0x58] sm:$0xf] %v976
      %1041 = vst [vmem:[%s264 + $0x5c] sm:$0xf] %v977
      %1042 = vst [vmem:[%s264 + $0x60] sm:$0xf] %v978
      %1043 = vst [vmem:[%s264 + $0x64] sm:$0xf] %v979
      %1044 = vst [vmem:[%s264 + $0x68] sm:$0xf] %v980
      %1045 = vst [vmem:[%s264 + $0x6c] sm:$0xf] %v981
      %1046 = vst [vmem:[%s264 + $0x70] sm:$0xf] %v982
      %1047 = vst [vmem:[%s264 + $0x74] sm:$0xf] %v983
      %1048 = vst [vmem:[%s264 + $0x78] sm:$0xf] %v984
      %1049 = vst [vmem:[%s264 + $0x7c] sm:$0xf] %v985
      %s1050 = smul.u32 32, %s19
      %p1051 = scmp.lt.s32.totalorder %s1050, 63
      %s1052 = scalar_select %p1051, %s1050, 63
      %p1053 = scmp.lt.s32.totalorder %s20, 0
      %s1054 = scalar_select %p1053, %s20, 0
      %s1055 = sadd.s32 %s1054, %s1052
      %s1056 = smul.addr %s1055, 4
      %s1057 = scalar_lea.vmem %s4, %s1056
      // Predicated region
      $region37: #{_c2f_forward_impl.7} parent=35 // pred_check
        %p1058 = pneg %p151
      $region38: #{_c2f_forward_impl.7} parent=35 // pred_check_branch
        %1060 = sbr.rel (%p1058) target = $region40
      $region39: #{_c2f_forward_impl.7} parent=35 // pred_region
        %s1061 = smul.u32 32, %s19
      $region40: #{_c2f_forward_impl.7} parent=35 // pred_fallthru
        _
    $region36: #{_c2f_forward_impl.7} parent=5 // pred_fallthru
      _
    %p1062 = scmp.le.s32.totalorder 2, %s10
    // Predicated region
    $region41: #{_c2f_forward_impl.7} parent=5 // pred_check
      %p1063 = pneg %p1062
    $region42: #{_c2f_forward_impl.7} parent=5 // pred_check_branch
      %1065 = sbr.rel (%p1063) target = $region44
    $region43: #{_c2f_forward_impl.7} parent=5 // pred_region
      %s1066 = ssub.s32 %s10, 2
      // Predicated region
      $region45: #{_c2f_forward_impl.7} parent=43 // pred_check
        %p1067 = pneg %p157
      $region46: #{_c2f_forward_impl.7} parent=43 // pred_check_branch
        %1069 = sbr.rel (%p1067) target = $region48
      $region47: #{_c2f_forward_impl.7} parent=43 // pred_region
        %s1070 = smul.u32 32, %s21
        %p1071 = scmp.lt.s32.totalorder %s1070, 63
        %s1072 = scalar_select %p1071, %s1070, 63
        %p1073 = scmp.lt.s32.totalorder %s22, 0
        %s1074 = scalar_select %p1073, %s22, 0
        %s1075 = sadd.s32 %s1074, %s1072
        %s1076 = smul.addr %s1075, 4
        %s1077 = scalar_lea.vmem %s4, %s1076
      $region48: #{_c2f_forward_impl.7} parent=43 // pred_fallthru
        _
    $region44: #{_c2f_forward_impl.7} parent=5 // pred_fallthru
      _
  $region6: #{_c2f_forward_impl.7} parent=0 // loop_footer
    %s14 = sadd.s32 1, %s10
  $region7: #{_c2f_forward_impl.7} parent=0 // loop_footer_branch
    %9 = sbr.rel target = $region3
  $region8: #{_c2f_forward_impl.7} parent=0 // loop_exit
    _

// kernel: _c2f_forward_impl.11
$region0: #{_c2f_forward_impl.11}
  #allocation0 [shape = 'u32[]', space=smem, size = 0x4, offset = 0x4, fixed_abs, tag = 'smem constant byte address 0x4 - core index']
  #allocation1 [shape = 'u32[144,128]{1,0:T(1,128)}', space=vmem, size = 0x12000, scoped, tag = 'internal scratch']
  %s0 = inlined_call_operand.vmem [shape: bf16[512,128], index: 0, kind: input, shape index: {}]
  %s1 = inlined_call_operand.vmem [shape: bf16[512,128], index: 1, kind: input, shape index: {}]
  %s2 = inlined_call_operand.vmem [shape: bf16[512,128], index: 2, kind: input, shape index: {}]
  %s3 = inlined_call_operand.vmem [shape: bf16[512,128], index: 3, kind: input, shape index: {}]
  %s4 = inlined_call_operand.vmem [shape: bf16[4,128,128], index: 4, kind: input, shape index: {}]
  %s5 = inlined_call_operand.vmem [shape: f32[1,128], index: 5, kind: input, shape index: {}]
  %s6 = inlined_call_operand.vmem [shape: f32[1,128], index: 6, kind: input, shape index: {}]
  %s7 = inlined_call_operand.vmem [shape: bf16[512,128], index: 7, kind: output, shape index: {}]
  %s8 = sld [smem:[#allocation0]]
  $region61: #{_c2f_forward_impl.11} parent=0
    _
  %s10 = ssub.s32 1, %s8
  %s11 = scalar_select 0, %s10, %s8
  loop: start=0, step=1, limit=4
  $region2: #{_c2f_forward_impl.11} parent=0 // loop_pre_header
    _
  $region3: #{_c2f_forward_impl.11} parent=0 // loop_header
    %s13 = sphi 0, %s17
    %p14 = scmp.ge.s32.totalorder %s13, 4
    %s20 = sphi 0, %s32
    %s21 = sphi 0, %s28
    %s22 = sphi 0, %s20
    %s23 = sphi 0, %s21
    %s24 = sphi 0, %s22
    %s25 = sphi 0, %s23
    %s35 = sphi 0, %s37
    %s38 = sphi 0, %s35
    %s39 = sphi 0, %s38
    %s55 = sphi 0, %s39
    %s61 = sphi 0, %s63
    %s64 = sphi 0, %s61
    %s65 = sphi 0, %s64
    %s81 = sphi 0, %s65
    %s87 = sphi 0, %s89
    %s90 = sphi 0, %s87
    %s91 = sphi 0, %s90
    %s107 = sphi 0, %s91
    %s113 = sphi 0, %s115
    %s116 = sphi 0, %s113
    %s117 = sphi 0, %s116
    %s133 = sphi 0, %s117
    %s139 = sphi 0, %s141
    %s142 = sphi 0, %s139
    %s143 = sphi 0, %s142
    %s159 = sphi 0, %s143
    %s165 = sphi 0, %s167
    %s168 = sphi 0, %s165
    %s169 = sphi 0, %s168
    %s185 = sphi 0, %s169
    %s191 = sphi 0, %s193
    %s194 = sphi 0, %s191
    %s195 = sphi 0, %s194
    %s211 = sphi 0, %s195
    %s219 = sphi 0, %s221
    %s222 = sphi 0, %s219
    %s223 = sphi 0, %s222
    %s239 = sphi 0, %s223
  $region4: #{_c2f_forward_impl.11} parent=0 // loop_header_branch
    %16 = sbr.rel (%p14) target = $region8
  $region5: #{_c2f_forward_impl.11} parent=0 // loop_body
    %s18 = ssub.s32 %s13, 1
    %s19 = ssub.s32 %s13, 2
    %s26 = sadd.s32 1, %s21
    %p27 = scmp.ge.s32.totalorder %s26, 1
    %s28 = scalar_select %p27, 0, %s26
    %s29 = sadd.s32 1, %s20
    %s30 = scalar_select %p27, %s29, %s20
    %p31 = scmp.ge.s32.totalorder %s30, 2
    %s32 = scalar_select %p31, 0, %s30
    %s33 = ssub.s32 %s20, %s32
    %p34 = scmp.eq.s32.totalorder %s33, 0
    %s36 = sadd.s32 %s35, 1
    %s37 = scalar_select %p34, %s35, %s36
    %p40 = pneg %p34
    %p41 = scmp.eq.s32.totalorder %s13, 1
    %p42 = por %p40, %p41
    %p43 = scmp.ne.s32.totalorder %s35, %s38
    %p44 = scmp.eq.s32.totalorder %s13, 0
    %p45 = por %p43, %p44
    %p46 = scmp.ne.s32.totalorder %s35, %s38
    %p47 = scmp.eq.s32.totalorder %s18, 1
    %p48 = por %p46, %p47
    %p49 = scmp.ne.s32.totalorder %s38, %s39
    %p50 = scmp.eq.s32.totalorder %s18, 0
    %p51 = por %p49, %p50
    %p52 = scmp.ne.s32.totalorder %s38, %s39
    %p53 = scmp.eq.s32.totalorder %s19, 1
    %p54 = por %p52, %p53
    %p56 = scmp.ne.s32.totalorder %s39, %s55
    %p57 = scmp.eq.s32.totalorder %s19, 0
    %p58 = por %p56, %p57
    %s59 = ssub.s32 %s20, %s32
    %p60 = scmp.eq.s32.totalorder %s59, 0
    %s62 = sadd.s32 %s61, 1
    %s63 = scalar_select %p60, %s61, %s62
    %p66 = pneg %p60
    %p67 = scmp.eq.s32.totalorder %s13, 1
    %p68 = por %p66, %p67
    %p69 = scmp.ne.s32.totalorder %s61, %s64
    %p70 = scmp.eq.s32.totalorder %s13, 0
    %p71 = por %p69, %p70
    %p72 = scmp.ne.s32.totalorder %s61, %s64
    %p73 = scmp.eq.s32.totalorder %s18, 1
    %p74 = por %p72, %p73
    %p75 = scmp.ne.s32.totalorder %s64, %s65
    %p76 = scmp.eq.s32.totalorder %s18, 0
    %p77 = por %p75, %p76
    %p78 = scmp.ne.s32.totalorder %s64, %s65
    %p79 = scmp.eq.s32.totalorder %s19, 1
    %p80 = por %p78, %p79
    %p82 = scmp.ne.s32.totalorder %s65, %s81
    %p83 = scmp.eq.s32.totalorder %s19, 0
    %p84 = por %p82, %p83
    %s85 = ssub.s32 %s20, %s32
    %p86 = scmp.eq.s32.totalorder %s85, 0
    %s88 = sadd.s32 %s87, 1
    %s89 = scalar_select %p86, %s87, %s88
    %p92 = pneg %p86
    %p93 = scmp.eq.s32.totalorder %s13, 1
    %p94 = por %p92, %p93
    %p95 = scmp.ne.s32.totalorder %s87, %s90
    %p96 = scmp.eq.s32.totalorder %s13, 0
    %p97 = por %p95, %p96
    %p98 = scmp.ne.s32.totalorder %s87, %s90
    %p99 = scmp.eq.s32.totalorder %s18, 1
    %p100 = por %p98, %p99
    %p101 = scmp.ne.s32.totalorder %s90, %s91
    %p102 = scmp.eq.s32.totalorder %s18, 0
    %p103 = por %p101, %p102
    %p104 = scmp.ne.s32.totalorder %s90, %s91
    %p105 = scmp.eq.s32.totalorder %s19, 1
    %p106 = por %p104, %p105
    %p108 = scmp.ne.s32.totalorder %s91, %s107
    %p109 = scmp.eq.s32.totalorder %s19, 0
    %p110 = por %p108, %p109
    %s111 = ssub.s32 %s20, %s32
    %p112 = scmp.eq.s32.totalorder %s111, 0
    %s114 = sadd.s32 %s113, 1
    %s115 = scalar_select %p112, %s113, %s114
    %p118 = pneg %p112
    %p119 = scmp.eq.s32.totalorder %s13, 1
    %p120 = por %p118, %p119
    %p121 = scmp.ne.s32.totalorder %s113, %s116
    %p122 = scmp.eq.s32.totalorder %s13, 0
    %p123 = por %p121, %p122
    %p124 = scmp.ne.s32.totalorder %s113, %s116
    %p125 = scmp.eq.s32.totalorder %s18, 1
    %p126 = por %p124, %p125
    %p127 = scmp.ne.s32.totalorder %s116, %s117
    %p128 = scmp.eq.s32.totalorder %s18, 0
    %p129 = por %p127, %p128
    %p130 = scmp.ne.s32.totalorder %s116, %s117
    %p131 = scmp.eq.s32.totalorder %s19, 1
    %p132 = por %p130, %p131
    %p134 = scmp.ne.s32.totalorder %s117, %s133
    %p135 = scmp.eq.s32.totalorder %s19, 0
    %p136 = por %p134, %p135
    %s137 = ssub.s32 %s21, %s28
    %p138 = scmp.eq.s32.totalorder %s137, 0
    %s140 = sadd.s32 %s139, 1
    %s141 = scalar_select %p138, %s139, %s140
    %p144 = pneg %p138
    %p145 = scmp.eq.s32.totalorder %s13, 1
    %p146 = por %p144, %p145
    %p147 = scmp.ne.s32.totalorder %s139, %s142
    %p148 = scmp.eq.s32.totalorder %s13, 0
    %p149 = por %p147, %p148
    %p150 = scmp.ne.s32.totalorder %s139, %s142
    %p151 = scmp.eq.s32.totalorder %s18, 1
    %p152 = por %p150, %p151
    %p153 = scmp.ne.s32.totalorder %s142, %s143
    %p154 = scmp.eq.s32.totalorder %s18, 0
    %p155 = por %p153, %p154
    %p156 = scmp.ne.s32.totalorder %s142, %s143
    %p157 = scmp.eq.s32.totalorder %s19, 1
    %p158 = por %p156, %p157
    %p160 = scmp.ne.s32.totalorder %s143, %s159
    %p161 = scmp.eq.s32.totalorder %s19, 0
    %p162 = por %p160, %p161
    %s163 = ssub.s32 %s21, %s28
    %p164 = scmp.eq.s32.totalorder %s163, 0
    %s166 = sadd.s32 %s165, 1
    %s167 = scalar_select %p164, %s165, %s166
    %p170 = pneg %p164
    %p171 = scmp.eq.s32.totalorder %s13, 1
    %p172 = por %p170, %p171
    %p173 = scmp.ne.s32.totalorder %s165, %s168
    %p174 = scmp.eq.s32.totalorder %s13, 0
    %p175 = por %p173, %p174
    %p176 = scmp.ne.s32.totalorder %s165, %s168
    %p177 = scmp.eq.s32.totalorder %s18, 1
    %p178 = por %p176, %p177
    %p179 = scmp.ne.s32.totalorder %s168, %s169
    %p180 = scmp.eq.s32.totalorder %s18, 0
    %p181 = por %p179, %p180
    %p182 = scmp.ne.s32.totalorder %s168, %s169
    %p183 = scmp.eq.s32.totalorder %s19, 1
    %p184 = por %p182, %p183
    %p186 = scmp.ne.s32.totalorder %s169, %s185
    %p187 = scmp.eq.s32.totalorder %s19, 0
    %p188 = por %p186, %p187
    %s189 = ssub.s32 %s21, %s28
    %p190 = scmp.eq.s32.totalorder %s189, 0
    %s192 = sadd.s32 %s191, 1
    %s193 = scalar_select %p190, %s191, %s192
    %p196 = pneg %p190
    %p197 = scmp.eq.s32.totalorder %s13, 1
    %p198 = por %p196, %p197
    %p199 = scmp.ne.s32.totalorder %s191, %s194
    %p200 = scmp.eq.s32.totalorder %s13, 0
    %p201 = por %p199, %p200
    %p202 = scmp.ne.s32.totalorder %s191, %s194
    %p203 = scmp.eq.s32.totalorder %s18, 1
    %p204 = por %p202, %p203
    %p205 = scmp.ne.s32.totalorder %s194, %s195
    %p206 = scmp.eq.s32.totalorder %s18, 0
    %p207 = por %p205, %p206
    %p208 = scmp.ne.s32.totalorder %s194, %s195
    %p209 = scmp.eq.s32.totalorder %s19, 1
    %p210 = por %p208, %p209
    %p212 = scmp.ne.s32.totalorder %s195, %s211
    %p213 = scmp.eq.s32.totalorder %s19, 0
    %p214 = por %p212, %p213
    %s215 = ssub.s32 %s20, %s32
    %s216 = ssub.s32 %s21, %s28
    %s217 = sor.u32 %s215, %s216
    %p218 = scmp.eq.s32.totalorder %s217, 0
    %s220 = sadd.s32 %s219, 1
    %s221 = scalar_select %p218, %s219, %s220
    %p224 = pneg %p218
    %p225 = scmp.eq.s32.totalorder %s13, 1
    %p226 = por %p224, %p225
    %p227 = scmp.ne.s32.totalorder %s219, %s222
    %p228 = scmp.eq.s32.totalorder %s13, 0
    %p229 = por %p227, %p228
    %p230 = scmp.ne.s32.totalorder %s219, %s222
    %p231 = scmp.eq.s32.totalorder %s18, 1
    %p232 = por %p230, %p231
    %p233 = scmp.ne.s32.totalorder %s222, %s223
    %p234 = scmp.eq.s32.totalorder %s18, 0
    %p235 = por %p233, %p234
    %p236 = scmp.ne.s32.totalorder %s222, %s223
    %p237 = scmp.eq.s32.totalorder %s19, 1
    %p238 = por %p236, %p237
    %p240 = scmp.ne.s32.totalorder %s223, %s239
    %p241 = scmp.eq.s32.totalorder %s19, 0
    %p242 = por %p240, %p241
    %p243 = scmp.le.s32.totalorder 1, %s13
    %p244 = scmp.lt.s32.totalorder %s13, 3
    %p245 = pnand %p243, %p244
    %p246 = pneg %p245
    // Predicated region
    $region9: #{_c2f_forward_impl.11} parent=5 // pred_check
      _
    $region10: #{_c2f_forward_impl.11} parent=5 // pred_check_branch
      %248 = sbr.rel (%p245) target = $region12
    $region11: #{_c2f_forward_impl.11} parent=5 // pred_region
      %s249 = ssub.s32 %s13, 1
      // Predicated region
      $region13: #{_c2f_forward_impl.11} parent=11 // pred_check
        %p250 = pneg %p155
      $region14: #{_c2f_forward_impl.11} parent=11 // pred_check_branch
        %252 = sbr.rel (%p250) target = $region16
      $region15: #{_c2f_forward_impl.11} parent=11 // pred_region
        %p253 = scmp.lt.s32.totalorder %s23, 0
        %s254 = scalar_select %p253, %s23, 0
        %s255 = smul.addr %s254, 4
        %s256 = scalar_lea.vmem %s4, %s255
      $region16: #{_c2f_forward_impl.11} parent=11 // pred_fallthru
        _
      // Predicated region
      $region17: #{_c2f_forward_impl.11} parent=11 // pred_check
        %p257 = pneg %p181
      $region18: #{_c2f_forward_impl.11} parent=11 // pred_check_branch
        %259 = sbr.rel (%p257) target = $region20
      $region19: #{_c2f_forward_impl.11} parent=11 // pred_region
        %p260 = scmp.lt.s32.totalorder %s23, 0
        %s261 = scalar_select %p260, %s23, 0
        %s262 = scalar_lea.vmem %s5, %s261
      $region20: #{_c2f_forward_impl.11} parent=11 // pred_fallthru
        _
      // Predicated region
      $region21: #{_c2f_forward_impl.11} parent=11 // pred_check
        %p263 = pneg %p207
      $region22: #{_c2f_forward_impl.11} parent=11 // pred_check_branch
        %265 = sbr.rel (%p263) target = $region24
      $region23: #{_c2f_forward_impl.11} parent=11 // pred_region
        %p266 = scmp.lt.s32.totalorder %s23, 0
        %s267 = scalar_select %p266, %s23, 0
        %s268 = scalar_lea.vmem %s6, %s267
      $region24: #{_c2f_forward_impl.11} parent=11 // pred_fallthru
        _
    $region12: #{_c2f_forward_impl.11} parent=5 // pred_fallthru
      _
    %p269 = scmp.lt.s32.totalorder %s13, 2
    // Predicated region
    $region25: #{_c2f_forward_impl.11} parent=5 // pred_check
      %p270 = pneg %p269
    $region26: #{_c2f_forward_impl.11} parent=5 // pred_check_branch
      %272 = sbr.rel (%p270) target = $region28
    $region27: #{_c2f_forward_impl.11} parent=5 // pred_region
      // Predicated region
      $region29: #{_c2f_forward_impl.11} parent=27 // pred_check
        %p273 = pneg %p45
      $region30: #{_c2f_forward_impl.11} parent=27 // pred_check_branch
        %275 = sbr.rel (%p273) target = $region32
      $region31: #{_c2f_forward_impl.11} parent=27 // pred_region
        %s276 = smul.u32 32, %s20
        %p277 = scmp.lt.s32.totalorder %s276, 63
        %s278 = scalar_select %p277, %s276, 63
        %s279 = smul.addr %s278, 4
        %s280 = scalar_lea.vmem %s0, %s279
        %s281 = smul.u32 32, %s20
      $region32: #{_c2f_forward_impl.11} parent=27 // pred_fallthru
        _
      // Predicated region
      $region33: #{_c2f_forward_impl.11} parent=27 // pred_check
        %p282 = pneg %p71
      $region34: #{_c2f_forward_impl.11} parent=27 // pred_check_branch
        %284 = sbr.rel (%p282) target = $region36
      $region35: #{_c2f_forward_impl.11} parent=27 // pred_region
        %s285 = smul.u32 32, %s20
        %p286 = scmp.lt.s32.totalorder %s285, 63
        %s287 = scalar_select %p286, %s285, 63
        %s288 = smul.addr %s287, 4
        %s289 = scalar_lea.vmem %s1, %s288
        %s290 = smul.u32 32, %s20
      $region36: #{_c2f_forward_impl.11} parent=27 // pred_fallthru
        _
      // Predicated region
      $region37: #{_c2f_forward_impl.11} parent=27 // pred_check
        %p291 = pneg %p97
      $region38: #{_c2f_forward_impl.11} parent=27 // pred_check_branch
        %293 = sbr.rel (%p291) target = $region40
      $region39: #{_c2f_forward_impl.11} parent=27 // pred_region
        %s294 = smul.u32 32, %s20
        %p295 = scmp.lt.s32.totalorder %s294, 63
        %s296 = scalar_select %p295, %s294, 63
        %s297 = smul.addr %s296, 4
        %s298 = scalar_lea.vmem %s2, %s297
        %s299 = smul.u32 32, %s20
      $region40: #{_c2f_forward_impl.11} parent=27 // pred_fallthru
        _
      // Predicated region
      $region41: #{_c2f_forward_impl.11} parent=27 // pred_check
        %p300 = pneg %p123
      $region42: #{_c2f_forward_impl.11} parent=27 // pred_check_branch
        %302 = sbr.rel (%p300) target = $region44
      $region43: #{_c2f_forward_impl.11} parent=27 // pred_region
        %s303 = smul.u32 32, %s20
        %p304 = scmp.lt.s32.totalorder %s303, 63
        %s305 = scalar_select %p304, %s303, 63
        %s306 = smul.addr %s305, 4
        %s307 = scalar_lea.vmem %s3, %s306
        %s308 = smul.u32 32, %s20
      $region44: #{_c2f_forward_impl.11} parent=27 // pred_fallthru
        _
    $region28: #{_c2f_forward_impl.11} parent=5 // pred_fallthru
      _
    %p309 = scmp.le.s32.totalorder 1, %s13
    %p310 = scmp.lt.s32.totalorder %s13, 3
    %p311 = pnand %p309, %p310
    %p312 = pneg %p311
    // Predicated region
    $region45: #{_c2f_forward_impl.11} parent=5 // pred_check
      _
    $region46: #{_c2f_forward_impl.11} parent=5 // pred_check_branch
      %314 = sbr.rel (%p311) target = $region48
    $region47: #{_c2f_forward_impl.11} parent=5 // pred_region
      %s315 = ssub.s32 %s13, 1
      %s316 = smul.u32 32, %s22
      %p317 = scmp.lt.s32.totalorder %s316, 63
      %s318 = scalar_select %p317, %s316, 63
      %s319 = smul.addr %s318, 4
      %s320 = scalar_lea.vmem %s0, %s319
      %p321 = pneg %p51
      %p322 = pneg %p48
      %s323 = smul.u32 32, %s22
      %p324 = scmp.lt.s32.totalorder %s323, 63
      %s325 = scalar_select %p324, %s323, 63
      %s326 = smul.addr %s325, 4
      %s327 = scalar_lea.vmem %s1, %s326
      %p328 = pneg %p77
      %p329 = pneg %p74
      %s330 = smul.u32 32, %s22
      %p331 = scmp.lt.s32.totalorder %s330, 63
      %s332 = scalar_select %p331, %s330, 63
      %s333 = smul.addr %s332, 4
      %s334 = scalar_lea.vmem %s2, %s333
      %p335 = pneg %p103
      %p336 = pneg %p100
      %s337 = smul.u32 32, %s22
      %p338 = scmp.lt.s32.totalorder %s337, 63
      %s339 = scalar_select %p338, %s337, 63
      %s340 = smul.addr %s339, 4
      %s341 = scalar_lea.vmem %s3, %s340
      %p342 = pneg %p129
      %p343 = pneg %p126
      %p344 = scmp.lt.s32.totalorder %s23, 0
      %s345 = scalar_select %p344, %s23, 0
      %s346 = smul.addr %s345, 4
      %s347 = scalar_lea.vmem %s4, %s346
      %p348 = pneg %p155
      %p349 = pneg %p152
      %p350 = scmp.lt.s32.totalorder %s23, 0
      %s351 = scalar_select %p350, %s23, 0
      %s352 = scalar_lea.vmem %s5, %s351
      %p353 = pneg %p181
      %p354 = pneg %p178
      %p355 = scmp.lt.s32.totalorder %s23, 0
      %s356 = scalar_select %p355, %s23, 0
      %s357 = scalar_lea.vmem %s6, %s356
      %p358 = pneg %p207
      %p359 = pneg %p204
      %p360 = pneg %p235
      %p361 = pneg %p232
      %s362 = smul.u32 32, %s22
      %p363 = scmp.lt.s32.totalorder %s362, 63
      %s364 = scalar_select %p363, %s362, 63
      %p365 = scmp.lt.s32.totalorder %s23, 0
      %s366 = scalar_select %p365, %s23, 0
      %s367 = sadd.s32 %s366, %s364
      %s368 = smul.addr %s367, 4
      %s369 = scalar_lea.vmem %s7, %s368
      %s370 = smul.u32 32, %s22
      %p371 = scmp.lt.s32.totalorder %s370, 63
      %s372 = scalar_select %p371, %s370, 63
      %s373 = smul.addr %s372, 4
      %s374 = scalar_lea.vmem %s0, %s373
      %s375 = smul.u32 32, %s22
      %s376 = smul.u32 32, %s22
      %p377 = scmp.lt.s32.totalorder %s376, 63
      %s378 = scalar_select %p377, %s376, 63
      %s379 = smul.addr %s378, 4
      %s380 = scalar_lea.vmem %s1, %s379
      %s381 = smul.u32 32, %s22
      %s382 = smul.u32 32, %s22
      %p383 = scmp.lt.s32.totalorder %s382, 63
      %s384 = scalar_select %p383, %s382, 63
      %s385 = smul.addr %s384, 4
      %s386 = scalar_lea.vmem %s2, %s385
      %s387 = smul.u32 32, %s22
      %s388 = smul.u32 32, %s22
      %p389 = scmp.lt.s32.totalorder %s388, 63
      %s390 = scalar_select %p389, %s388, 63
      %s391 = smul.addr %s390, 4
      %s392 = scalar_lea.vmem %s3, %s391
      %s393 = smul.u32 32, %s22
      %p394 = scmp.lt.s32.totalorder %s23, 0
      %s395 = scalar_select %p394, %s23, 0
      %s396 = smul.addr %s395, 4
      %s397 = scalar_lea.vmem %s4, %s396
      %p398 = scmp.lt.s32.totalorder %s23, 0
      %s399 = scalar_select %p398, %s23, 0
      %s400 = scalar_lea.vmem %s5, %s399
      %p401 = scmp.lt.s32.totalorder %s23, 0
      %s402 = scalar_select %p401, %s23, 0
      %s403 = scalar_lea.vmem %s6, %s402
      %s404 = smul.u32 32, %s22
      %p405 = scmp.lt.s32.totalorder %s404, 63
      %s406 = scalar_select %p405, %s404, 63
      %p407 = scmp.lt.s32.totalorder %s23, 0
      %s408 = scalar_select %p407, %s23, 0
      %s409 = sadd.s32 %s408, %s406
      %s410 = smul.addr %s409, 4
      %s411 = scalar_lea.vmem %s7, %s410
      %s412 = smul.u32 32, %s22
      %v414 = vld [vmem:[%s374] sm:$0xf]
      %v415 = vld [vmem:[%s374 + $0x4] sm:$0xf]
      %v416 = vld [vmem:[%s374 + $0x8] sm:$0xf]
      %v417 = vld [vmem:[%s374 + $0xc] sm:$0xf]
      %v418 = vld [vmem:[%s374 + $0x10] sm:$0xf]
      %v419 = vld [vmem:[%s374 + $0x14] sm:$0xf]
      %v420 = vld [vmem:[%s374 + $0x18] sm:$0xf]
      %v421 = vld [vmem:[%s374 + $0x1c] sm:$0xf]
      %v422 = vld [vmem:[%s374 + $0x20] sm:$0xf]
      %v423 = vld [vmem:[%s374 + $0x24] sm:$0xf]
      %v424 = vld [vmem:[%s374 + $0x28] sm:$0xf]
      %v425 = vld [vmem:[%s374 + $0x2c] sm:$0xf]
      %v426 = vld [vmem:[%s374 + $0x30] sm:$0xf]
      %v427 = vld [vmem:[%s374 + $0x34] sm:$0xf]
      %v428 = vld [vmem:[%s374 + $0x38] sm:$0xf]
      %v429 = vld [vmem:[%s374 + $0x3c] sm:$0xf]
      %v430 = vld [vmem:[%s374 + $0x40] sm:$0xf]
      %v431 = vld [vmem:[%s374 + $0x44] sm:$0xf]
      %v432 = vld [vmem:[%s374 + $0x48] sm:$0xf]
      %v433 = vld [vmem:[%s374 + $0x4c] sm:$0xf]
      %v434 = vld [vmem:[%s374 + $0x50] sm:$0xf]
      %v435 = vld [vmem:[%s374 + $0x54] sm:$0xf]
      %v436 = vld [vmem:[%s374 + $0x58] sm:$0xf]
      %v437 = vld [vmem:[%s374 + $0x5c] sm:$0xf]
      %v438 = vld [vmem:[%s374 + $0x60] sm:$0xf]
      %v439 = vld [vmem:[%s374 + $0x64] sm:$0xf]
      %v440 = vld [vmem:[%s374 + $0x68] sm:$0xf]
      %v441 = vld [vmem:[%s374 + $0x6c] sm:$0xf]
      %v442 = vld [vmem:[%s374 + $0x70] sm:$0xf]
      %v443 = vld [vmem:[%s374 + $0x74] sm:$0xf]
      %v444 = vld [vmem:[%s374 + $0x78] sm:$0xf]
      %v445 = vld [vmem:[%s374 + $0x7c] sm:$0xf]
      %v446 = vld [vmem:[%s397] sm:$0xf]
      %v447 = vld [vmem:[%s397 + $0x4] sm:$0xf]
      %v448 = vld [vmem:[%s397 + $0x8] sm:$0xf]
      %v449 = vld [vmem:[%s397 + $0xc] sm:$0xf]
      %v450 = vld [vmem:[%s397 + $0x10] sm:$0xf]
      %v451 = vld [vmem:[%s397 + $0x14] sm:$0xf]
      %v452 = vld [vmem:[%s397 + $0x18] sm:$0xf]
      %v453 = vld [vmem:[%s397 + $0x1c] sm:$0xf]
      %v454 = vld [vmem:[%s397 + $0x20] sm:$0xf]
      %v455 = vld [vmem:[%s397 + $0x24] sm:$0xf]
      %v456 = vld [vmem:[%s397 + $0x28] sm:$0xf]
      %v457 = vld [vmem:[%s397 + $0x2c] sm:$0xf]
      %v458 = vld [vmem:[%s397 + $0x30] sm:$0xf]
      %v459 = vld [vmem:[%s397 + $0x34] sm:$0xf]
      %v460 = vld [vmem:[%s397 + $0x38] sm:$0xf]
      %v461 = vld [vmem:[%s397 + $0x3c] sm:$0xf]
      %v462 = vld [vmem:[%s380] sm:$0xf]
      %v463 = vld [vmem:[%s380 + $0x4] sm:$0xf]
      %v464 = vld [vmem:[%s380 + $0x8] sm:$0xf]
      %v465 = vld [vmem:[%s380 + $0xc] sm:$0xf]
      %v466 = vld [vmem:[%s380 + $0x10] sm:$0xf]
      %v467 = vld [vmem:[%s380 + $0x14] sm:$0xf]
      %v468 = vld [vmem:[%s380 + $0x18] sm:$0xf]
      %v469 = vld [vmem:[%s380 + $0x1c] sm:$0xf]
      %v470 = vld [vmem:[%s380 + $0x20] sm:$0xf]
      %v471 = vld [vmem:[%s380 + $0x24] sm:$0xf]
      %v472 = vld [vmem:[%s380 + $0x28] sm:$0xf]
      %v473 = vld [vmem:[%s380 + $0x2c] sm:$0xf]
      %v474 = vld [vmem:[%s380 + $0x30] sm:$0xf]
      %v475 = vld [vmem:[%s380 + $0x34] sm:$0xf]
      %v476 = vld [vmem:[%s380 + $0x38] sm:$0xf]
      %v477 = vld [vmem:[%s380 + $0x3c] sm:$0xf]
      %v478 = vld [vmem:[%s380 + $0x40] sm:$0xf]
      %v479 = vld [vmem:[%s380 + $0x44] sm:$0xf]
      %v480 = vld [vmem:[%s380 + $0x48] sm:$0xf]
      %v481 = vld [vmem:[%s380 + $0x4c] sm:$0xf]
      %v482 = vld [vmem:[%s380 + $0x50] sm:$0xf]
      %v483 = vld [vmem:[%s380 + $0x54] sm:$0xf]
      %v484 = vld [vmem:[%s380 + $0x58] sm:$0xf]
      %v485 = vld [vmem:[%s380 + $0x5c] sm:$0xf]
      %v486 = vld [vmem:[%s380 + $0x60] sm:$0xf]
      %v487 = vld [vmem:[%s380 + $0x64] sm:$0xf]
      %v488 = vld [vmem:[%s380 + $0x68] sm:$0xf]
      %v489 = vld [vmem:[%s380 + $0x6c] sm:$0xf]
      %v490 = vld [vmem:[%s380 + $0x70] sm:$0xf]
      %v491 = vld [vmem:[%s380 + $0x74] sm:$0xf]
      %v492 = vld [vmem:[%s380 + $0x78] sm:$0xf]
      %v493 = vld [vmem:[%s380 + $0x7c] sm:$0xf]
      %s494 = scalar_lea.vmem %s397, 64
      %v495 = vld [vmem:[%s494] sm:$0xf]
      %v496 = vld [vmem:[%s494 + $0x4] sm:$0xf]
      %v497 = vld [vmem:[%s494 + $0x8] sm:$0xf]
      %v498 = vld [vmem:[%s494 + $0xc] sm:$0xf]
      %v499 = vld [vmem:[%s494 + $0x10] sm:$0xf]
      %v500 = vld [vmem:[%s494 + $0x14] sm:$0xf]
      %v501 = vld [vmem:[%s494 + $0x18] sm:$0xf]
      %v502 = vld [vmem:[%s494 + $0x1c] sm:$0xf]
      %v503 = vld [vmem:[%s494 + $0x20] sm:$0xf]
      %v504 = vld [vmem:[%s494 + $0x24] sm:$0xf]
      %v505 = vld [vmem:[%s494 + $0x28] sm:$0xf]
      %v506 = vld [vmem:[%s494 + $0x2c] sm:$0xf]
      %v507 = vld [vmem:[%s494 + $0x30] sm:$0xf]
      %v508 = vld [vmem:[%s494 + $0x34] sm:$0xf]
      %v509 = vld [vmem:[%s494 + $0x38] sm:$0xf]
      %v510 = vld [vmem:[%s494 + $0x3c] sm:$0xf]
      %v543 = vunpack.c.l.b16 %v462
      %v544 = vunpack.c.l.b16 %v463
      %v545 = vunpack.c.l.b16 %v464
      %v546 = vunpack.c.l.b16 %v465
      %v547 = vunpack.c.l.b16 %v466
      %v548 = vunpack.c.l.b16 %v467
      %v549 = vunpack.c.l.b16 %v468
      %v550 = vunpack.c.l.b16 %v469
      %v551 = vunpack.c.l.b16 %v470
      %v552 = vunpack.c.l.b16 %v471
      %v553 = vunpack.c.l.b16 %v472
      %v554 = vunpack.c.l.b16 %v473
      %v555 = vunpack.c.l.b16 %v474
      %v556 = vunpack.c.l.b16 %v475
      %v557 = vunpack.c.l.b16 %v476
      %v558 = vunpack.c.l.b16 %v477
      %v559 = vunpack.c.l.b16 %v478
      %v560 = vunpack.c.l.b16 %v479
      %v561 = vunpack.c.l.b16 %v480
      %v562 = vunpack.c.l.b16 %v481
      %v563 = vunpack.c.l.b16 %v482
      %v564 = vunpack.c.l.b16 %v483
      %v565 = vunpack.c.l.b16 %v484
      %v566 = vunpack.c.l.b16 %v485
      %v567 = vunpack.c.l.b16 %v486
      %v568 = vunpack.c.l.b16 %v487
      %v569 = vunpack.c.l.b16 %v488
      %v570 = vunpack.c.l.b16 %v489
      %v571 = vunpack.c.l.b16 %v490
      %v572 = vunpack.c.l.b16 %v491
      %v573 = vunpack.c.l.b16 %v492
      %v574 = vunpack.c.l.b16 %v493
      %v575 = vpack.c.b16 %v544, %v543
      %v576 = vpack.c.b16 %v546, %v545
      %v577 = vpack.c.b16 %v548, %v547
      %v578 = vpack.c.b16 %v550, %v549
      %v579 = vpack.c.b16 %v552, %v551
      %v580 = vpack.c.b16 %v554, %v553
      %v581 = vpack.c.b16 %v556, %v555
      %v582 = vpack.c.b16 %v558, %v557
      %v583 = vpack.c.b16 %v560, %v559
      %v584 = vpack.c.b16 %v562, %v561
      %v585 = vpack.c.b16 %v564, %v563
      %v586 = vpack.c.b16 %v566, %v565
      %v587 = vpack.c.b16 %v568, %v567
      %v588 = vpack.c.b16 %v570, %v569
      %v589 = vpack.c.b16 %v572, %v571
      %v590 = vpack.c.b16 %v574, %v573
      %v623 = vunpack.c.l.b16 %v495
      %v624 = vunpack.c.l.b16 %v496
      %v625 = vunpack.c.l.b16 %v497
      %v626 = vunpack.c.l.b16 %v498
      %v627 = vunpack.c.l.b16 %v499
      %v628 = vunpack.c.l.b16 %v500
      %v629 = vunpack.c.l.b16 %v501
      %v630 = vunpack.c.l.b16 %v502
      %v631 = vunpack.c.l.b16 %v503
      %v632 = vunpack.c.l.b16 %v504
      %v633 = vunpack.c.l.b16 %v505
      %v634 = vunpack.c.l.b16 %v506
      %v635 = vunpack.c.l.b16 %v507
      %v636 = vunpack.c.l.b16 %v508
      %v637 = vunpack.c.l.b16 %v509
      %v638 = vunpack.c.l.b16 %v510
      %v639 = vpack.c.b16 %v624, %v623
      %v640 = vpack.c.b16 %v626, %v625
      %v641 = vpack.c.b16 %v628, %v627
      %v642 = vpack.c.b16 %v630, %v629
      %v643 = vpack.c.b16 %v632, %v631
      %v644 = vpack.c.b16 %v634, %v633
      %v645 = vpack.c.b16 %v636, %v635
      %v646 = vpack.c.b16 %v638, %v637
      %655 = vmatprep.subr.bf16.mxu0 0
      %656 = vmatpush1.bf16.msra.mxu0 %v639
      %657 = vmatprep.subr.bf16.mxu0 0
      %658 = vmatpush1.bf16.msra.mxu0 %v640
      %659 = vmatprep.subr.bf16.mxu0 0
      %660 = vmatpush1.bf16.msra.mxu0 %v641
      %661 = vmatprep.subr.bf16.mxu0 0
      %662 = vmatpush1.bf16.msra.mxu0 %v642
      %663 = vmatprep.subr.bf16.mxu0 0
      %664 = vmatpush1.bf16.msra.mxu0 %v643
      %665 = vmatprep.subr.bf16.mxu0 0
      %666 = vmatpush1.bf16.msra.mxu0 %v644
      %667 = vmatprep.subr.bf16.mxu0 0
      %668 = vmatpush1.bf16.msra.mxu0 %v645
      %669 = vmatprep.subr.bf16.mxu0 0
      %670 = vmatpush1.bf16.msra.mxu0 %v646
      %671 = vmatprep.subr.bf16.mxu0 0
      %672 = vmatpush1.bf16.msra.mxu0 0
      %673 = vmatprep.subr.bf16.mxu0 0
      %674 = vmatpush1.bf16.msra.mxu0 0
      %675 = vmatprep.subr.bf16.mxu0 0
      %676 = vmatpush1.bf16.msra.mxu0 0
      %677 = vmatprep.subr.bf16.mxu0 0
      %678 = vmatpush1.bf16.msra.mxu0 0
      %679 = vmatprep.subr.bf16.mxu0 0
      %680 = vmatpush1.bf16.msra.mxu0 0
      %681 = vmatprep.subr.bf16.mxu0 0
      %682 = vmatpush1.bf16.msra.mxu0 0
      %683 = vmatprep.subr.bf16.mxu0 0
      %684 = vmatpush1.bf16.msra.mxu0 0
      %685 = vmatprep.subr.bf16.mxu0 0
      %686 = vmatpush1.bf16.msra.mxu0 0
      %687 = vmatprep.mubr.bf16.mxu0 0
      %688 = vmatmul.mubr.bf16.gmra.mrb[0].mxu0 %v575
      %v689 = vpop.f32.mrb[0].mxu0
      %v690 = vadd.f32 0.0, %v689
      %v691 = vpop.f32.mrb[0].mxu0
      %v692 = vpop.f32.mrb[0].mxu0
      %v693 = vadd.f32 0.0, %v692
      %v694 = vpop.f32.mrb[0].mxu0
      %695 = vmatprep.mubr.bf16.mxu0 0
      %696 = vmatmul.mubr.bf16.gmra.mrb[0].mxu0 %v576
      %v697 = vpop.f32.mrb[0].mxu0
      %v698 = vadd.f32 0.0, %v697
      %v699 = vpop.f32.mrb[0].mxu0
      %v700 = vpop.f32.mrb[0].mxu0
      %v701 = vadd.f32 0.0, %v700
      %v702 = vpop.f32.mrb[0].mxu0
      %703 = vmatprep.mubr.bf16.mxu0 0
      %704 = vmatmul.mubr.bf16.gmra.mrb[0].mxu0 %v577
      %v705 = vpop.f32.mrb[0].mxu0
      %v706 = vadd.f32 0.0, %v705
      %v707 = vpop.f32.mrb[0].mxu0
      %v708 = vpop.f32.mrb[0].mxu0
      %v709 = vadd.f32 0.0, %v708
      %v710 = vpop.f32.mrb[0].mxu0
      %711 = vmatprep.mubr.bf16.mxu0 0
      %712 = vmatmul.mubr.bf16.gmra.mrb[0].mxu0 %v578
      %v713 = vpop.f32.mrb[0].mxu0
      %v714 = vadd.f32 0.0, %v713
      %v715 = vpop.f32.mrb[0].mxu0
      %v716 = vpop.f32.mrb[0].mxu0
      %v717 = vadd.f32 0.0, %v716
      %v718 = vpop.f32.mrb[0].mxu0
      %719 = vmatprep.mubr.bf16.mxu0 0
      %720 = vmatmul.mubr.bf16.gmra.mrb[0].mxu0 %v579
      %v721 = vpop.f32.mrb[0].mxu0
      %v722 = vadd.f32 0.0, %v721
      %v723 = vpop.f32.mrb[0].mxu0
      %v724 = vpop.f32.mrb[0].mxu0
      %v725 = vadd.f32 0.0, %v724
      %v726 = vpop.f32.mrb[0].mxu0
      %727 = vmatprep.mubr.bf16.mxu0 0
      %728 = vmatmul.mubr.bf16.gmra.mrb[0].mxu0 %v580
      %v729 = vpop.f32.mrb[0].mxu0
      %v730 = vadd.f32 0.0, %v729
      %v731 = vpop.f32.mrb[0].mxu0
      %v732 = vpop.f32.mrb[0].mxu0
      %v733 = vadd.f32 0.0, %v732
      %v734 = vpop.f32.mrb[0].mxu0
      %735 = vmatprep.mubr.bf16.mxu0 0
      %736 = vmatmul.mubr.bf16.gmra.mrb[0].mxu0 %v581
      %v737 = vpop.f32.mrb[0].mxu0
      %v738 = vadd.f32 0.0, %v737
      %v739 = vpop.f32.mrb[0].mxu0
      %v740 = vpop.f32.mrb[0].mxu0
      %v741 = vadd.f32 0.0, %v740
      %v742 = vpop.f32.mrb[0].mxu0
      %743 = vmatprep.mubr.bf16.mxu0 0
      %744 = vmatmul.mubr.bf16.gmra.mrb[0].mxu0 %v582
      %v745 = vpop.f32.mrb[0].mxu0
      %v746 = vadd.f32 0.0, %v745
      %v747 = vpop.f32.mrb[0].mxu0
      %v748 = vpop.f32.mrb[0].mxu0
      %v749 = vadd.f32 0.0, %v748
      %v750 = vpop.f32.mrb[0].mxu0
      %751 = vmatprep.mubr.bf16.mxu0 0
      %752 = vmatmul.mubr.bf16.gmra.mrb[0].mxu0 %v583
      %v753 = vpop.f32.mrb[0].mxu0
      %v754 = vadd.f32 0.0, %v753
      %v755 = vpop.f32.mrb[0].mxu0
      %v756 = vpop.f32.mrb[0].mxu0
      %v757 = vadd.f32 0.0, %v756
      %v758 = vpop.f32.mrb[0].mxu0
      %759 = vmatprep.mubr.bf16.mxu0 0
      %760 = vmatmul.mubr.bf16.gmra.mrb[0].mxu0 %v584
      %v761 = vpop.f32.mrb[0].mxu0
      %v762 = vadd.f32 0.0, %v761
      %v763 = vpop.f32.mrb[0].mxu0
      %v764 = vpop.f32.mrb[0].mxu0
      %v765 = vadd.f32 0.0, %v764
      %v766 = vpop.f32.mrb[0].mxu0
      %767 = vmatprep.mubr.bf16.mxu0 0
      %768 = vmatmul.mubr.bf16.gmra.mrb[0].mxu0 %v585
      %v769 = vpop.f32.mrb[0].mxu0
      %v770 = vadd.f32 0.0, %v769
      %v771 = vpop.f32.mrb[0].mxu0
      %v772 = vpop.f32.mrb[0].mxu0
      %v773 = vadd.f32 0.0, %v772
      %v774 = vpop.f32.mrb[0].mxu0
      %775 = vmatprep.mubr.bf16.mxu0 0
      %776 = vmatmul.mubr.bf16.gmra.mrb[0].mxu0 %v586
      %v777 = vpop.f32.mrb[0].mxu0
      %v778 = vadd.f32 0.0, %v777
      %v779 = vpop.f32.mrb[0].mxu0
      %v780 = vpop.f32.mrb[0].mxu0
      %v781 = vadd.f32 0.0, %v780
      %v782 = vpop.f32.mrb[0].mxu0
      %783 = vmatprep.mubr.bf16.mxu0 0
      %784 = vmatmul.mubr.bf16.gmra.mrb[0].mxu0 %v587
      %v785 = vpop.f32.mrb[0].mxu0
      %v786 = vadd.f32 0.0, %v785
      %v787 = vpop.f32.mrb[0].mxu0
      %v788 = vpop.f32.mrb[0].mxu0
      %v789 = vadd.f32 0.0, %v788
      %v790 = vpop.f32.mrb[0].mxu0
      %791 = vmatprep.mubr.bf16.mxu0 0
      %792 = vmatmul.mubr.bf16.gmra.mrb[0].mxu0 %v588
      %v793 = vpop.f32.mrb[0].mxu0
      %v794 = vadd.f32 0.0, %v793
      %v795 = vpop.f32.mrb[0].mxu0
      %v796 = vpop.f32.mrb[0].mxu0
      %v797 = vadd.f32 0.0, %v796
      %v798 = vpop.f32.mrb[0].mxu0
      %799 = vmatprep.mubr.bf16.mxu0 0
      %800 = vmatmul.mubr.bf16.gmra.mrb[0].mxu0 %v589
      %v801 = vpop.f32.mrb[0].mxu0
      %v802 = vadd.f32 0.0, %v801
      %v803 = vpop.f32.mrb[0].mxu0
      %v804 = vpop.f32.mrb[0].mxu0
      %v805 = vadd.f32 0.0, %v804
      %v806 = vpop.f32.mrb[0].mxu0
      %807 = vmatprep.mubr.bf16.mxu0 0
      %808 = vmatmul.mubr.bf16.gmra.mrb[0].mxu0 %v590
      %v809 = vpop.f32.mrb[0].mxu0
      %v810 = vadd.f32 0.0, %v809
      %v811 = vpop.f32.mrb[0].mxu0
      %v812 = vpop.f32.mrb[0].mxu0
      %v813 = vadd.f32 0.0, %v812
      %v814 = vpop.f32.mrb[0].mxu0
      %815 = vdwg.mxu0
      %v848 = vunpack.c.l.b16 %v414
      %v849 = vunpack.c.l.b16 %v415
      %v850 = vunpack.c.l.b16 %v416
      %v851 = vunpack.c.l.b16 %v417
      %v852 = vunpack.c.l.b16 %v418
      %v853 = vunpack.c.l.b16 %v419
      %v854 = vunpack.c.l.b16 %v420
      %v855 = vunpack.c.l.b16 %v421
      %v856 = vunpack.c.l.b16 %v422
      %v857 = vunpack.c.l.b16 %v423
      %v858 = vunpack.c.l.b16 %v424
      %v859 = vunpack.c.l.b16 %v425
      %v860 = vunpack.c.l.b16 %v426
      %v861 = vunpack.c.l.b16 %v427
      %v862 = vunpack.c.l.b16 %v428
      %v863 = vunpack.c.l.b16 %v429
      %v864 = vunpack.c.l.b16 %v430
      %v865 = vunpack.c.l.b16 %v431
      %v866 = vunpack.c.l.b16 %v432
      %v867 = vunpack.c.l.b16 %v433
      %v868 = vunpack.c.l.b16 %v434
      %v869 = vunpack.c.l.b16 %v435
      %v870 = vunpack.c.l.b16 %v436
      %v871 = vunpack.c.l.b16 %v437
      %v872 = vunpack.c.l.b16 %v438
      %v873 = vunpack.c.l.b16 %v439
      %v874 = vunpack.c.l.b16 %v440
      %v875 = vunpack.c.l.b16 %v441
      %v876 = vunpack.c.l.b16 %v442
      %v877 = vunpack.c.l.b16 %v443
      %v878 = vunpack.c.l.b16 %v444
      %v879 = vunpack.c.l.b16 %v445
      %v880 = vpack.c.b16 %v849, %v848
      %v881 = vpack.c.b16 %v851, %v850
      %v882 = vpack.c.b16 %v853, %v852
      %v883 = vpack.c.b16 %v855, %v854
      %v884 = vpack.c.b16 %v857, %v856
      %v885 = vpack.c.b16 %v859, %v858
      %v886 = vpack.c.b16 %v861, %v860
      %v887 = vpack.c.b16 %v863, %v862
      %v888 = vpack.c.b16 %v865, %v864
      %v889 = vpack.c.b16 %v867, %v866
      %v890 = vpack.c.b16 %v869, %v868
      %v891 = vpack.c.b16 %v871, %v870
      %v892 = vpack.c.b16 %v873, %v872
      %v893 = vpack.c.b16 %v875, %v874
      %v894 = vpack.c.b16 %v877, %v876
      %v895 = vpack.c.b16 %v879, %v878
      %v928 = vunpack.c.l.b16 %v446
      %v929 = vunpack.c.l.b16 %v447
      %v930 = vunpack.c.l.b16 %v448
      %v931 = vunpack.c.l.b16 %v449
      %v932 = vunpack.c.l.b16 %v450
      %v933 = vunpack.c.l.b16 %v451
      %v934 = vunpack.c.l.b16 %v452
      %v935 = vunpack.c.l.b16 %v453
      %v936 = vunpack.c.l.b16 %v454
      %v937 = vunpack.c.l.b16 %v455
      %v938 = vunpack.c.l.b16 %v456
      %v939 = vunpack.c.l.b16 %v457
      %v940 = vunpack.c.l.b16 %v458
      %v941 = vunpack.c.l.b16 %v459
      %v942 = vunpack.c.l.b16 %v460
      %v943 = vunpack.c.l.b16 %v461
      %v944 = vpack.c.b16 %v929, %v928
      %v945 = vpack.c.b16 %v931, %v930
      %v946 = vpack.c.b16 %v933, %v932
      %v947 = vpack.c.b16 %v935, %v934
      %v948 = vpack.c.b16 %v937, %v936
      %v949 = vpack.c.b16 %v939, %v938
      %v950 = vpack.c.b16 %v941, %v940
      %v951 = vpack.c.b16 %v943, %v942
      %960 = vmatprep.subr.bf16.mxu0 0
      %961 = vmatpush1.bf16.msra.mxu0 %v944
      %962 = vmatprep.subr.bf16.mxu0 0
      %963 = vmatpush1.bf16.msra.mxu0 %v945
      %964 = vmatprep.subr.bf16.mxu0 0
      %965 = vmatpush1.bf16.msra.mxu0 %v946
      %966 = vmatprep.subr.bf16.mxu0 0
      %967 = vmatpush1.bf16.msra.mxu0 %v947
      %968 = vmatprep.subr.bf16.mxu0 0
      %969 = vmatpush1.bf16.msra.mxu0 %v948
      %970 = vmatprep.subr.bf16.mxu0 0
      %971 = vmatpush1.bf16.msra.mxu0 %v949
      %972 = vmatprep.subr.bf16.mxu0 0
      %973 = vmatpush1.bf16.msra.mxu0 %v950
      %974 = vmatprep.subr.bf16.mxu0 0
      %975 = vmatpush1.bf16.msra.mxu0 %v951
      %976 = vmatprep.subr.bf16.mxu0 0
      %977 = vmatpush1.bf16.msra.mxu0 0
      %978 = vmatprep.subr.bf16.mxu0 0
      %979 = vmatpush1.bf16.msra.mxu0 0
      %980 = vmatprep.subr.bf16.mxu0 0
      %981 = vmatpush1.bf16.msra.mxu0 0
      %982 = vmatprep.subr.bf16.mxu0 0
      %983 = vmatpush1.bf16.msra.mxu0 0
      %984 = vmatprep.subr.bf16.mxu0 0
      %985 = vmatpush1.bf16.msra.mxu0 0
      %986 = vmatprep.subr.bf16.mxu0 0
      %987 = vmatpush1.bf16.msra.mxu0 0
      %988 = vmatprep.subr.bf16.mxu0 0
      %989 = vmatpush1.bf16.msra.mxu0 0
      %990 = vmatprep.subr.bf16.mxu0 0
      %991 = vmatpush1.bf16.msra.mxu0 0
      %992 = vmatprep.mubr.bf16.mxu0 0
      %993 = vmatmul.mubr.bf16.gmra.mrb[0].mxu0 %v880
      %v994 = vpop.f32.mrb[0].mxu0
      %v995 = vadd.f32 %v690, %v994
      %v996 = vpop.f32.mrb[0].mxu0
      %v997 = vpop.f32.mrb[0].mxu0
      %v998 = vadd.f32 %v693, %v997
      %v999 = vpop.f32.mrb[0].mxu0
      %1000 = vmatprep.mubr.bf16.mxu0 0
      %1001 = vmatmul.mubr.bf16.gmra.mrb[0].mxu0 %v881
      %v1002 = vpop.f32.mrb[0].mxu0
      %v1003 = vadd.f32 %v698, %v1002
      %v1004 = vpop.f32.mrb[0].mxu0
      %v1005 = vpop.f32.mrb[0].mxu0
      %v1006 = vadd.f32 %v701, %v1005
      %v1007 = vpop.f32.mrb[0].mxu0
      %1008 = vmatprep.mubr.bf16.mxu0 0
      %1009 = vmatmul.mubr.bf16.gmra.mrb[0].mxu0 %v882
      %v1010 = vpop.f32.mrb[0].mxu0
      %v1011 = vadd.f32 %v706, %v1010
      %v1012 = vpop.f32.mrb[0].mxu0
      %v1013 = vpop.f32.mrb[0].mxu0
      %v1014 = vadd.f32 %v709, %v1013
      %v1015 = vpop.f32.mrb[0].mxu0
      %1016 = vmatprep.mubr.bf16.mxu0 0
      %1017 = vmatmul.mubr.bf16.gmra.mrb[0].mxu0 %v883
      %v1018 = vpop.f32.mrb[0].mxu0
      %v1019 = vadd.f32 %v714, %v1018
      %v1020 = vpop.f32.mrb[0].mxu0
      %v1021 = vpop.f32.mrb[0].mxu0
      %v1022 = vadd.f32 %v717, %v1021
      %v1023 = vpop.f32.mrb[0].mxu0
      %1024 = vmatprep.mubr.bf16.mxu0 0
      %1025 = vmatmul.mubr.bf16.gmra.mrb[0].mxu0 %v884
      %v1026 = vpop.f32.mrb[0].mxu0
      %v1027 = vadd.f32 %v722, %v1026
      %v1028 = vpop.f32.mrb[0].mxu0
      %v1029 = vpop.f32.mrb[0].mxu0
      %v1030 = vadd.f32 %v725, %v1029
      %v1031 = vpop.f32.mrb[0].mxu0
      %1032 = vmatprep.mubr.bf16.mxu0 0
      %1033 = vmatmul.mubr.bf16.gmra.mrb[0].mxu0 %v885
      %v1034 = vpop.f32.mrb[0].mxu0
      %v1035 = vadd.f32 %v730, %v1034
      %v1036 = vpop.f32.mrb[0].mxu0
      %v1037 = vpop.f32.mrb[0].mxu0
      %v1038 = vadd.f32 %v733, %v1037
      %v1039 = vpop.f32.mrb[0].mxu0
      %1040 = vmatprep.mubr.bf16.mxu0 0
      %1041 = vmatmul.mubr.bf16.gmra.mrb[0].mxu0 %v886
      %v1042 = vpop.f32.mrb[0].mxu0
      %v1043 = vadd.f32 %v738, %v1042
      %v1044 = vpop.f32.mrb[0].mxu0
      %v1045 = vpop.f32.mrb[0].mxu0
      %v1046 = vadd.f32 %v741, %v1045
      %v1047 = vpop.f32.mrb[0].mxu0
      %1048 = vmatprep.mubr.bf16.mxu0 0
      %1049 = vmatmul.mubr.bf16.gmra.mrb[0].mxu0 %v887
      %v1050 = vpop.f32.mrb[0].mxu0
      %v1051 = vadd.f32 %v746, %v1050
      %v1052 = vpop.f32.mrb[0].mxu0
      %v1053 = vpop.f32.mrb[0].mxu0
      %v1054 = vadd.f32 %v749, %v1053
      %v1055 = vpop.f32.mrb[0].mxu0
      %1056 = vmatprep.mubr.bf16.mxu0 0
      %1057 = vmatmul.mubr.bf16.gmra.mrb[0].mxu0 %v888
      %v1058 = vpop.f32.mrb[0].mxu0
      %v1059 = vadd.f32 %v754, %v1058
      %v1060 = vpop.f32.mrb[0].mxu0
      %v1061 = vpop.f32.mrb[0].mxu0
      %v1062 = vadd.f32 %v757, %v1061
      %v1063 = vpop.f32.mrb[0].mxu0
      %1064 = vmatprep.mubr.bf16.mxu0 0
      %1065 = vmatmul.mubr.bf16.gmra.mrb[0].mxu0 %v889
      %v1066 = vpop.f32.mrb[0].mxu0
      %v1067 = vadd.f32 %v762, %v1066
      %v1068 = vpop.f32.mrb[0].mxu0
      %v1069 = vpop.f32.mrb[0].mxu0
      %v1070 = vadd.f32 %v765, %v1069
      %v1071 = vpop.f32.mrb[0].mxu0
      %1072 = vmatprep.mubr.bf16.mxu0 0
      %1073 = vmatmul.mubr.bf16.gmra.mrb[0].mxu0 %v890
      %v1074 = vpop.f32.mrb[0].mxu0
      %v1075 = vadd.f32 %v770, %v1074
      %v1076 = vpop.f32.mrb[0].mxu0
      %v1077 = vpop.f32.mrb[0].mxu0
      %v1078 = vadd.f32 %v773, %v1077
      %v1079 = vpop.f32.mrb[0].mxu0
      %1080 = vmatprep.mubr.bf16.mxu0 0
      %1081 = vmatmul.mubr.bf16.gmra.mrb[0].mxu0 %v891
      %v1082 = vpop.f32.mrb[0].mxu0
      %v1083 = vadd.f32 %v778, %v1082
      %v1084 = vpop.f32.mrb[0].mxu0
      %v1085 = vpop.f32.mrb[0].mxu0
      %v1086 = vadd.f32 %v781, %v1085
      %v1087 = vpop.f32.mrb[0].mxu0
      %1088 = vmatprep.mubr.bf16.mxu0 0
      %1089 = vmatmul.mubr.bf16.gmra.mrb[0].mxu0 %v892
      %v1090 = vpop.f32.mrb[0].mxu0
      %v1091 = vadd.f32 %v786, %v1090
      %v1092 = vpop.f32.mrb[0].mxu0
      %v1093 = vpop.f32.mrb[0].mxu0
      %v1094 = vadd.f32 %v789, %v1093
      %v1095 = vpop.f32.mrb[0].mxu0
      %1096 = vmatprep.mubr.bf16.mxu0 0
      %1097 = vmatmul.mubr.bf16.gmra.mrb[0].mxu0 %v893
      %v1098 = vpop.f32.mrb[0].mxu0
      %v1099 = vadd.f32 %v794, %v1098
      %v1100 = vpop.f32.mrb[0].mxu0
      %v1101 = vpop.f32.mrb[0].mxu0
      %v1102 = vadd.f32 %v797, %v1101
      %v1103 = vpop.f32.mrb[0].mxu0
      %1104 = vmatprep.mubr.bf16.mxu0 0
      %1105 = vmatmul.mubr.bf16.gmra.mrb[0].mxu0 %v894
      %v1106 = vpop.f32.mrb[0].mxu0
      %v1107 = vadd.f32 %v802, %v1106
      %v1108 = vpop.f32.mrb[0].mxu0
      %v1109 = vpop.f32.mrb[0].mxu0
      %v1110 = vadd.f32 %v805, %v1109
      %v1111 = vpop.f32.mrb[0].mxu0
      %1112 = vmatprep.mubr.bf16.mxu0 0
      %1113 = vmatmul.mubr.bf16.gmra.mrb[0].mxu0 %v895
      %v1114 = vpop.f32.mrb[0].mxu0
      %v1115 = vadd.f32 %v810, %v1114
      %v1116 = vpop.f32.mrb[0].mxu0
      %v1117 = vpop.f32.mrb[0].mxu0
      %v1118 = vadd.f32 %v813, %v1117
      %v1119 = vpop.f32.mrb[0].mxu0
      %1120 = vdwg.mxu0
      %v1121 = vld [vmem:[%s386] sm:$0xf]
      %v1122 = vld [vmem:[%s386 + $0x4] sm:$0xf]
      %v1123 = vld [vmem:[%s386 + $0x8] sm:$0xf]
      %v1124 = vld [vmem:[%s386 + $0xc] sm:$0xf]
      %v1125 = vld [vmem:[%s386 + $0x10] sm:$0xf]
      %v1126 = vld [vmem:[%s386 + $0x14] sm:$0xf]
      %v1127 = vld [vmem:[%s386 + $0x18] sm:$0xf]
      %v1128 = vld [vmem:[%s386 + $0x1c] sm:$0xf]
      %v1129 = vld [vmem:[%s386 + $0x20] sm:$0xf]
      %v1130 = vld [vmem:[%s386 + $0x24] sm:$0xf]
      %v1131 = vld [vmem:[%s386 + $0x28] sm:$0xf]
      %v1132 = vld [vmem:[%s386 + $0x2c] sm:$0xf]
      %v1133 = vld [vmem:[%s386 + $0x30] sm:$0xf]
      %v1134 = vld [vmem:[%s386 + $0x34] sm:$0xf]
      %v1135 = vld [vmem:[%s386 + $0x38] sm:$0xf]
      %v1136 = vld [vmem:[%s386 + $0x3c] sm:$0xf]
      %v1137 = vld [vmem:[%s386 + $0x40] sm:$0xf]
      %v1138 = vld [vmem:[%s386 + $0x44] sm:$0xf]
      %v1139 = vld [vmem:[%s386 + $0x48] sm:$0xf]
      %v1140 = vld [vmem:[%s386 + $0x4c] sm:$0xf]
      %v1141 = vld [vmem:[%s386 + $0x50] sm:$0xf]
      %v1142 = vld [vmem:[%s386 + $0x54] sm:$0xf]
      %v1143 = vld [vmem:[%s386 + $0x58] sm:$0xf]
      %v1144 = vld [vmem:[%s386 + $0x5c] sm:$0xf]
      %v1145 = vld [vmem:[%s386 + $0x60] sm:$0xf]
      %v1146 = vld [vmem:[%s386 + $0x64] sm:$0xf]
      %v1147 = vld [vmem:[%s386 + $0x68] sm:$0xf]
      %v1148 = vld [vmem:[%s386 + $0x6c] sm:$0xf]
      %v1149 = vld [vmem:[%s386 + $0x70] sm:$0xf]
      %v1150 = vld [vmem:[%s386 + $0x74] sm:$0xf]
      %v1151 = vld [vmem:[%s386 + $0x78] sm:$0xf]
      %v1152 = vld [vmem:[%s386 + $0x7c] sm:$0xf]
      %s1153 = scalar_lea.vmem %s397, 128
      %v1154 = vld [vmem:[%s1153] sm:$0xf]
      %v1155 = vld [vmem:[%s1153 + $0x4] sm:$0xf]
      %v1156 = vld [vmem:[%s1153 + $0x8] sm:$0xf]
      %v1157 = vld [vmem:[%s1153 + $0xc] sm:$0xf]
      %v1158 = vld [vmem:[%s1153 + $0x10] sm:$0xf]
      %v1159 = vld [vmem:[%s1153 + $0x14] sm:$0xf]
      %v1160 = vld [vmem:[%s1153 + $0x18] sm:$0xf]
      %v1161 = vld [vmem:[%s1153 + $0x1c] sm:$0xf]
      %v1162 = vld [vmem:[%s1153 + $0x20] sm:$0xf]
      %v1163 = vld [vmem:[%s1153 + $0x24] sm:$0xf]
      %v1164 = vld [vmem:[%s1153 + $0x28] sm:$0xf]
      %v1165 = vld [vmem:[%s1153 + $0x2c] sm:$0xf]
      %v1166 = vld [vmem:[%s1153 + $0x30] sm:$0xf]
      %v1167 = vld [vmem:[%s1153 + $0x34] sm:$0xf]
      %v1168 = vld [vmem:[%s1153 + $0x38] sm:$0xf]
      %v1169 = vld [vmem:[%s1153 + $0x3c] sm:$0xf]
      %v1202 = vunpack.c.l.b16 %v1121
      %v1203 = vunpack.c.l.b16 %v1122
      %v1204 = vunpack.c.l.b16 %v1123
      %v1205 = vunpack.c.l.b16 %v1124
      %v1206 = vunpack.c.l.b16 %v1125
      %v1207 = vunpack.c.l.b16 %v1126
      %v1208 = vunpack.c.l.b16 %v1127
      %v1209 = vunpack.c.l.b16 %v1128
      %v1210 = vunpack.c.l.b16 %v1129
      %v1211 = vunpack.c.l.b16 %v1130
      %v1212 = vunpack.c.l.b16 %v1131
      %v1213 = vunpack.c.l.b16 %v1132
      %v1214 = vunpack.c.l.b16 %v1133
      %v1215 = vunpack.c.l.b16 %v1134
      %v1216 = vunpack.c.l.b16 %v1135
      %v1217 = vunpack.c.l.b16 %v1136
      %v1218 = vunpack.c.l.b16 %v1137
      %v1219 = vunpack.c.l.b16 %v1138
      %v1220 = vunpack.c.l.b16 %v1139
      %v1221 = vunpack.c.l.b16 %v1140
      %v1222 = vunpack.c.l.b16 %v1141
      %v1223 = vunpack.c.l.b16 %v1142
      %v1224 = vunpack.c.l.b16 %v1143
      %v1225 = vunpack.c.l.b16 %v1144
      %v1226 = vunpack.c.l.b16 %v1145
      %v1227 = vunpack.c.l.b16 %v1146
      %v1228 = vunpack.c.l.b16 %v1147
      %v1229 = vunpack.c.l.b16 %v1148
      %v1230 = vunpack.c.l.b16 %v1149
      %v1231 = vunpack.c.l.b16 %v1150
      %v1232 = vunpack.c.l.b16 %v1151
      %v1233 = vunpack.c.l.b16 %v1152
      %v1234 = vpack.c.b16 %v1203, %v1202
      %v1235 = vpack.c.b16 %v1205, %v1204
      %v1236 = vpack.c.b16 %v1207, %v1206
      %v1237 = vpack.c.b16 %v1209, %v1208
      %v1238 = vpack.c.b16 %v1211, %v1210
      %v1239 = vpack.c.b16 %v1213, %v1212
      %v1240 = vpack.c.b16 %v1215, %v1214
      %v1241 = vpack.c.b16 %v1217, %v1216
      %v1242 = vpack.c.b16 %v1219, %v1218
      %v1243 = vpack.c.b16 %v1221, %v1220
      %v1244 = vpack.c.b16 %v1223, %v1222
      %v1245 = vpack.c.b16 %v1225, %v1224
      %v1246 = vpack.c.b16 %v1227, %v1226
      %v1247 = vpack.c.b16 %v1229, %v1228
      %v1248 = vpack.c.b16 %v1231, %v1230
      %v1249 = vpack.c.b16 %v1233, %v1232
      %v1282 = vunpack.c.l.b16 %v1154
      %v1283 = vunpack.c.l.b16 %v1155
      %v1284 = vunpack.c.l.b16 %v1156
      %v1285 = vunpack.c.l.b16 %v1157
      %v1286 = vunpack.c.l.b16 %v1158
      %v1287 = vunpack.c.l.b16 %v1159
      %v1288 = vunpack.c.l.b16 %v1160
      %v1289 = vunpack.c.l.b16 %v1161
      %v1290 = vunpack.c.l.b16 %v1162
      %v1291 = vunpack.c.l.b16 %v1163
      %v1292 = vunpack.c.l.b16 %v1164
      %v1293 = vunpack.c.l.b16 %v1165
      %v1294 = vunpack.c.l.b16 %v1166
      %v1295 = vunpack.c.l.b16 %v1167
      %v1296 = vunpack.c.l.b16 %v1168
      %v1297 = vunpack.c.l.b16 %v1169
      %v1298 = vpack.c.b16 %v1283, %v1282
      %v1299 = vpack.c.b16 %v1285, %v1284
      %v1300 = vpack.c.b16 %v1287, %v1286
      %v1301 = vpack.c.b16 %v1289, %v1288
      %v1302 = vpack.c.b16 %v1291, %v1290
      %v1303 = vpack.c.b16 %v1293, %v1292
      %v1304 = vpack.c.b16 %v1295, %v1294
      %v1305 = vpack.c.b16 %v1297, %v1296
      %1314 = vmatprep.subr.bf16.mxu0 0
      %1315 = vmatpush1.bf16.msra.mxu0 %v1298
      %1316 = vmatprep.subr.bf16.mxu0 0
      %1317 = vmatpush1.bf16.msra.mxu0 %v1299
      %1318 = vmatprep.subr.bf16.mxu0 0
      %1319 = vmatpush1.bf16.msra.mxu0 %v1300
      %1320 = vmatprep.subr.bf16.mxu0 0
      %1321 = vmatpush1.bf16.msra.mxu0 %v1301
      %1322 = vmatprep.subr.bf16.mxu0 0
      %1323 = vmatpush1.bf16.msra.mxu0 %v1302
      %1324 = vmatprep.subr.bf16.mxu0 0
      %1325 = vmatpush1.bf16.msra.mxu0 %v1303
      %1326 = vmatprep.subr.bf16.mxu0 0
      %1327 = vmatpush1.bf16.msra.mxu0 %v1304
      %1328 = vmatprep.subr.bf16.mxu0 0
      %1329 = vmatpush1.bf16.msra.mxu0 %v1305
      %1330 = vmatprep.subr.bf16.mxu0 0
      %1331 = vmatpush1.bf16.msra.mxu0 0
      %1332 = vmatprep.subr.bf16.mxu0 0
      %1333 = vmatpush1.bf16.msra.mxu0 0
      %1334 = vmatprep.subr.bf16.mxu0 0
      %1335 = vmatpush1.bf16.msra.mxu0 0
      %1336 = vmatprep.subr.bf16.mxu0 0
      %1337 = vmatpush1.bf16.msra.mxu0 0
      %1338 = vmatprep.subr.bf16.mxu0 0
      %1339 = vmatpush1.bf16.msra.mxu0 0
      %1340 = vmatprep.subr.bf16.mxu0 0
      %1341 = vmatpush1.bf16.msra.mxu0 0
      %1342 = vmatprep.subr.bf16.mxu0 0
      %1343 = vmatpush1.bf16.msra.mxu0 0
      %1344 = vmatprep.subr.bf16.mxu0 0
      %1345 = vmatpush1.bf16.msra.mxu0 0
      %1346 = vmatprep.mubr.bf16.mxu0 0
      %1347 = vmatmul.mubr.bf16.gmra.mrb[0].mxu0 %v1234
      %v1348 = vpop.f32.mrb[0].mxu0
      %v1349 = vadd.f32 0.0, %v1348
      %v1350 = vpop.f32.mrb[0].mxu0
      %v1351 = vpop.f32.mrb[0].mxu0
      %v1352 = vadd.f32 0.0, %v1351
      %v1353 = vpop.f32.mrb[0].mxu0
      %1354 = vmatprep.mubr.bf16.mxu0 0
      %1355 = vmatmul.mubr.bf16.gmra.mrb[0].mxu0 %v1235
      %v1356 = vpop.f32.mrb[0].mxu0
      %v1357 = vadd.f32 0.0, %v1356
      %v1358 = vpop.f32.mrb[0].mxu0
      %v1359 = vpop.f32.mrb[0].mxu0
      %v1360 = vadd.f32 0.0, %v1359
      %v1361 = vpop.f32.mrb[0].mxu0
      %1362 = vmatprep.mubr.bf16.mxu0 0
      %1363 = vmatmul.mubr.bf16.gmra.mrb[0].mxu0 %v1236
      %v1364 = vpop.f32.mrb[0].mxu0
      %v1365 = vadd.f32 0.0, %v1364
      %v1366 = vpop.f32.mrb[0].mxu0
      %v1367 = vpop.f32.mrb[0].mxu0
      %v1368 = vadd.f32 0.0, %v1367
      %v1369 = vpop.f32.mrb[0].mxu0
      %1370 = vmatprep.mubr.bf16.mxu0 0
      %1371 = vmatmul.mubr.bf16.gmra.mrb[0].mxu0 %v1237
      %v1372 = vpop.f32.mrb[0].mxu0
      %v1373 = vadd.f32 0.0, %v1372
      %v1374 = vpop.f32.mrb[0].mxu0
      %v1375 = vpop.f32.mrb[0].mxu0
      %v1376 = vadd.f32 0.0, %v1375
      %v1377 = vpop.f32.mrb[0].mxu0
      %1378 = vmatprep.mubr.bf16.mxu0 0
      %1379 = vmatmul.mubr.bf16.gmra.mrb[0].mxu0 %v1238
      %v1380 = vpop.f32.mrb[0].mxu0
      %v1381 = vadd.f32 0.0, %v1380
      %v1382 = vpop.f32.mrb[0].mxu0
      %v1383 = vpop.f32.mrb[0].mxu0
      %v1384 = vadd.f32 0.0, %v1383
      %v1385 = vpop.f32.mrb[0].mxu0
      %1386 = vmatprep.mubr.bf16.mxu0 0
      %1387 = vmatmul.mubr.bf16.gmra.mrb[0].mxu0 %v1239
      %v1388 = vpop.f32.mrb[0].mxu0
      %v1389 = vadd.f32 0.0, %v1388
      %v1390 = vpop.f32.mrb[0].mxu0
      %v1391 = vpop.f32.mrb[0].mxu0
      %v1392 = vadd.f32 0.0, %v1391
      %v1393 = vpop.f32.mrb[0].mxu0
      %1394 = vmatprep.mubr.bf16.mxu0 0
      %1395 = vmatmul.mubr.bf16.gmra.mrb[0].mxu0 %v1240
      %v1396 = vpop.f32.mrb[0].mxu0
      %v1397 = vadd.f32 0.0, %v1396
      %v1398 = vpop.f32.mrb[0].mxu0
      %v1399 = vpop.f32.mrb[0].mxu0
      %v1400 = vadd.f32 0.0, %v1399
      %v1401 = vpop.f32.mrb[0].mxu0
      %1402 = vmatprep.mubr.bf16.mxu0 0
      %1403 = vmatmul.mubr.bf16.gmra.mrb[0].mxu0 %v1241
      %v1404 = vpop.f32.mrb[0].mxu0
      %v1405 = vadd.f32 0.0, %v1404
      %v1406 = vpop.f32.mrb[0].mxu0
      %v1407 = vpop.f32.mrb[0].mxu0
      %v1408 = vadd.f32 0.0, %v1407
      %v1409 = vpop.f32.mrb[0].mxu0
      %1410 = vmatprep.mubr.bf16.mxu0 0
      %1411 = vmatmul.mubr.bf16.gmra.mrb[0].mxu0 %v1242
      %v1412 = vpop.f32.mrb[0].mxu0
      %v1413 = vadd.f32 0.0, %v1412
      %v1414 = vpop.f32.mrb[0].mxu0
      %v1415 = vpop.f32.mrb[0].mxu0
      %v1416 = vadd.f32 0.0, %v1415
      %v1417 = vpop.f32.mrb[0].mxu0
      %1418 = vmatprep.mubr.bf16.mxu0 0
      %1419 = vmatmul.mubr.bf16.gmra.mrb[0].mxu0 %v1243
      %v1420 = vpop.f32.mrb[0].mxu0
      %v1421 = vadd.f32 0.0, %v1420
      %v1422 = vpop.f32.mrb[0].mxu0
      %v1423 = vpop.f32.mrb[0].mxu0
      %v1424 = vadd.f32 0.0, %v1423
      %v1425 = vpop.f32.mrb[0].mxu0
      %1426 = vmatprep.mubr.bf16.mxu0 0
      %1427 = vmatmul.mubr.bf16.gmra.mrb[0].mxu0 %v1244
      %v1428 = vpop.f32.mrb[0].mxu0
      %v1429 = vadd.f32 0.0, %v1428
      %v1430 = vpop.f32.mrb[0].mxu0
      %v1431 = vpop.f32.mrb[0].mxu0
      %v1432 = vadd.f32 0.0, %v1431
      %v1433 = vpop.f32.mrb[0].mxu0
      %1434 = vmatprep.mubr.bf16.mxu0 0
      %1435 = vmatmul.mubr.bf16.gmra.mrb[0].mxu0 %v1245
      %v1436 = vpop.f32.mrb[0].mxu0
      %v1437 = vadd.f32 0.0, %v1436
      %v1438 = vpop.f32.mrb[0].mxu0
      %v1439 = vpop.f32.mrb[0].mxu0
      %v1440 = vadd.f32 0.0, %v1439
      %v1441 = vpop.f32.mrb[0].mxu0
      %1442 = vmatprep.mubr.bf16.mxu0 0
      %1443 = vmatmul.mubr.bf16.gmra.mrb[0].mxu0 %v1246
      %v1444 = vpop.f32.mrb[0].mxu0
      %v1445 = vadd.f32 0.0, %v1444
      %v1446 = vpop.f32.mrb[0].mxu0
      %v1447 = vpop.f32.mrb[0].mxu0
      %v1448 = vadd.f32 0.0, %v1447
      %v1449 = vpop.f32.mrb[0].mxu0
      %1450 = vmatprep.mubr.bf16.mxu0 0
      %1451 = vmatmul.mubr.bf16.gmra.mrb[0].mxu0 %v1247
      %v1452 = vpop.f32.mrb[0].mxu0
      %v1453 = vadd.f32 0.0, %v1452
      %v1454 = vpop.f32.mrb[0].mxu0
      %v1455 = vpop.f32.mrb[0].mxu0
      %v1456 = vadd.f32 0.0, %v1455
      %v1457 = vpop.f32.mrb[0].mxu0
      %1458 = vmatprep.mubr.bf16.mxu0 0
      %1459 = vmatmul.mubr.bf16.gmra.mrb[0].mxu0 %v1248
      %v1460 = vpop.f32.mrb[0].mxu0
      %v1461 = vadd.f32 0.0, %v1460
      %v1462 = vpop.f32.mrb[0].mxu0
      %v1463 = vpop.f32.mrb[0].mxu0
      %v1464 = vadd.f32 0.0, %v1463
      %v1465 = vpop.f32.mrb[0].mxu0
      %1466 = vmatprep.mubr.bf16.mxu0 0
      %1467 = vmatmul.mubr.bf16.gmra.mrb[0].mxu0 %v1249
      %v1468 = vpop.f32.mrb[0].mxu0
      %v1469 = vadd.f32 0.0, %v1468
      %v1470 = vpop.f32.mrb[0].mxu0
      %v1471 = vpop.f32.mrb[0].mxu0
      %v1472 = vadd.f32 0.0, %v1471
      %v1473 = vpop.f32.mrb[0].mxu0
      %1474 = vdwg.mxu0
      %v1475 = vadd.f32 %v995, %v1349
      %v1476 = vadd.f32 %v998, %v1352
      %v1477 = vadd.f32 %v1003, %v1357
      %v1478 = vadd.f32 %v1006, %v1360
      %v1479 = vadd.f32 %v1011, %v1365
      %v1480 = vadd.f32 %v1014, %v1368
      %v1481 = vadd.f32 %v1019, %v1373
      %v1482 = vadd.f32 %v1022, %v1376
      %v1483 = vadd.f32 %v1027, %v1381
      %v1484 = vadd.f32 %v1030, %v1384
      %v1485 = vadd.f32 %v1035, %v1389
      %v1486 = vadd.f32 %v1038, %v1392
      %v1487 = vadd.f32 %v1043, %v1397
      %v1488 = vadd.f32 %v1046, %v1400
      %v1489 = vadd.f32 %v1051, %v1405
      %v1490 = vadd.f32 %v1054, %v1408
      %v1491 = vadd.f32 %v1059, %v1413
      %v1492 = vadd.f32 %v1062, %v1416
      %v1493 = vadd.f32 %v1067, %v1421
      %v1494 = vadd.f32 %v1070, %v1424
      %v1495 = vadd.f32 %v1075, %v1429
      %v1496 = vadd.f32 %v1078, %v1432
      %v1497 = vadd.f32 %v1083, %v1437
      %v1498 = vadd.f32 %v1086, %v1440
      %v1499 = vadd.f32 %v1091, %v1445
      %v1500 = vadd.f32 %v1094, %v1448
      %v1501 = vadd.f32 %v1099, %v1453
      %v1502 = vadd.f32 %v1102, %v1456
      %v1503 = vadd.f32 %v1107, %v1461
      %v1504 = vadd.f32 %v1110, %v1464
      %v1505 = vadd.f32 %v1115, %v1469
      %v1506 = vadd.f32 %v1118, %v1472
      %v1507 = vld [vmem:[%s392] sm:$0xf]
      %v1508 = vld [vmem:[%s392 + $0x4] sm:$0xf]
      %v1509 = vld [vmem:[%s392 + $0x8] sm:$0xf]
      %v1510 = vld [vmem:[%s392 + $0xc] sm:$0xf]
      %v1511 = vld [vmem:[%s392 + $0x10] sm:$0xf]
      %v1512 = vld [vmem:[%s392 + $0x14] sm:$0xf]
      %v1513 = vld [vmem:[%s392 + $0x18] sm:$0xf]
      %v1514 = vld [vmem:[%s392 + $0x1c] sm:$0xf]
      %v1515 = vld [vmem:[%s392 + $0x20] sm:$0xf]
      %v1516 = vld [vmem:[%s392 + $0x24] sm:$0xf]
      %v1517 = vld [vmem:[%s392 + $0x28] sm:$0xf]
      %v1518 = vld [vmem:[%s392 + $0x2c] sm:$0xf]
      %v1519 = vld [vmem:[%s392 + $0x30] sm:$0xf]
      %v1520 = vld [vmem:[%s392 + $0x34] sm:$0xf]
      %v1521 = vld [vmem:[%s392 + $0x38] sm:$0xf]
      %v1522 = vld [vmem:[%s392 + $0x3c] sm:$0xf]
      %v1523 = vld [vmem:[%s392 + $0x40] sm:$0xf]
      %v1524 = vld [vmem:[%s392 + $0x44] sm:$0xf]
      %v1525 = vld [vmem:[%s392 + $0x48] sm:$0xf]
      %v1526 = vld [vmem:[%s392 + $0x4c] sm:$0xf]
      %v1527 = vld [vmem:[%s392 + $0x50] sm:$0xf]
      %v1528 = vld [vmem:[%s392 + $0x54] sm:$0xf]
      %v1529 = vld [vmem:[%s392 + $0x58] sm:$0xf]
      %v1530 = vld [vmem:[%s392 + $0x5c] sm:$0xf]
      %v1531 = vld [vmem:[%s392 + $0x60] sm:$0xf]
      %v1532 = vld [vmem:[%s392 + $0x64] sm:$0xf]
      %v1533 = vld [vmem:[%s392 + $0x68] sm:$0xf]
      %v1534 = vld [vmem:[%s392 + $0x6c] sm:$0xf]
      %v1535 = vld [vmem:[%s392 + $0x70] sm:$0xf]
      %v1536 = vld [vmem:[%s392 + $0x74] sm:$0xf]
      %v1537 = vld [vmem:[%s392 + $0x78] sm:$0xf]
      %v1538 = vld [vmem:[%s392 + $0x7c] sm:$0xf]
      %s1539 = scalar_lea.vmem %s397, 192
      %v1540 = vld [vmem:[%s1539] sm:$0xf]
      %v1541 = vld [vmem:[%s1539 + $0x4] sm:$0xf]
      %v1542 = vld [vmem:[%s1539 + $0x8] sm:$0xf]
      %v1543 = vld [vmem:[%s1539 + $0xc] sm:$0xf]
      %v1544 = vld [vmem:[%s1539 + $0x10] sm:$0xf]
      %v1545 = vld [vmem:[%s1539 + $0x14] sm:$0xf]
      %v1546 = vld [vmem:[%s1539 + $0x18] sm:$0xf]
      %v1547 = vld [vmem:[%s1539 + $0x1c] sm:$0xf]
      %v1548 = vld [vmem:[%s1539 + $0x20] sm:$0xf]
      %v1549 = vld [vmem:[%s1539 + $0x24] sm:$0xf]
      %v1550 = vld [vmem:[%s1539 + $0x28] sm:$0xf]
      %v1551 = vld [vmem:[%s1539 + $0x2c] sm:$0xf]
      %v1552 = vld [vmem:[%s1539 + $0x30] sm:$0xf]
      %v1553 = vld [vmem:[%s1539 + $0x34] sm:$0xf]
      %v1554 = vld [vmem:[%s1539 + $0x38] sm:$0xf]
      %v1555 = vld [vmem:[%s1539 + $0x3c] sm:$0xf]
      %v1588 = vunpack.c.l.b16 %v1507
      %v1589 = vunpack.c.l.b16 %v1508
      %v1590 = vunpack.c.l.b16 %v1509
      %v1591 = vunpack.c.l.b16 %v1510
      %v1592 = vunpack.c.l.b16 %v1511
      %v1593 = vunpack.c.l.b16 %v1512
      %v1594 = vunpack.c.l.b16 %v1513
      %v1595 = vunpack.c.l.b16 %v1514
      %v1596 = vunpack.c.l.b16 %v1515
      %v1597 = vunpack.c.l.b16 %v1516
      %v1598 = vunpack.c.l.b16 %v1517
      %v1599 = vunpack.c.l.b16 %v1518
      %v1600 = vunpack.c.l.b16 %v1519
      %v1601 = vunpack.c.l.b16 %v1520
      %v1602 = vunpack.c.l.b16 %v1521
      %v1603 = vunpack.c.l.b16 %v1522
      %v1604 = vunpack.c.l.b16 %v1523
      %v1605 = vunpack.c.l.b16 %v1524
      %v1606 = vunpack.c.l.b16 %v1525
      %v1607 = vunpack.c.l.b16 %v1526
      %v1608 = vunpack.c.l.b16 %v1527
      %v1609 = vunpack.c.l.b16 %v1528
      %v1610 = vunpack.c.l.b16 %v1529
      %v1611 = vunpack.c.l.b16 %v1530
      %v1612 = vunpack.c.l.b16 %v1531
      %v1613 = vunpack.c.l.b16 %v1532
      %v1614 = vunpack.c.l.b16 %v1533
      %v1615 = vunpack.c.l.b16 %v1534
      %v1616 = vunpack.c.l.b16 %v1535
      %v1617 = vunpack.c.l.b16 %v1536
      %v1618 = vunpack.c.l.b16 %v1537
      %v1619 = vunpack.c.l.b16 %v1538
      %v1620 = vpack.c.b16 %v1589, %v1588
      %v1621 = vpack.c.b16 %v1591, %v1590
      %v1622 = vpack.c.b16 %v1593, %v1592
      %v1623 = vpack.c.b16 %v1595, %v1594
      %v1624 = vpack.c.b16 %v1597, %v1596
      %v1625 = vpack.c.b16 %v1599, %v1598
      %v1626 = vpack.c.b16 %v1601, %v1600
      %v1627 = vpack.c.b16 %v1603, %v1602
      %v1628 = vpack.c.b16 %v1605, %v1604
      %v1629 = vpack.c.b16 %v1607, %v1606
      %v1630 = vpack.c.b16 %v1609, %v1608
      %v1631 = vpack.c.b16 %v1611, %v1610
      %v1632 = vpack.c.b16 %v1613, %v1612
      %v1633 = vpack.c.b16 %v1615, %v1614
      %v1634 = vpack.c.b16 %v1617, %v1616
      %v1635 = vpack.c.b16 %v1619, %v1618
      %v1668 = vunpack.c.l.b16 %v1540
      %v1669 = vunpack.c.l.b16 %v1541
      %v1670 = vunpack.c.l.b16 %v1542
      %v1671 = vunpack.c.l.b16 %v1543
      %v1672 = vunpack.c.l.b16 %v1544
      %v1673 = vunpack.c.l.b16 %v1545
      %v1674 = vunpack.c.l.b16 %v1546
      %v1675 = vunpack.c.l.b16 %v1547
      %v1676 = vunpack.c.l.b16 %v1548
      %v1677 = vunpack.c.l.b16 %v1549
      %v1678 = vunpack.c.l.b16 %v1550
      %v1679 = vunpack.c.l.b16 %v1551
      %v1680 = vunpack.c.l.b16 %v1552
      %v1681 = vunpack.c.l.b16 %v1553
      %v1682 = vunpack.c.l.b16 %v1554
      %v1683 = vunpack.c.l.b16 %v1555
      %v1684 = vpack.c.b16 %v1669, %v1668
      %v1685 = vpack.c.b16 %v1671, %v1670
      %v1686 = vpack.c.b16 %v1673, %v1672
      %v1687 = vpack.c.b16 %v1675, %v1674
      %v1688 = vpack.c.b16 %v1677, %v1676
      %v1689 = vpack.c.b16 %v1679, %v1678
      %v1690 = vpack.c.b16 %v1681, %v1680
      %v1691 = vpack.c.b16 %v1683, %v1682
      %1700 = vmatprep.subr.bf16.mxu0 0
      %1701 = vmatpush1.bf16.msra.mxu0 %v1684
      %1702 = vmatprep.subr.bf16.mxu0 0
      %1703 = vmatpush1.bf16.msra.mxu0 %v1685
      %1704 = vmatprep.subr.bf16.mxu0 0
      %1705 = vmatpush1.bf16.msra.mxu0 %v1686
      %1706 = vmatprep.subr.bf16.mxu0 0
      %1707 = vmatpush1.bf16.msra.mxu0 %v1687
      %1708 = vmatprep.subr.bf16.mxu0 0
      %1709 = vmatpush1.bf16.msra.mxu0 %v1688
      %1710 = vmatprep.subr.bf16.mxu0 0
      %1711 = vmatpush1.bf16.msra.mxu0 %v1689
      %1712 = vmatprep.subr.bf16.mxu0 0
      %1713 = vmatpush1.bf16.msra.mxu0 %v1690
      %1714 = vmatprep.subr.bf16.mxu0 0
      %1715 = vmatpush1.bf16.msra.mxu0 %v1691
      %1716 = vmatprep.subr.bf16.mxu0 0
      %1717 = vmatpush1.bf16.msra.mxu0 0
      %1718 = vmatprep.subr.bf16.mxu0 0
      %1719 = vmatpush1.bf16.msra.mxu0 0
      %1720 = vmatprep.subr.bf16.mxu0 0
      %1721 = vmatpush1.bf16.msra.mxu0 0
      %1722 = vmatprep.subr.bf16.mxu0 0
      %1723 = vmatpush1.bf16.msra.mxu0 0
      %1724 = vmatprep.subr.bf16.mxu0 0
      %1725 = vmatpush1.bf16.msra.mxu0 0
      %1726 = vmatprep.subr.bf16.mxu0 0
      %1727 = vmatpush1.bf16.msra.mxu0 0
      %1728 = vmatprep.subr.bf16.mxu0 0
      %1729 = vmatpush1.bf16.msra.mxu0 0
      %1730 = vmatprep.subr.bf16.mxu0 0
      %1731 = vmatpush1.bf16.msra.mxu0 0
      %1732 = vmatprep.mubr.bf16.mxu0 0
      %1733 = vmatmul.mubr.bf16.gmra.mrb[0].mxu0 %v1620
      %v1734 = vpop.f32.mrb[0].mxu0
      %v1735 = vadd.f32 0.0, %v1734
      %v1736 = vpop.f32.mrb[0].mxu0
      %v1737 = vpop.f32.mrb[0].mxu0
      %v1738 = vadd.f32 0.0, %v1737
      %v1739 = vpop.f32.mrb[0].mxu0
      %1740 = vmatprep.mubr.bf16.mxu0 0
      %1741 = vmatmul.mubr.bf16.gmra.mrb[0].mxu0 %v1621
      %v1742 = vpop.f32.mrb[0].mxu0
      %v1743 = vadd.f32 0.0, %v1742
      %v1744 = vpop.f32.mrb[0].mxu0
      %v1745 = vpop.f32.mrb[0].mxu0
      %v1746 = vadd.f32 0.0, %v1745
      %v1747 = vpop.f32.mrb[0].mxu0
      %1748 = vmatprep.mubr.bf16.mxu0 0
      %1749 = vmatmul.mubr.bf16.gmra.mrb[0].mxu0 %v1622
      %v1750 = vpop.f32.mrb[0].mxu0
      %v1751 = vadd.f32 0.0, %v1750
      %v1752 = vpop.f32.mrb[0].mxu0
      %v1753 = vpop.f32.mrb[0].mxu0
      %v1754 = vadd.f32 0.0, %v1753
      %v1755 = vpop.f32.mrb[0].mxu0
      %1756 = vmatprep.mubr.bf16.mxu0 0
      %1757 = vmatmul.mubr.bf16.gmra.mrb[0].mxu0 %v1623
      %v1758 = vpop.f32.mrb[0].mxu0
      %v1759 = vadd.f32 0.0, %v1758
      %v1760 = vpop.f32.mrb[0].mxu0
      %v1761 = vpop.f32.mrb[0].mxu0
      %v1762 = vadd.f32 0.0, %v1761
      %v1763 = vpop.f32.mrb[0].mxu0
      %1764 = vmatprep.mubr.bf16.mxu0 0
      %1765 = vmatmul.mubr.bf16.gmra.mrb[0].mxu0 %v1624
      %v1766 = vpop.f32.mrb[0].mxu0
      %v1767 = vadd.f32 0.0, %v1766
      %v1768 = vpop.f32.mrb[0].mxu0
      %v1769 = vpop.f32.mrb[0].mxu0
      %v1770 = vadd.f32 0.0, %v1769
      %v1771 = vpop.f32.mrb[0].mxu0
      %1772 = vmatprep.mubr.bf16.mxu0 0
      %1773 = vmatmul.mubr.bf16.gmra.mrb[0].mxu0 %v1625
      %v1774 = vpop.f32.mrb[0].mxu0
      %v1775 = vadd.f32 0.0, %v1774
      %v1776 = vpop.f32.mrb[0].mxu0
      %v1777 = vpop.f32.mrb[0].mxu0
      %v1778 = vadd.f32 0.0, %v1777
      %v1779 = vpop.f32.mrb[0].mxu0
      %1780 = vmatprep.mubr.bf16.mxu0 0
      %1781 = vmatmul.mubr.bf16.gmra.mrb[0].mxu0 %v1626
      %v1782 = vpop.f32.mrb[0].mxu0
      %v1783 = vadd.f32 0.0, %v1782
      %v1784 = vpop.f32.mrb[0].mxu0
      %v1785 = vpop.f32.mrb[0].mxu0
      %v1786 = vadd.f32 0.0, %v1785
      %v1787 = vpop.f32.mrb[0].mxu0
      %1788 = vmatprep.mubr.bf16.mxu0 0
      %1789 = vmatmul.mubr.bf16.gmra.mrb[0].mxu0 %v1627
      %v1790 = vpop.f32.mrb[0].mxu0
      %v1791 = vadd.f32 0.0, %v1790
      %v1792 = vpop.f32.mrb[0].mxu0
      %v1793 = vpop.f32.mrb[0].mxu0
      %v1794 = vadd.f32 0.0, %v1793
      %v1795 = vpop.f32.mrb[0].mxu0
      %1796 = vmatprep.mubr.bf16.mxu0 0
      %1797 = vmatmul.mubr.bf16.gmra.mrb[0].mxu0 %v1628
      %v1798 = vpop.f32.mrb[0].mxu0
      %v1799 = vadd.f32 0.0, %v1798
      %v1800 = vpop.f32.mrb[0].mxu0
      %v1801 = vpop.f32.mrb[0].mxu0
      %v1802 = vadd.f32 0.0, %v1801
      %v1803 = vpop.f32.mrb[0].mxu0
      %1804 = vmatprep.mubr.bf16.mxu0 0
      %1805 = vmatmul.mubr.bf16.gmra.mrb[0].mxu0 %v1629
      %v1806 = vpop.f32.mrb[0].mxu0
      %v1807 = vadd.f32 0.0, %v1806
      %v1808 = vpop.f32.mrb[0].mxu0
      %v1809 = vpop.f32.mrb[0].mxu0
      %v1810 = vadd.f32 0.0, %v1809
      %v1811 = vpop.f32.mrb[0].mxu0
      %1812 = vmatprep.mubr.bf16.mxu0 0
      %1813 = vmatmul.mubr.bf16.gmra.mrb[0].mxu0 %v1630
      %v1814 = vpop.f32.mrb[0].mxu0
      %v1815 = vadd.f32 0.0, %v1814
      %v1816 = vpop.f32.mrb[0].mxu0
      %v1817 = vpop.f32.mrb[0].mxu0
      %v1818 = vadd.f32 0.0, %v1817
      %v1819 = vpop.f32.mrb[0].mxu0
      %1820 = vmatprep.mubr.bf16.mxu0 0
      %1821 = vmatmul.mubr.bf16.gmra.mrb[0].mxu0 %v1631
      %v1822 = vpop.f32.mrb[0].mxu0
      %v1823 = vadd.f32 0.0, %v1822
      %v1824 = vpop.f32.mrb[0].mxu0
      %v1825 = vpop.f32.mrb[0].mxu0
      %v1826 = vadd.f32 0.0, %v1825
      %v1827 = vpop.f32.mrb[0].mxu0
      %1828 = vmatprep.mubr.bf16.mxu0 0
      %1829 = vmatmul.mubr.bf16.gmra.mrb[0].mxu0 %v1632
      %v1830 = vpop.f32.mrb[0].mxu0
      %v1831 = vadd.f32 0.0, %v1830
      %v1832 = vpop.f32.mrb[0].mxu0
      %v1833 = vpop.f32.mrb[0].mxu0
      %v1834 = vadd.f32 0.0, %v1833
      %v1835 = vpop.f32.mrb[0].mxu0
      %1836 = vmatprep.mubr.bf16.mxu0 0
      %1837 = vmatmul.mubr.bf16.gmra.mrb[0].mxu0 %v1633
      %v1838 = vpop.f32.mrb[0].mxu0
      %v1839 = vadd.f32 0.0, %v1838
      %v1840 = vpop.f32.mrb[0].mxu0
      %v1841 = vpop.f32.mrb[0].mxu0
      %v1842 = vadd.f32 0.0, %v1841
      %v1843 = vpop.f32.mrb[0].mxu0
      %1844 = vmatprep.mubr.bf16.mxu0 0
      %1845 = vmatmul.mubr.bf16.gmra.mrb[0].mxu0 %v1634
      %v1846 = vpop.f32.mrb[0].mxu0
      %v1847 = vadd.f32 0.0, %v1846
      %v1848 = vpop.f32.mrb[0].mxu0
      %v1849 = vpop.f32.mrb[0].mxu0
      %v1850 = vadd.f32 0.0, %v1849
      %v1851 = vpop.f32.mrb[0].mxu0
      %1852 = vmatprep.mubr.bf16.mxu0 0
      %1853 = vmatmul.mubr.bf16.gmra.mrb[0].mxu0 %v1635
      %v1854 = vpop.f32.mrb[0].mxu0
      %v1855 = vadd.f32 0.0, %v1854
      %v1856 = vpop.f32.mrb[0].mxu0
      %v1857 = vpop.f32.mrb[0].mxu0
      %v1858 = vadd.f32 0.0, %v1857
      %v1859 = vpop.f32.mrb[0].mxu0
      %1860 = vdwg.mxu0
      %v1861 = vadd.f32 %v1475, %v1735
      %v1862 = vadd.f32 %v1476, %v1738
      %v1863 = vadd.f32 %v1477, %v1743
      %v1864 = vadd.f32 %v1478, %v1746
      %v1865 = vadd.f32 %v1479, %v1751
      %v1866 = vadd.f32 %v1480, %v1754
      %v1867 = vadd.f32 %v1481, %v1759
      %v1868 = vadd.f32 %v1482, %v1762
      %v1869 = vadd.f32 %v1483, %v1767
      %v1870 = vadd.f32 %v1484, %v1770
      %v1871 = vadd.f32 %v1485, %v1775
      %v1872 = vadd.f32 %v1486, %v1778
      %v1873 = vadd.f32 %v1487, %v1783
      %v1874 = vadd.f32 %v1488, %v1786
      %v1875 = vadd.f32 %v1489, %v1791
      %v1876 = vadd.f32 %v1490, %v1794
      %v1877 = vadd.f32 %v1491, %v1799
      %v1878 = vadd.f32 %v1492, %v1802
      %v1879 = vadd.f32 %v1493, %v1807
      %v1880 = vadd.f32 %v1494, %v1810
      %v1881 = vadd.f32 %v1495, %v1815
      %v1882 = vadd.f32 %v1496, %v1818
      %v1883 = vadd.f32 %v1497, %v1823
      %v1884 = vadd.f32 %v1498, %v1826
      %v1885 = vadd.f32 %v1499, %v1831
      %v1886 = vadd.f32 %v1500, %v1834
      %v1887 = vadd.f32 %v1501, %v1839
      %v1888 = vadd.f32 %v1502, %v1842
      %v1889 = vadd.f32 %v1503, %v1847
      %v1890 = vadd.f32 %v1504, %v1850
      %v1891 = vadd.f32 %v1505, %v1855
      %v1892 = vadd.f32 %v1506, %v1858
      %v1893 = vld [vmem:[%s400] sm:$0x1]
      %v1895 = vlaneseq
      %v1896 = vshrl.u32 %v1895, 7
      %v1897 = vsub.s32 0, %v1896
      %v1898 = vrot.slane %v1893, %v1897
      %v1900 = vmul.f32 %v1861, %v1898
      %v1901 = vmul.f32 %v1862, %v1898
      %v1902 = vmul.f32 %v1863, %v1898
      %v1903 = vmul.f32 %v1864, %v1898
      %v1904 = vmul.f32 %v1865, %v1898
      %v1905 = vmul.f32 %v1866, %v1898
      %v1906 = vmul.f32 %v1867, %v1898
      %v1907 = vmul.f32 %v1868, %v1898
      %v1908 = vmul.f32 %v1869, %v1898
      %v1909 = vmul.f32 %v1870, %v1898
      %v1910 = vmul.f32 %v1871, %v1898
      %v1911 = vmul.f32 %v1872, %v1898
      %v1912 = vmul.f32 %v1873, %v1898
      %v1913 = vmul.f32 %v1874, %v1898
      %v1914 = vmul.f32 %v1875, %v1898
      %v1915 = vmul.f32 %v1876, %v1898
      %v1916 = vmul.f32 %v1877, %v1898
      %v1917 = vmul.f32 %v1878, %v1898
      %v1918 = vmul.f32 %v1879, %v1898
      %v1919 = vmul.f32 %v1880, %v1898
      %v1920 = vmul.f32 %v1881, %v1898
      %v1921 = vmul.f32 %v1882, %v1898
      %v1922 = vmul.f32 %v1883, %v1898
      %v1923 = vmul.f32 %v1884, %v1898
      %v1924 = vmul.f32 %v1885, %v1898
      %v1925 = vmul.f32 %v1886, %v1898
      %v1926 = vmul.f32 %v1887, %v1898
      %v1927 = vmul.f32 %v1888, %v1898
      %v1928 = vmul.f32 %v1889, %v1898
      %v1929 = vmul.f32 %v1890, %v1898
      %v1930 = vmul.f32 %v1891, %v1898
      %v1931 = vmul.f32 %v1892, %v1898
      %v1932 = vld [vmem:[%s403] sm:$0x1]
      %v1934 = vlaneseq
      %v1935 = vshrl.u32 %v1934, 7
      %v1936 = vsub.s32 0, %v1935
      %v1937 = vrot.slane %v1932, %v1936
      %v1939 = vadd.f32 %v1900, %v1937
      %v1940 = vadd.f32 %v1901, %v1937
      %v1941 = vadd.f32 %v1902, %v1937
      %v1942 = vadd.f32 %v1903, %v1937
      %v1943 = vadd.f32 %v1904, %v1937
      %v1944 = vadd.f32 %v1905, %v1937
      %v1945 = vadd.f32 %v1906, %v1937
      %v1946 = vadd.f32 %v1907, %v1937
      %v1947 = vadd.f32 %v1908, %v1937
      %v1948 = vadd.f32 %v1909, %v1937
      %v1949 = vadd.f32 %v1910, %v1937
      %v1950 = vadd.f32 %v1911, %v1937
      %v1951 = vadd.f32 %v1912, %v1937
      %v1952 = vadd.f32 %v1913, %v1937
      %v1953 = vadd.f32 %v1914, %v1937
      %v1954 = vadd.f32 %v1915, %v1937
      %v1955 = vadd.f32 %v1916, %v1937
      %v1956 = vadd.f32 %v1917, %v1937
      %v1957 = vadd.f32 %v1918, %v1937
      %v1958 = vadd.f32 %v1919, %v1937
      %v1959 = vadd.f32 %v1920, %v1937
      %v1960 = vadd.f32 %v1921, %v1937
      %v1961 = vadd.f32 %v1922, %v1937
      %v1962 = vadd.f32 %v1923, %v1937
      %v1963 = vadd.f32 %v1924, %v1937
      %v1964 = vadd.f32 %v1925, %v1937
      %v1965 = vadd.f32 %v1926, %v1937
      %v1966 = vadd.f32 %v1927, %v1937
      %v1967 = vadd.f32 %v1928, %v1937
      %v1968 = vadd.f32 %v1929, %v1937
      %v1969 = vadd.f32 %v1930, %v1937
      %v1970 = vadd.f32 %v1931, %v1937
      %v1971 = vsub.f32 0.0, %v1939
      %v1972 = vsub.f32 0.0, %v1940
      %v1973 = vsub.f32 0.0, %v1941
      %v1974 = vsub.f32 0.0, %v1942
      %v1975 = vsub.f32 0.0, %v1943
      %v1976 = vsub.f32 0.0, %v1944
      %v1977 = vsub.f32 0.0, %v1945
      %v1978 = vsub.f32 0.0, %v1946
      %v1979 = vsub.f32 0.0, %v1947
      %v1980 = vsub.f32 0.0, %v1948
      %v1981 = vsub.f32 0.0, %v1949
      %v1982 = vsub.f32 0.0, %v1950
      %v1983 = vsub.f32 0.0, %v1951
      %v1984 = vsub.f32 0.0, %v1952
      %v1985 = vsub.f32 0.0, %v1953
      %v1986 = vsub.f32 0.0, %v1954
      %v1987 = vsub.f32 0.0, %v1955
      %v1988 = vsub.f32 0.0, %v1956
      %v1989 = vsub.f32 0.0, %v1957
      %v1990 = vsub.f32 0.0, %v1958
      %v1991 = vsub.f32 0.0, %v1959
      %v1992 = vsub.f32 0.0, %v1960
      %v1993 = vsub.f32 0.0, %v1961
      %v1994 = vsub.f32 0.0, %v1962
      %v1995 = vsub.f32 0.0, %v1963
      %v1996 = vsub.f32 0.0, %v1964
      %v1997 = vsub.f32 0.0, %v1965
      %v1998 = vsub.f32 0.0, %v1966
      %v1999 = vsub.f32 0.0, %v1967
      %v2000 = vsub.f32 0.0, %v1968
      %v2001 = vsub.f32 0.0, %v1969
      %v2002 = vsub.f32 0.0, %v1970
      %v2003 = vmul.f32 %v1971, 1.442695
      %v2004 = vpow.pop %v2003
      %v2005 = vmul.f32 %v1972, 1.442695
      %v2006 = vpow.pop %v2005
      %v2007 = vmul.f32 %v1973, 1.442695
      %v2008 = vpow.pop %v2007
      %v2009 = vmul.f32 %v1974, 1.442695
      %v2010 = vpow.pop %v2009
      %v2011 = vmul.f32 %v1975, 1.442695
      %v2012 = vpow.pop %v2011
      %v2013 = vmul.f32 %v1976, 1.442695
      %v2014 = vpow.pop %v2013
      %v2015 = vmul.f32 %v1977, 1.442695
      %v2016 = vpow.pop %v2015
      %v2017 = vmul.f32 %v1978, 1.442695
      %v2018 = vpow.pop %v2017
      %v2019 = vmul.f32 %v1979, 1.442695
      %v2020 = vpow.pop %v2019
      %v2021 = vmul.f32 %v1980, 1.442695
      %v2022 = vpow.pop %v2021
      %v2023 = vmul.f32 %v1981, 1.442695
      %v2024 = vpow.pop %v2023
      %v2025 = vmul.f32 %v1982, 1.442695
      %v2026 = vpow.pop %v2025
      %v2027 = vmul.f32 %v1983, 1.442695
      %v2028 = vpow.pop %v2027
      %v2029 = vmul.f32 %v1984, 1.442695
      %v2030 = vpow.pop %v2029
      %v2031 = vmul.f32 %v1985, 1.442695
      %v2032 = vpow.pop %v2031
      %v2033 = vmul.f32 %v1986, 1.442695
      %v2034 = vpow.pop %v2033
      %v2035 = vmul.f32 %v1987, 1.442695
      %v2036 = vpow.pop %v2035
      %v2037 = vmul.f32 %v1988, 1.442695
      %v2038 = vpow.pop %v2037
      %v2039 = vmul.f32 %v1989, 1.442695
      %v2040 = vpow.pop %v2039
      %v2041 = vmul.f32 %v1990, 1.442695
      %v2042 = vpow.pop %v2041
      %v2043 = vmul.f32 %v1991, 1.442695
      %v2044 = vpow.pop %v2043
      %v2045 = vmul.f32 %v1992, 1.442695
      %v2046 = vpow.pop %v2045
      %v2047 = vmul.f32 %v1993, 1.442695
      %v2048 = vpow.pop %v2047
      %v2049 = vmul.f32 %v1994, 1.442695
      %v2050 = vpow.pop %v2049
      %v2051 = vmul.f32 %v1995, 1.442695
      %v2052 = vpow.pop %v2051
      %v2053 = vmul.f32 %v1996, 1.442695
      %v2054 = vpow.pop %v2053
      %v2055 = vmul.f32 %v1997, 1.442695
      %v2056 = vpow.pop %v2055
      %v2057 = vmul.f32 %v1998, 1.442695
      %v2058 = vpow.pop %v2057
      %v2059 = vmul.f32 %v1999, 1.442695
      %v2060 = vpow.pop %v2059
      %v2061 = vmul.f32 %v2000, 1.442695
      %v2062 = vpow.pop %v2061
      %v2063 = vmul.f32 %v2001, 1.442695
      %v2064 = vpow.pop %v2063
      %v2065 = vmul.f32 %v2002, 1.442695
      %v2066 = vpow.pop %v2065
      %v2067 = vadd.f32 %v2004, 1.0
      %v2068 = vadd.f32 %v2006, 1.0
      %v2069 = vadd.f32 %v2008, 1.0
      %v2070 = vadd.f32 %v2010, 1.0
      %v2071 = vadd.f32 %v2012, 1.0
      %v2072 = vadd.f32 %v2014, 1.0
      %v2073 = vadd.f32 %v2016, 1.0
      %v2074 = vadd.f32 %v2018, 1.0
      %v2075 = vadd.f32 %v2020, 1.0
      %v2076 = vadd.f32 %v2022, 1.0
      %v2077 = vadd.f32 %v2024, 1.0
      %v2078 = vadd.f32 %v2026, 1.0
      %v2079 = vadd.f32 %v2028, 1.0
      %v2080 = vadd.f32 %v2030, 1.0
      %v2081 = vadd.f32 %v2032, 1.0
      %v2082 = vadd.f32 %v2034, 1.0
      %v2083 = vadd.f32 %v2036, 1.0
      %v2084 = vadd.f32 %v2038, 1.0
      %v2085 = vadd.f32 %v2040, 1.0
      %v2086 = vadd.f32 %v2042, 1.0
      %v2087 = vadd.f32 %v2044, 1.0
      %v2088 = vadd.f32 %v2046, 1.0
      %v2089 = vadd.f32 %v2048, 1.0
      %v2090 = vadd.f32 %v2050, 1.0
      %v2091 = vadd.f32 %v2052, 1.0
      %v2092 = vadd.f32 %v2054, 1.0
      %v2093 = vadd.f32 %v2056, 1.0
      %v2094 = vadd.f32 %v2058, 1.0
      %v2095 = vadd.f32 %v2060, 1.0
      %v2096 = vadd.f32 %v2062, 1.0
      %v2097 = vadd.f32 %v2064, 1.0
      %v2098 = vadd.f32 %v2066, 1.0
      %v2099 = vrcp.pop %v2067
      %v2100 = vrcp.pop %v2068
      %v2101 = vrcp.pop %v2069
      %v2102 = vrcp.pop %v2070
      %v2103 = vrcp.pop %v2071
      %v2104 = vrcp.pop %v2072
      %v2105 = vrcp.pop %v2073
      %v2106 = vrcp.pop %v2074
      %v2107 = vrcp.pop %v2075
      %v2108 = vrcp.pop %v2076
      %v2109 = vrcp.pop %v2077
      %v2110 = vrcp.pop %v2078
      %v2111 = vrcp.pop %v2079
      %v2112 = vrcp.pop %v2080
      %v2113 = vrcp.pop %v2081
      %v2114 = vrcp.pop %v2082
      %v2115 = vrcp.pop %v2083
      %v2116 = vrcp.pop %v2084
      %v2117 = vrcp.pop %v2085
      %v2118 = vrcp.pop %v2086
      %v2119 = vrcp.pop %v2087
      %v2120 = vrcp.pop %v2088
      %v2121 = vrcp.pop %v2089
      %v2122 = vrcp.pop %v2090
      %v2123 = vrcp.pop %v2091
      %v2124 = vrcp.pop %v2092
      %v2125 = vrcp.pop %v2093
      %v2126 = vrcp.pop %v2094
      %v2127 = vrcp.pop %v2095
      %v2128 = vrcp.pop %v2096
      %v2129 = vrcp.pop %v2097
      %v2130 = vrcp.pop %v2098
      %v2131 = vmul.f32 %v1939, %v2099
      %v2132 = vmul.f32 %v1940, %v2100
      %v2133 = vmul.f32 %v1941, %v2101
      %v2134 = vmul.f32 %v1942, %v2102
      %v2135 = vmul.f32 %v1943, %v2103
      %v2136 = vmul.f32 %v1944, %v2104
      %v2137 = vmul.f32 %v1945, %v2105
      %v2138 = vmul.f32 %v1946, %v2106
      %v2139 = vmul.f32 %v1947, %v2107
      %v2140 = vmul.f32 %v1948, %v2108
      %v2141 = vmul.f32 %v1949, %v2109
      %v2142 = vmul.f32 %v1950, %v2110
      %v2143 = vmul.f32 %v1951, %v2111
      %v2144 = vmul.f32 %v1952, %v2112
      %v2145 = vmul.f32 %v1953, %v2113
      %v2146 = vmul.f32 %v1954, %v2114
      %v2147 = vmul.f32 %v1955, %v2115
      %v2148 = vmul.f32 %v1956, %v2116
      %v2149 = vmul.f32 %v1957, %v2117
      %v2150 = vmul.f32 %v1958, %v2118
      %v2151 = vmul.f32 %v1959, %v2119
      %v2152 = vmul.f32 %v1960, %v2120
      %v2153 = vmul.f32 %v1961, %v2121
      %v2154 = vmul.f32 %v1962, %v2122
      %v2155 = vmul.f32 %v1963, %v2123
      %v2156 = vmul.f32 %v1964, %v2124
      %v2157 = vmul.f32 %v1965, %v2125
      %v2158 = vmul.f32 %v1966, %v2126
      %v2159 = vmul.f32 %v1967, %v2127
      %v2160 = vmul.f32 %v1968, %v2128
      %v2161 = vmul.f32 %v1969, %v2129
      %v2162 = vmul.f32 %v1970, %v2130
      %v2163 = vpack.c.bf16 %v2132, %v2131
      %v2164 = vpack.c.bf16 %v2134, %v2133
      %v2165 = vpack.c.bf16 %v2136, %v2135
      %v2166 = vpack.c.bf16 %v2138, %v2137
      %v2167 = vpack.c.bf16 %v2140, %v2139
      %v2168 = vpack.c.bf16 %v2142, %v2141
      %v2169 = vpack.c.bf16 %v2144, %v2143
      %v2170 = vpack.c.bf16 %v2146, %v2145
      %v2171 = vpack.c.bf16 %v2148, %v2147
      %v2172 = vpack.c.bf16 %v2150, %v2149
      %v2173 = vpack.c.bf16 %v2152, %v2151
      %v2174 = vpack.c.bf16 %v2154, %v2153
      %v2175 = vpack.c.bf16 %v2156, %v2155
      %v2176 = vpack.c.bf16 %v2158, %v2157
      %v2177 = vpack.c.bf16 %v2160, %v2159
      %v2178 = vpack.c.bf16 %v2162, %v2161
      %v2195 = vunpack.c.l.b16 %v2163
      %v2196 = vunpack.c.h.b16 %v2163
      %v2197 = vunpack.c.l.b16 %v2164
      %v2198 = vunpack.c.h.b16 %v2164
      %v2199 = vunpack.c.l.b16 %v2165
      %v2200 = vunpack.c.h.b16 %v2165
      %v2201 = vunpack.c.l.b16 %v2166
      %v2202 = vunpack.c.h.b16 %v2166
      %v2203 = vunpack.c.l.b16 %v2167
      %v2204 = vunpack.c.h.b16 %v2167
      %v2205 = vunpack.c.l.b16 %v2168
      %v2206 = vunpack.c.h.b16 %v2168
      %v2207 = vunpack.c.l.b16 %v2169
      %v2208 = vunpack.c.h.b16 %v2169
      %v2209 = vunpack.c.l.b16 %v2170
      %v2210 = vunpack.c.h.b16 %v2170
      %v2211 = vunpack.c.l.b16 %v2171
      %v2212 = vunpack.c.h.b16 %v2171
      %v2213 = vunpack.c.l.b16 %v2172
      %v2214 = vunpack.c.h.b16 %v2172
      %v2215 = vunpack.c.l.b16 %v2173
      %v2216 = vunpack.c.h.b16 %v2173
      %v2217 = vunpack.c.l.b16 %v2174
      %v2218 = vunpack.c.h.b16 %v2174
      %v2219 = vunpack.c.l.b16 %v2175
      %v2220 = vunpack.c.h.b16 %v2175
      %v2221 = vunpack.c.l.b16 %v2176
      %v2222 = vunpack.c.h.b16 %v2176
      %v2223 = vunpack.c.l.b16 %v2177
      %v2224 = vunpack.c.h.b16 %v2177
      %v2225 = vunpack.c.l.b16 %v2178
      %v2226 = vunpack.c.h.b16 %v2178
      %v2227 = vpack.c.b16 %v2195, %v2195
      %v2228 = vpack.c.b16 %v2196, %v2196
      %v2229 = vpack.c.b16 %v2197, %v2197
      %v2230 = vpack.c.b16 %v2198, %v2198
      %v2231 = vpack.c.b16 %v2199, %v2199
      %v2232 = vpack.c.b16 %v2200, %v2200
      %v2233 = vpack.c.b16 %v2201, %v2201
      %v2234 = vpack.c.b16 %v2202, %v2202
      %v2235 = vpack.c.b16 %v2203, %v2203
      %v2236 = vpack.c.b16 %v2204, %v2204
      %v2237 = vpack.c.b16 %v2205, %v2205
      %v2238 = vpack.c.b16 %v2206, %v2206
      %v2239 = vpack.c.b16 %v2207, %v2207
      %v2240 = vpack.c.b16 %v2208, %v2208
      %v2241 = vpack.c.b16 %v2209, %v2209
      %v2242 = vpack.c.b16 %v2210, %v2210
      %v2243 = vpack.c.b16 %v2211, %v2211
      %v2244 = vpack.c.b16 %v2212, %v2212
      %v2245 = vpack.c.b16 %v2213, %v2213
      %v2246 = vpack.c.b16 %v2214, %v2214
      %v2247 = vpack.c.b16 %v2215, %v2215
      %v2248 = vpack.c.b16 %v2216, %v2216
      %v2249 = vpack.c.b16 %v2217, %v2217
      %v2250 = vpack.c.b16 %v2218, %v2218
      %v2251 = vpack.c.b16 %v2219, %v2219
      %v2252 = vpack.c.b16 %v2220, %v2220
      %v2253 = vpack.c.b16 %v2221, %v2221
      %v2254 = vpack.c.b16 %v2222, %v2222
      %v2255 = vpack.c.b16 %v2223, %v2223
      %v2256 = vpack.c.b16 %v2224, %v2224
      %v2257 = vpack.c.b16 %v2225, %v2225
      %v2258 = vpack.c.b16 %v2226, %v2226
      %2291 = vst [vmem:[%s411] sm:$0xf] %v2227
      %2292 = vst [vmem:[%s411 + $0x4] sm:$0xf] %v2228
      %2293 = vst [vmem:[%s411 + $0x8] sm:$0xf] %v2229
      %2294 = vst [vmem:[%s411 + $0xc] sm:$0xf] %v2230
      %2295 = vst [vmem:[%s411 + $0x10] sm:$0xf] %v2231
      %2296 = vst [vmem:[%s411 + $0x14] sm:$0xf] %v2232
      %2297 = vst [vmem:[%s411 + $0x18] sm:$0xf] %v2233
      %2298 = vst [vmem:[%s411 + $0x1c] sm:$0xf] %v2234
      %2299 = vst [vmem:[%s411 + $0x20] sm:$0xf] %v2235
      %2300 = vst [vmem:[%s411 + $0x24] sm:$0xf] %v2236
      %2301 = vst [vmem:[%s411 + $0x28] sm:$0xf] %v2237
      %2302 = vst [vmem:[%s411 + $0x2c] sm:$0xf] %v2238
      %2303 = vst [vmem:[%s411 + $0x30] sm:$0xf] %v2239
      %2304 = vst [vmem:[%s411 + $0x34] sm:$0xf] %v2240
      %2305 = vst [vmem:[%s411 + $0x38] sm:$0xf] %v2241
      %2306 = vst [vmem:[%s411 + $0x3c] sm:$0xf] %v2242
      %2307 = vst [vmem:[%s411 + $0x40] sm:$0xf] %v2243
      %2308 = vst [vmem:[%s411 + $0x44] sm:$0xf] %v2244
      %2309 = vst [vmem:[%s411 + $0x48] sm:$0xf] %v2245
      %2310 = vst [vmem:[%s411 + $0x4c] sm:$0xf] %v2246
      %2311 = vst [vmem:[%s411 + $0x50] sm:$0xf] %v2247
      %2312 = vst [vmem:[%s411 + $0x54] sm:$0xf] %v2248
      %2313 = vst [vmem:[%s411 + $0x58] sm:$0xf] %v2249
      %2314 = vst [vmem:[%s411 + $0x5c] sm:$0xf] %v2250
      %2315 = vst [vmem:[%s411 + $0x60] sm:$0xf] %v2251
      %2316 = vst [vmem:[%s411 + $0x64] sm:$0xf] %v2252
      %2317 = vst [vmem:[%s411 + $0x68] sm:$0xf] %v2253
      %2318 = vst [vmem:[%s411 + $0x6c] sm:$0xf] %v2254
      %2319 = vst [vmem:[%s411 + $0x70] sm:$0xf] %v2255
      %2320 = vst [vmem:[%s411 + $0x74] sm:$0xf] %v2256
      %2321 = vst [vmem:[%s411 + $0x78] sm:$0xf] %v2257
      %2322 = vst [vmem:[%s411 + $0x7c] sm:$0xf] %v2258
      %s2323 = smul.u32 32, %s22
      %p2324 = scmp.lt.s32.totalorder %s2323, 63
      %s2325 = scalar_select %p2324, %s2323, 63
      %p2326 = scmp.lt.s32.totalorder %s23, 0
      %s2327 = scalar_select %p2326, %s23, 0
      %s2328 = sadd.s32 %s2327, %s2325
      %s2329 = smul.addr %s2328, 4
      %s2330 = scalar_lea.vmem %s7, %s2329
      // Predicated region
      $region49: #{_c2f_forward_impl.11} parent=47 // pred_check
        %p2331 = pneg %p232
      $region50: #{_c2f_forward_impl.11} parent=47 // pred_check_branch
        %2333 = sbr.rel (%p2331) target = $region52
      $region51: #{_c2f_forward_impl.11} parent=47 // pred_region
        %s2334 = smul.u32 32, %s22
      $region52: #{_c2f_forward_impl.11} parent=47 // pred_fallthru
        _
    $region48: #{_c2f_forward_impl.11} parent=5 // pred_fallthru
      _
    %p2335 = scmp.le.s32.totalorder 2, %s13
    // Predicated region
    $region53: #{_c2f_forward_impl.11} parent=5 // pred_check
      %p2336 = pneg %p2335
    $region54: #{_c2f_forward_impl.11} parent=5 // pred_check_branch
      %2338 = sbr.rel (%p2336) target = $region56
    $region55: #{_c2f_forward_impl.11} parent=5 // pred_region
      %s2339 = ssub.s32 %s13, 2
      // Predicated region
      $region57: #{_c2f_forward_impl.11} parent=55 // pred_check
        %p2340 = pneg %p238
      $region58: #{_c2f_forward_impl.11} parent=55 // pred_check_branch
        %2342 = sbr.rel (%p2340) target = $region60
      $region59: #{_c2f_forward_impl.11} parent=55 // pred_region
        %s2343 = smul.u32 32, %s24
        %p2344 = scmp.lt.s32.totalorder %s2343, 63
        %s2345 = scalar_select %p2344, %s2343, 63
        %p2346 = scmp.lt.s32.totalorder %s25, 0
        %s2347 = scalar_select %p2346, %s25, 0
        %s2348 = sadd.s32 %s2347, %s2345
        %s2349 = smul.addr %s2348, 4
        %s2350 = scalar_lea.vmem %s7, %s2349
      $region60: #{_c2f_forward_impl.11} parent=55 // pred_fallthru
        _
    $region56: #{_c2f_forward_impl.11} parent=5 // pred_fallthru
      _
  $region6: #{_c2f_forward_impl.11} parent=0 // loop_footer
    %s17 = sadd.s32 1, %s13
  $region7: #{_c2f_forward_impl.11} parent=0 // loop_footer_branch
    %12 = sbr.rel target = $region3
  $region8: #{_c2f_forward_impl.11} parent=0 // loop_exit
    _

</llo_original>
